<compile_context>
chip_gen: v5e
topology: v5e:2x2
jax: 0.10.0
libtpu: 0.0.40
codegen_flags: <defaults>
</compile_context>

<pallas_src>
import jax
import jax.numpy as jnp
from jax.experimental import pallas as pl
from jax.experimental.pallas import tpu as pltpu

EPS = 1e-3        # BatchNorm2d eps=0.001
COUT_TILE = 528   # 1056 / 528 = 2 grid steps; multiple of 8 (sublane dim)


def fused_add_conv1x1_bn_kernel(x1_ref, x2_ref, w_ref, gb_ref, o_ref):
    # Elementwise add in channel-major layout (Cin, M); cast for the bf16 MXU path.
    # (Recomputed per grid step on resident data: with grid=2 this is a single
    #  redundant VPU pass, ~0.05-0.1 us -- accepted per perf review.)
    x = (x1_ref[...] + x2_ref[...]).astype(jnp.bfloat16)            # (Cin, M)
    w = w_ref[...]                                                   # (TC, Cin) bf16

    # 1x1 conv == channel-major matmul on the MXU, f32 accumulation.
    y = jnp.dot(w, x, preferred_element_type=jnp.float32)           # (TC, M)

    # BatchNorm (training mode): one-pass per-channel stats over the full M axis.
    inv_m = 1.0 / y.shape[1]                                         # static divisor
    s1 = jnp.sum(y, axis=1, keepdims=True)                           # (TC, 1)
    s2 = jnp.sum(y * y, axis=1, keepdims=True)                       # (TC, 1)
    mean = s1 * inv_m
    var = jnp.maximum(s2 * inv_m - mean * mean, 0.0)                 # biased variance
    inv = jax.lax.rsqrt(var + EPS)

    # Fold BN into a single per-channel scale/shift FMA.
    gamma = gb_ref[:, 0:1]                                           # (TC, 1)
    beta = gb_ref[:, 1:2]                                            # (TC, 1)
    scale = gamma * inv
    shift = beta - mean * scale
    o_ref[...] = y * scale + shift                                   # (TC, M)


def fused_forward(x367, x352, weight, gamma, beta):
    """x367, x352: (1, Cin, H, W) f32 (NCHW). weight: (Cout, Cin) f32 (squeezed 1x1
    conv weight). gamma, beta: (Cout,) f32. Returns (1, Cout, H, W) f32."""
    N, Cin, H, W = x367.shape
    Cout = weight.shape[0]
    M = N * H * W
    assert N == 1, "channel-major fast path assumes N == 1 (as in the module spec)"

    # Free reshapes (no transposes) thanks to N == 1.
    x1 = x367.reshape(Cin, M)
    x2 = x352.reshape(Cin, M)

    # Weight in bf16 once, outside the kernel hot path (would be stored bf16 in a
    # real deployment). gamma/beta packed into one (Cout, 2) input.
    w_bf16 = weight.astype(jnp.bfloat16)
    gb = jnp.stack([gamma, beta], axis=1)                            # (Cout, 2)

    tile = COUT_TILE if Cout % COUT_TILE == 0 else Cout   # fallback: single block
    grid = (Cout // tile,)

    out_flat = pl.pallas_call(
        fused_add_conv1x1_bn_kernel,
        out_shape=jax.ShapeDtypeStruct((Cout, M), jnp.float32),
        grid=grid,
        in_specs=[
            pl.BlockSpec((Cin, M), lambda j: (0, 0)),        # resident across grid
            pl.BlockSpec((Cin, M), lambda j: (0, 0)),        # resident across grid
            pl.BlockSpec((tile, Cin), lambda j: (j, 0)),     # bf16 weight tile
            pl.BlockSpec((tile, 2), lambda j: (j, 0)),       # packed gamma/beta tile
        ],
        out_specs=pl.BlockSpec((tile, M), lambda j: (j, 0)),
        compiler_params=pltpu.CompilerParams(
            dimension_semantics=("parallel",)),
    )(x1, x2, w_bf16, gb)

    # Free reshape back to NCHW.
    return out_flat.reshape(N, Cout, H, W)


def reference_forward(x367, x352, weight, gamma, beta):
    """Plain-JAX f32 reference with PyTorch semantics (for verification)."""
    x = x367 + x352
    N, Cin, H, W = x.shape
    Cout = weight.shape[0]
    xf = jnp.transpose(x, (0, 2, 3, 1)).reshape(-1, Cin)
    y = xf @ weight.T                                        # (M, Cout)
    mean = jnp.mean(y, axis=0, keepdims=True)
    var = jnp.mean((y - mean) ** 2, axis=0, keepdims=True)   # biased (training BN)
    y = (y - mean) / jnp.sqrt(var + EPS) * gamma[None, :] + beta[None, :]
    return jnp.transpose(y.reshape(N, H, W, Cout), (0, 3, 1, 2))


if __name__ == "__main__":
    key = jax.random.PRNGKey(0)
    k1, k2, k3, k4, k5 = jax.random.split(key, 5)

    N, Cin, H, W = 1, 176, 14, 14
    Cout = 1056

    x367 = jax.random.normal(k1, (N, Cin, H, W), dtype=jnp.float32)
    x352 = jax.random.normal(k2, (N, Cin, H, W), dtype=jnp.float32)

    # Conv2d(176, 1056, 1, bias=False) weight: (Cout, Cin, 1, 1) -> (Cout, Cin)
    weight = jax.random.normal(k3, (Cout, Cin), dtype=jnp.float32) * 0.05
    # BatchNorm2d affine params (default init gamma=1, beta=0; perturb deterministically)
    gamma = 1.0 + 0.1 * jax.random.normal(k4, (Cout,), dtype=jnp.float32)
    beta = 0.1 * jax.random.normal(k5, (Cout,), dtype=jnp.float32)

    out = fused_forward(x367, x352, weight, gamma, beta)
    out = jax.block_until_ready(out)

    ref = jax.block_until_ready(reference_forward(x367, x352, weight, gamma, beta))
    assert out.shape == (N, Cout, H, W)
    # Tolerance accounts for the bf16 MXU inputs (f32 accumulation); observed error
    # is ~1e-2 max against the pure-f32 reference.
    assert jnp.allclose(out, ref, atol=5e-2, rtol=5e-2), "mismatch vs reference"

    # TODO(synk): PyTorch training-mode BN also updates running_mean/running_var
    # (momentum=0.1); not computed here since only the forward value is consumed.

    print("KERNEL_OK")
</pallas_src>

<mosaic_0001>
module attributes {stable_mosaic.version = 11 : i64} {
  func.func @fused_add_conv1x1_bn_kernel(%arg0: i32, %arg1: memref<176x196xf32, #tpu.memory_space<vmem>>, %arg2: memref<176x196xf32, #tpu.memory_space<vmem>>, %arg3: memref<528x176xbf16, #tpu.memory_space<vmem>>, %arg4: memref<528x2xf32, #tpu.memory_space<vmem>>, %arg5: memref<528x196xf32, #tpu.memory_space<vmem>>) attributes {dimension_semantics = [#tpu.dimension_semantics<parallel>], iteration_bounds = array<i64: 2>, scalar_prefetch = 0 : i64, scratch_operands = 0 : i64, tpu.core_type = #tpu.core_type<tc>, window_params = [{pipeline_mode = #tpu.pipeline_mode<synchronous>, transform_indices = @transform_0, window_bounds = array<i64: 176, 196>}, {pipeline_mode = #tpu.pipeline_mode<synchronous>, transform_indices = @transform_1, window_bounds = array<i64: 176, 196>}, {transform_indices = @transform_2, window_bounds = array<i64: 528, 176>}, {transform_indices = @transform_3, window_bounds = array<i64: 528, 2>}, {transform_indices = @transform_4, window_bounds = array<i64: 528, 196>}]} {
    %c0 = arith.constant 0 : index
    %c0_0 = arith.constant 0 : index
    %0 = vector.load %arg1[%c0, %c0_0] : memref<176x196xf32, #tpu.memory_space<vmem>>, vector<176x196xf32>
    %c0_1 = arith.constant 0 : index
    %c0_2 = arith.constant 0 : index
    %1 = vector.load %arg2[%c0_1, %c0_2] : memref<176x196xf32, #tpu.memory_space<vmem>>, vector<176x196xf32>
    %2 = arith.addf %0, %1 : vector<176x196xf32>
    %3 = arith.truncf %2 : vector<176x196xf32> to vector<176x196xbf16>
    %c0_3 = arith.constant 0 : index
    %c0_4 = arith.constant 0 : index
    %4 = vector.load %arg3[%c0_3, %c0_4] : memref<528x176xbf16, #tpu.memory_space<vmem>>, vector<528x176xbf16>
    %cst = arith.constant dense<0.000000e+00> : vector<528x196xf32>
    %5 = tpu.matmul %4, %3, %cst {dimension_numbers = #tpu.dot_dimension_numbers<[1], [0], [0], [1], [0, 0, 1, 1], [], []>} : vector<528x176xbf16>, vector<176x196xbf16>, vector<528x196xf32> -> vector<528x196xf32>
    %cst_5 = arith.constant dense<0.000000e+00> : vector<528xf32>
    %6 = vector.multi_reduction <add>, %5, %cst_5 [1] : vector<528x196xf32> to vector<528xf32>
    %7 = vector.shape_cast %6 : vector<528xf32> to vector<528x1xf32>
    %8 = arith.mulf %5, %5 : vector<528x196xf32>
    %cst_6 = arith.constant dense<0.000000e+00> : vector<528xf32>
    %9 = vector.multi_reduction <add>, %8, %cst_6 [1] : vector<528x196xf32> to vector<528xf32>
    %10 = vector.shape_cast %9 : vector<528xf32> to vector<528x1xf32>
    %cst_7 = arith.constant 0.00510204071 : f32
    %11 = vector.broadcast %cst_7 : f32 to vector<528x1xf32>
    %12 = arith.mulf %7, %11 : vector<528x1xf32>
    %cst_8 = arith.constant 0.00510204071 : f32
    %13 = vector.broadcast %cst_8 : f32 to vector<528x1xf32>
    %14 = arith.mulf %10, %13 : vector<528x1xf32>
    %15 = arith.mulf %12, %12 : vector<528x1xf32>
    %16 = arith.subf %14, %15 : vector<528x1xf32>
    %cst_9 = arith.constant 0.000000e+00 : f32
    %17 = vector.broadcast %cst_9 : f32 to vector<528x1xf32>
    %18 = arith.maximumf %16, %17 : vector<528x1xf32>
    %cst_10 = arith.constant 1.000000e-03 : f32
    %19 = vector.broadcast %cst_10 : f32 to vector<528x1xf32>
    %20 = arith.addf %18, %19 : vector<528x1xf32>
    %21 = math.rsqrt %20 : vector<528x1xf32>
    %c0_11 = arith.constant 0 : index
    %c0_12 = arith.constant 0 : index
    %22 = vector.load %arg4[%c0_11, %c0_12] : memref<528x2xf32, #tpu.memory_space<vmem>>, vector<528x1xf32>
    %c0_13 = arith.constant 0 : index
    %c1 = arith.constant 1 : index
    %23 = vector.load %arg4[%c0_13, %c1] : memref<528x2xf32, #tpu.memory_space<vmem>>, vector<528x1xf32>
    %24 = arith.mulf %22, %21 : vector<528x1xf32>
    %25 = arith.mulf %12, %24 : vector<528x1xf32>
    %26 = arith.subf %23, %25 : vector<528x1xf32>
    %27 = vector.broadcast %24 : vector<528x1xf32> to vector<528x196xf32>
    %28 = arith.mulf %5, %27 : vector<528x196xf32>
    %29 = vector.broadcast %26 : vector<528x1xf32> to vector<528x196xf32>
    %30 = arith.addf %28, %29 : vector<528x196xf32>
    %c0_14 = arith.constant 0 : index
    %c0_15 = arith.constant 0 : index
    %31 = vector.load %arg5[%c0_14, %c0_15] : memref<528x196xf32, #tpu.memory_space<vmem>>, vector<528x196xf32>
    tpu.vector_store %arg5[%c0_14, %c0_15], %30 {strides = array<i32>} : memref<528x196xf32, #tpu.memory_space<vmem>>, vector<528x196xf32>,
    return
  }
  func.func @transform_0(%arg0: i32) -> (i32, i32) {
    %c0_i32 = arith.constant 0 : i32
    %c0_i32_0 = arith.constant 0 : i32
    %c0_i32_1 = arith.constant 0 : i32
    return %c0_i32, %c0_i32_0 : i32, i32
  }
  func.func @transform_1(%arg0: i32) -> (i32, i32) {
    %c0_i32 = arith.constant 0 : i32
    %c0_i32_0 = arith.constant 0 : i32
    %c0_i32_1 = arith.constant 0 : i32
    return %c0_i32, %c0_i32_0 : i32, i32
  }
  func.func @transform_2(%arg0: i32) -> (i32, i32) {
    %c0_i32 = arith.constant 0 : i32
    %c0_i32_0 = arith.constant 0 : i32
    return %arg0, %c0_i32 : i32, i32
  }
  func.func @transform_3(%arg0: i32) -> (i32, i32) {
    %c0_i32 = arith.constant 0 : i32
    %c0_i32_0 = arith.constant 0 : i32
    return %arg0, %c0_i32 : i32, i32
  }
  func.func @transform_4(%arg0: i32) -> (i32, i32) {
    %c0_i32 = arith.constant 0 : i32
    %c0_i32_0 = arith.constant 0 : i32
    return %arg0, %c0_i32 : i32, i32
  }
}

</mosaic_0001>

<llo_original>
// kernel: tpu_custom_call.1
$region0: #{tpu_custom_call.1}
  #allocation0 [shape = 'u32[]', space=smem, size = 0x4, offset = 0x4, fixed_abs, tag = 'smem constant byte address 0x4 - core index']
  #allocation1 [shape = 'u32[72,128]{1,0:T(1,128)}', space=vmem, size = 0x9000, scoped, tag = 'internal scratch']
  %s0 = inlined_call_operand.vmem [shape: f32[176,196], index: 0, kind: input, shape index: {}]
  %s1 = inlined_call_operand.vmem [shape: f32[176,196], index: 1, kind: input, shape index: {}]
  %s2 = inlined_call_operand.vmem [shape: bf16[1056,176], index: 2, kind: input, shape index: {}]
  %s3 = inlined_call_operand.vmem [shape: f32[1056,2], index: 3, kind: input, shape index: {}]
  %s4 = inlined_call_operand.vmem [shape: f32[1056,196], index: 4, kind: output, shape index: {}]
  %s5 = sld [smem:[#allocation0]]
  $region49: #{tpu_custom_call.1} parent=0
    _
  %s7 = ssub.s32 1, %s5
  %s8 = scalar_select 0, %s7, %s5
  loop: start=0, step=1, limit=4
  $region2: #{tpu_custom_call.1} parent=0 // loop_pre_header
    _
  $region3: #{tpu_custom_call.1} parent=0 // loop_header
    %s10 = sphi 0, %s14
    %p11 = scmp.ge.s32.totalorder %s10, 4
    %s18 = sphi 0, %s18
    %s20 = sphi 0, %s18
    %s21 = sphi 0, %s20
    %s35 = sphi 0, %s21
    %s39 = sphi 0, %s39
    %s41 = sphi 0, %s39
    %s42 = sphi 0, %s41
    %s56 = sphi 0, %s42
    %s62 = sphi 0, %s64
    %s65 = sphi 0, %s62
    %s66 = sphi 0, %s65
    %s82 = sphi 0, %s66
    %s88 = sphi 0, %s90
    %s91 = sphi 0, %s88
    %s92 = sphi 0, %s91
    %s108 = sphi 0, %s92
    %s114 = sphi 0, %s116
    %s117 = sphi 0, %s114
    %s118 = sphi 0, %s117
    %s134 = sphi 0, %s118
  $region4: #{tpu_custom_call.1} parent=0 // loop_header_branch
    %13 = sbr.rel (%p11) target = $region8
  $region5: #{tpu_custom_call.1} parent=0 // loop_body
    %s15 = ssub.s32 %s10, 1
    %s16 = ssub.s32 %s10, 2
    %s17 = sadd.s32 %s10, 1
    %s19 = sadd.s32 %s18, 1
    %p22 = scmp.eq.s32.totalorder %s10, 1
    %p23 = scmp.ne.s32.totalorder %s18, %s20
    %p24 = scmp.eq.s32.totalorder %s10, 0
    %p25 = por %p23, %p24
    %p26 = scmp.ne.s32.totalorder %s18, %s20
    %p27 = scmp.eq.s32.totalorder %s15, 1
    %p28 = por %p26, %p27
    %p29 = scmp.ne.s32.totalorder %s20, %s21
    %p30 = scmp.eq.s32.totalorder %s15, 0
    %p31 = por %p29, %p30
    %p32 = scmp.ne.s32.totalorder %s20, %s21
    %p33 = scmp.eq.s32.totalorder %s16, 1
    %p34 = por %p32, %p33
    %p36 = scmp.ne.s32.totalorder %s21, %s35
    %p37 = scmp.eq.s32.totalorder %s16, 0
    %p38 = por %p36, %p37
    %s40 = sadd.s32 %s39, 1
    %p43 = scmp.eq.s32.totalorder %s10, 1
    %p44 = scmp.ne.s32.totalorder %s39, %s41
    %p45 = scmp.eq.s32.totalorder %s10, 0
    %p46 = por %p44, %p45
    %p47 = scmp.ne.s32.totalorder %s39, %s41
    %p48 = scmp.eq.s32.totalorder %s15, 1
    %p49 = por %p47, %p48
    %p50 = scmp.ne.s32.totalorder %s41, %s42
    %p51 = scmp.eq.s32.totalorder %s15, 0
    %p52 = por %p50, %p51
    %p53 = scmp.ne.s32.totalorder %s41, %s42
    %p54 = scmp.eq.s32.totalorder %s16, 1
    %p55 = por %p53, %p54
    %p57 = scmp.ne.s32.totalorder %s42, %s56
    %p58 = scmp.eq.s32.totalorder %s16, 0
    %p59 = por %p57, %p58
    %s60 = ssub.s32 %s10, %s17
    %p61 = scmp.eq.s32.totalorder %s60, 0
    %s63 = sadd.s32 %s62, 1
    %s64 = scalar_select %p61, %s62, %s63
    %p67 = pneg %p61
    %p68 = scmp.eq.s32.totalorder %s10, 1
    %p69 = por %p67, %p68
    %p70 = scmp.ne.s32.totalorder %s62, %s65
    %p71 = scmp.eq.s32.totalorder %s10, 0
    %p72 = por %p70, %p71
    %p73 = scmp.ne.s32.totalorder %s62, %s65
    %p74 = scmp.eq.s32.totalorder %s15, 1
    %p75 = por %p73, %p74
    %p76 = scmp.ne.s32.totalorder %s65, %s66
    %p77 = scmp.eq.s32.totalorder %s15, 0
    %p78 = por %p76, %p77
    %p79 = scmp.ne.s32.totalorder %s65, %s66
    %p80 = scmp.eq.s32.totalorder %s16, 1
    %p81 = por %p79, %p80
    %p83 = scmp.ne.s32.totalorder %s66, %s82
    %p84 = scmp.eq.s32.totalorder %s16, 0
    %p85 = por %p83, %p84
    %s86 = ssub.s32 %s10, %s17
    %p87 = scmp.eq.s32.totalorder %s86, 0
    %s89 = sadd.s32 %s88, 1
    %s90 = scalar_select %p87, %s88, %s89
    %p93 = pneg %p87
    %p94 = scmp.eq.s32.totalorder %s10, 1
    %p95 = por %p93, %p94
    %p96 = scmp.ne.s32.totalorder %s88, %s91
    %p97 = scmp.eq.s32.totalorder %s10, 0
    %p98 = por %p96, %p97
    %p99 = scmp.ne.s32.totalorder %s88, %s91
    %p100 = scmp.eq.s32.totalorder %s15, 1
    %p101 = por %p99, %p100
    %p102 = scmp.ne.s32.totalorder %s91, %s92
    %p103 = scmp.eq.s32.totalorder %s15, 0
    %p104 = por %p102, %p103
    %p105 = scmp.ne.s32.totalorder %s91, %s92
    %p106 = scmp.eq.s32.totalorder %s16, 1
    %p107 = por %p105, %p106
    %p109 = scmp.ne.s32.totalorder %s92, %s108
    %p110 = scmp.eq.s32.totalorder %s16, 0
    %p111 = por %p109, %p110
    %s112 = ssub.s32 %s10, %s17
    %p113 = scmp.eq.s32.totalorder %s112, 0
    %s115 = sadd.s32 %s114, 1
    %s116 = scalar_select %p113, %s114, %s115
    %p119 = pneg %p113
    %p120 = scmp.eq.s32.totalorder %s10, 1
    %p121 = por %p119, %p120
    %p122 = scmp.ne.s32.totalorder %s114, %s117
    %p123 = scmp.eq.s32.totalorder %s10, 0
    %p124 = por %p122, %p123
    %p125 = scmp.ne.s32.totalorder %s114, %s117
    %p126 = scmp.eq.s32.totalorder %s15, 1
    %p127 = por %p125, %p126
    %p128 = scmp.ne.s32.totalorder %s117, %s118
    %p129 = scmp.eq.s32.totalorder %s15, 0
    %p130 = por %p128, %p129
    %p131 = scmp.ne.s32.totalorder %s117, %s118
    %p132 = scmp.eq.s32.totalorder %s16, 1
    %p133 = por %p131, %p132
    %p135 = scmp.ne.s32.totalorder %s118, %s134
    %p136 = scmp.eq.s32.totalorder %s16, 0
    %p137 = por %p135, %p136
    %p138 = scmp.le.s32.totalorder 1, %s10
    %p139 = scmp.lt.s32.totalorder %s10, 3
    %p140 = pnand %p138, %p139
    %p141 = pneg %p140
    // Predicated region
    $region9: #{tpu_custom_call.1} parent=5 // pred_check
      _
    $region10: #{tpu_custom_call.1} parent=5 // pred_check_branch
      %143 = sbr.rel (%p140) target = $region12
    $region11: #{tpu_custom_call.1} parent=5 // pred_region
      %s144 = ssub.s32 %s10, 1
      // Predicated region
      $region13: #{tpu_custom_call.1} parent=11 // pred_check
        %p145 = pneg %p31
      $region14: #{tpu_custom_call.1} parent=11 // pred_check_branch
        %147 = sbr.rel (%p145) target = $region16
      $region15: #{tpu_custom_call.1} parent=11 // pred_region
        _
      $region16: #{tpu_custom_call.1} parent=11 // pred_fallthru
        _
      // Predicated region
      $region17: #{tpu_custom_call.1} parent=11 // pred_check
        %p148 = pneg %p52
      $region18: #{tpu_custom_call.1} parent=11 // pred_check_branch
        %150 = sbr.rel (%p148) target = $region20
      $region19: #{tpu_custom_call.1} parent=11 // pred_region
        _
      $region20: #{tpu_custom_call.1} parent=11 // pred_fallthru
        _
    $region12: #{tpu_custom_call.1} parent=5 // pred_fallthru
      _
    %p151 = scmp.lt.s32.totalorder %s10, 2
    // Predicated region
    $region21: #{tpu_custom_call.1} parent=5 // pred_check
      %p152 = pneg %p151
    $region22: #{tpu_custom_call.1} parent=5 // pred_check_branch
      %154 = sbr.rel (%p152) target = $region24
    $region23: #{tpu_custom_call.1} parent=5 // pred_region
      // Predicated region
      $region25: #{tpu_custom_call.1} parent=23 // pred_check
        %p155 = pneg %p72
      $region26: #{tpu_custom_call.1} parent=23 // pred_check_branch
        %157 = sbr.rel (%p155) target = $region28
      $region27: #{tpu_custom_call.1} parent=23 // pred_region
        %s158 = smul.u32 66, %s10
        %p159 = scmp.lt.s32.totalorder %s158, 131
        %s160 = scalar_select %p159, %s158, 131
        %s161 = smul.addr %s160, 2
        %s162 = smul.addr %s161, 4
        %s163 = scalar_lea.vmem %s2, %s162
        %s164 = smul.u32 66, %s10
      $region28: #{tpu_custom_call.1} parent=23 // pred_fallthru
        _
      // Predicated region
      $region29: #{tpu_custom_call.1} parent=23 // pred_check
        %p165 = pneg %p98
      $region30: #{tpu_custom_call.1} parent=23 // pred_check_branch
        %167 = sbr.rel (%p165) target = $region32
      $region31: #{tpu_custom_call.1} parent=23 // pred_region
        %s168 = smul.u32 66, %s10
        %p169 = scmp.lt.s32.totalorder %s168, 131
        %s170 = scalar_select %p169, %s168, 131
        %s171 = smul.addr %s170, 8
        %s172 = scalar_lea.vmem %s3, %s171
        %s173 = smul.u32 66, %s10
      $region32: #{tpu_custom_call.1} parent=23 // pred_fallthru
        _
    $region24: #{tpu_custom_call.1} parent=5 // pred_fallthru
      _
    %p174 = scmp.le.s32.totalorder 1, %s10
    %p175 = scmp.lt.s32.totalorder %s10, 3
    %p176 = pnand %p174, %p175
    %p177 = pneg %p176
    // Predicated region
    $region33: #{tpu_custom_call.1} parent=5 // pred_check
      _
    $region34: #{tpu_custom_call.1} parent=5 // pred_check_branch
      %179 = sbr.rel (%p176) target = $region36
    $region35: #{tpu_custom_call.1} parent=5 // pred_region
      %s180 = ssub.s32 %s10, 1
      %p181 = pneg %p31
      %p182 = pneg %p28
      %p183 = pneg %p52
      %p184 = pneg %p49
      %s185 = smul.u32 66, %s15
      %p186 = scmp.lt.s32.totalorder %s185, 131
      %s187 = scalar_select %p186, %s185, 131
      %s188 = smul.addr %s187, 2
      %s189 = smul.addr %s188, 4
      %s190 = scalar_lea.vmem %s2, %s189
      %p191 = pneg %p78
      %p192 = pneg %p75
      %s193 = smul.u32 66, %s15
      %p194 = scmp.lt.s32.totalorder %s193, 131
      %s195 = scalar_select %p194, %s193, 131
      %s196 = smul.addr %s195, 8
      %s197 = scalar_lea.vmem %s3, %s196
      %p198 = pneg %p104
      %p199 = pneg %p101
      %p200 = pneg %p130
      %p201 = pneg %p127
      %s202 = smul.u32 66, %s15
      %p203 = scmp.lt.s32.totalorder %s202, 131
      %s204 = scalar_select %p203, %s202, 131
      %s205 = smul.addr %s204, 2
      %s206 = smul.addr %s205, 8
      %s207 = scalar_lea.vmem %s4, %s206
      %s208 = smul.u32 66, %s15
      %p209 = scmp.lt.s32.totalorder %s208, 131
      %s210 = scalar_select %p209, %s208, 131
      %s211 = smul.addr %s210, 2
      %s212 = smul.addr %s211, 4
      %s213 = scalar_lea.vmem %s2, %s212
      %s214 = smul.u32 66, %s15
      %s215 = smul.u32 66, %s15
      %p216 = scmp.lt.s32.totalorder %s215, 131
      %s217 = scalar_select %p216, %s215, 131
      %s218 = smul.addr %s217, 8
      %s219 = scalar_lea.vmem %s3, %s218
      %s220 = smul.u32 66, %s15
      %s221 = smul.u32 66, %s15
      %p222 = scmp.lt.s32.totalorder %s221, 131
      %s223 = scalar_select %p222, %s221, 131
      %s224 = smul.addr %s223, 2
      %s225 = smul.addr %s224, 8
      %s226 = scalar_lea.vmem %s4, %s225
      %s227 = smul.u32 66, %s15
      %v229 = vld [vmem:[%s0] sm:$0xff]
      %v230 = vld [vmem:[%s0 + $0x8] sm:$0xff]
      %v231 = vld [vmem:[%s0 + $0x10] sm:$0xff]
      %v232 = vld [vmem:[%s0 + $0x18] sm:$0xff]
      %v233 = vld [vmem:[%s0 + $0x20] sm:$0xff]
      %v234 = vld [vmem:[%s0 + $0x28] sm:$0xff]
      %v235 = vld [vmem:[%s0 + $0x30] sm:$0xff]
      %v236 = vld [vmem:[%s0 + $0x38] sm:$0xff]
      %v237 = vld [vmem:[%s0 + $0x40] sm:$0xff]
      %v238 = vld [vmem:[%s0 + $0x48] sm:$0xff]
      %v239 = vld [vmem:[%s0 + $0x50] sm:$0xff]
      %v240 = vld [vmem:[%s0 + $0x58] sm:$0xff]
      %v241 = vld [vmem:[%s0 + $0x60] sm:$0xff]
      %v242 = vld [vmem:[%s0 + $0x68] sm:$0xff]
      %v243 = vld [vmem:[%s0 + $0x70] sm:$0xff]
      %v244 = vld [vmem:[%s0 + $0x78] sm:$0xff]
      %v245 = vld [vmem:[%s0 + $0x80] sm:$0xff]
      %v246 = vld [vmem:[%s0 + $0x88] sm:$0xff]
      %v247 = vld [vmem:[%s0 + $0x90] sm:$0xff]
      %v248 = vld [vmem:[%s0 + $0x98] sm:$0xff]
      %v249 = vld [vmem:[%s0 + $0xa0] sm:$0xff]
      %v250 = vld [vmem:[%s0 + $0xa8] sm:$0xff]
      %v251 = vld [vmem:[%s0 + $0xb0] sm:$0xff]
      %v252 = vld [vmem:[%s0 + $0xb8] sm:$0xff]
      %v253 = vld [vmem:[%s0 + $0xc0] sm:$0xff]
      %v254 = vld [vmem:[%s0 + $0xc8] sm:$0xff]
      %v255 = vld [vmem:[%s0 + $0xd0] sm:$0xff]
      %v256 = vld [vmem:[%s0 + $0xd8] sm:$0xff]
      %v257 = vld [vmem:[%s0 + $0xe0] sm:$0xff]
      %v258 = vld [vmem:[%s0 + $0xe8] sm:$0xff]
      %v259 = vld [vmem:[%s0 + $0xf0] sm:$0xff]
      %v260 = vld [vmem:[%s0 + $0xf8] sm:$0xff]
      %v261 = vld [vmem:[%s0 + $0x100] sm:$0xff]
      %v262 = vld [vmem:[%s0 + $0x108] sm:$0xff]
      %v263 = vld [vmem:[%s0 + $0x110] sm:$0xff]
      %v264 = vld [vmem:[%s0 + $0x118] sm:$0xff]
      %v265 = vld [vmem:[%s0 + $0x120] sm:$0xff]
      %v266 = vld [vmem:[%s0 + $0x128] sm:$0xff]
      %v267 = vld [vmem:[%s0 + $0x130] sm:$0xff]
      %v268 = vld [vmem:[%s0 + $0x138] sm:$0xff]
      %v269 = vld [vmem:[%s0 + $0x140] sm:$0xff]
      %v270 = vld [vmem:[%s0 + $0x148] sm:$0xff]
      %v271 = vld [vmem:[%s0 + $0x150] sm:$0xff]
      %v272 = vld [vmem:[%s0 + $0x158] sm:$0xff]
      %v273 = vld [vmem:[%s1] sm:$0xff]
      %v274 = vld [vmem:[%s1 + $0x8] sm:$0xff]
      %v275 = vld [vmem:[%s1 + $0x10] sm:$0xff]
      %v276 = vld [vmem:[%s1 + $0x18] sm:$0xff]
      %v277 = vld [vmem:[%s1 + $0x20] sm:$0xff]
      %v278 = vld [vmem:[%s1 + $0x28] sm:$0xff]
      %v279 = vld [vmem:[%s1 + $0x30] sm:$0xff]
      %v280 = vld [vmem:[%s1 + $0x38] sm:$0xff]
      %v281 = vld [vmem:[%s1 + $0x40] sm:$0xff]
      %v282 = vld [vmem:[%s1 + $0x48] sm:$0xff]
      %v283 = vld [vmem:[%s1 + $0x50] sm:$0xff]
      %v284 = vld [vmem:[%s1 + $0x58] sm:$0xff]
      %v285 = vld [vmem:[%s1 + $0x60] sm:$0xff]
      %v286 = vld [vmem:[%s1 + $0x68] sm:$0xff]
      %v287 = vld [vmem:[%s1 + $0x70] sm:$0xff]
      %v288 = vld [vmem:[%s1 + $0x78] sm:$0xff]
      %v289 = vld [vmem:[%s1 + $0x80] sm:$0xff]
      %v290 = vld [vmem:[%s1 + $0x88] sm:$0xff]
      %v291 = vld [vmem:[%s1 + $0x90] sm:$0xff]
      %v292 = vld [vmem:[%s1 + $0x98] sm:$0xff]
      %v293 = vld [vmem:[%s1 + $0xa0] sm:$0xff]
      %v294 = vld [vmem:[%s1 + $0xa8] sm:$0xff]
      %v295 = vld [vmem:[%s1 + $0xb0] sm:$0xff]
      %v296 = vld [vmem:[%s1 + $0xb8] sm:$0xff]
      %v297 = vld [vmem:[%s1 + $0xc0] sm:$0xff]
      %v298 = vld [vmem:[%s1 + $0xc8] sm:$0xff]
      %v299 = vld [vmem:[%s1 + $0xd0] sm:$0xff]
      %v300 = vld [vmem:[%s1 + $0xd8] sm:$0xff]
      %v301 = vld [vmem:[%s1 + $0xe0] sm:$0xff]
      %v302 = vld [vmem:[%s1 + $0xe8] sm:$0xff]
      %v303 = vld [vmem:[%s1 + $0xf0] sm:$0xff]
      %v304 = vld [vmem:[%s1 + $0xf8] sm:$0xff]
      %v305 = vld [vmem:[%s1 + $0x100] sm:$0xff]
      %v306 = vld [vmem:[%s1 + $0x108] sm:$0xff]
      %v307 = vld [vmem:[%s1 + $0x110] sm:$0xff]
      %v308 = vld [vmem:[%s1 + $0x118] sm:$0xff]
      %v309 = vld [vmem:[%s1 + $0x120] sm:$0xff]
      %v310 = vld [vmem:[%s1 + $0x128] sm:$0xff]
      %v311 = vld [vmem:[%s1 + $0x130] sm:$0xff]
      %v312 = vld [vmem:[%s1 + $0x138] sm:$0xff]
      %v313 = vld [vmem:[%s1 + $0x140] sm:$0xff]
      %v314 = vld [vmem:[%s1 + $0x148] sm:$0xff]
      %v315 = vld [vmem:[%s1 + $0x150] sm:$0xff]
      %v316 = vld [vmem:[%s1 + $0x158] sm:$0xff]
      %v317 = vadd.f32 %v229, %v273
      %v318 = vadd.f32 %v230, %v274
      %v319 = vadd.f32 %v231, %v275
      %v320 = vadd.f32 %v232, %v276
      %v321 = vadd.f32 %v233, %v277
      %v322 = vadd.f32 %v234, %v278
      %v323 = vadd.f32 %v235, %v279
      %v324 = vadd.f32 %v236, %v280
      %v325 = vadd.f32 %v237, %v281
      %v326 = vadd.f32 %v238, %v282
      %v327 = vadd.f32 %v239, %v283
      %v328 = vadd.f32 %v240, %v284
      %v329 = vadd.f32 %v241, %v285
      %v330 = vadd.f32 %v242, %v286
      %v331 = vadd.f32 %v243, %v287
      %v332 = vadd.f32 %v244, %v288
      %v333 = vadd.f32 %v245, %v289
      %v334 = vadd.f32 %v246, %v290
      %v335 = vadd.f32 %v247, %v291
      %v336 = vadd.f32 %v248, %v292
      %v337 = vadd.f32 %v249, %v293
      %v338 = vadd.f32 %v250, %v294
      %v339 = vadd.f32 %v251, %v295
      %v340 = vadd.f32 %v252, %v296
      %v341 = vadd.f32 %v253, %v297
      %v342 = vadd.f32 %v254, %v298
      %v343 = vadd.f32 %v255, %v299
      %v344 = vadd.f32 %v256, %v300
      %v345 = vadd.f32 %v257, %v301
      %v346 = vadd.f32 %v258, %v302
      %v347 = vadd.f32 %v259, %v303
      %v348 = vadd.f32 %v260, %v304
      %v349 = vadd.f32 %v261, %v305
      %v350 = vadd.f32 %v262, %v306
      %v351 = vadd.f32 %v263, %v307
      %v352 = vadd.f32 %v264, %v308
      %v353 = vadd.f32 %v265, %v309
      %v354 = vadd.f32 %v266, %v310
      %v355 = vadd.f32 %v267, %v311
      %v356 = vadd.f32 %v268, %v312
      %v357 = vadd.f32 %v269, %v313
      %v358 = vadd.f32 %v270, %v314
      %v359 = vadd.f32 %v271, %v315
      %v360 = vadd.f32 %v272, %v316
      %v361 = vpack.c.bf16 %v319, %v317
      %v362 = vpack.c.bf16 %v320, %v318
      %v363 = vpack.c.bf16 %v323, %v321
      %v364 = vpack.c.bf16 %v324, %v322
      %v365 = vpack.c.bf16 %v327, %v325
      %v366 = vpack.c.bf16 %v328, %v326
      %v367 = vpack.c.bf16 %v331, %v329
      %v368 = vpack.c.bf16 %v332, %v330
      %v369 = vpack.c.bf16 %v335, %v333
      %v370 = vpack.c.bf16 %v336, %v334
      %v371 = vpack.c.bf16 %v339, %v337
      %v372 = vpack.c.bf16 %v340, %v338
      %v373 = vpack.c.bf16 %v343, %v341
      %v374 = vpack.c.bf16 %v344, %v342
      %v375 = vpack.c.bf16 %v347, %v345
      %v376 = vpack.c.bf16 %v348, %v346
      %v377 = vpack.c.bf16 %v351, %v349
      %v378 = vpack.c.bf16 %v352, %v350
      %v379 = vpack.c.bf16 %v355, %v353
      %v380 = vpack.c.bf16 %v356, %v354
      %v381 = vpack.c.bf16 %v359, %v357
      %v382 = vpack.c.bf16 %v360, %v358
      %v383 = vld [vmem:[%s213] sm:$0xff]
      %v384 = vld [vmem:[%s213 + $0x8] sm:$0xff]
      %v385 = vld [vmem:[%s213 + $0x10] sm:$0xff]
      %v386 = vld [vmem:[%s213 + $0x18] sm:$0xff]
      %v387 = vld [vmem:[%s213 + $0x20] sm:$0xff]
      %v388 = vld [vmem:[%s213 + $0x28] sm:$0xff]
      %v389 = vld [vmem:[%s213 + $0x30] sm:$0xff]
      %v390 = vld [vmem:[%s213 + $0x38] sm:$0xff]
      %v391 = vld [vmem:[%s213 + $0x40] sm:$0xff]
      %v392 = vld [vmem:[%s213 + $0x48] sm:$0xff]
      %v393 = vld [vmem:[%s213 + $0x50] sm:$0xff]
      %v394 = vld [vmem:[%s213 + $0x58] sm:$0xff]
      %v395 = vld [vmem:[%s213 + $0x60] sm:$0xff]
      %v396 = vld [vmem:[%s213 + $0x68] sm:$0xff]
      %v397 = vld [vmem:[%s213 + $0x70] sm:$0xff]
      %v398 = vld [vmem:[%s213 + $0x78] sm:$0xff]
      %v399 = vld [vmem:[%s213 + $0x80] sm:$0xff]
      %v400 = vld [vmem:[%s213 + $0x88] sm:$0xff]
      %v401 = vld [vmem:[%s213 + $0x90] sm:$0xff]
      %v402 = vld [vmem:[%s213 + $0x98] sm:$0xff]
      %v403 = vld [vmem:[%s213 + $0xa0] sm:$0xff]
      %v404 = vld [vmem:[%s213 + $0xa8] sm:$0xff]
      %v405 = vld [vmem:[%s213 + $0xb0] sm:$0xff]
      %v406 = vld [vmem:[%s213 + $0xb8] sm:$0xff]
      %v407 = vld [vmem:[%s213 + $0xc0] sm:$0xff]
      %v408 = vld [vmem:[%s213 + $0xc8] sm:$0xff]
      %v409 = vld [vmem:[%s213 + $0xd0] sm:$0xff]
      %v410 = vld [vmem:[%s213 + $0xd8] sm:$0xff]
      %v411 = vld [vmem:[%s213 + $0xe0] sm:$0xff]
      %v412 = vld [vmem:[%s213 + $0xe8] sm:$0xff]
      %v413 = vld [vmem:[%s213 + $0xf0] sm:$0xff]
      %v414 = vld [vmem:[%s213 + $0xf8] sm:$0xff]
      %v415 = vld [vmem:[%s213 + $0x100] sm:$0xff]
      %v416 = vld [vmem:[%s213 + $0x108] sm:$0xff]
      %v417 = vld [vmem:[%s213 + $0x110] sm:$0xff]
      %v418 = vld [vmem:[%s213 + $0x118] sm:$0xff]
      %v419 = vld [vmem:[%s213 + $0x120] sm:$0xff]
      %v420 = vld [vmem:[%s213 + $0x128] sm:$0xff]
      %v421 = vld [vmem:[%s213 + $0x130] sm:$0xff]
      %v422 = vld [vmem:[%s213 + $0x138] sm:$0xff]
      %v423 = vld [vmem:[%s213 + $0x140] sm:$0xff]
      %v424 = vld [vmem:[%s213 + $0x148] sm:$0xff]
      %v425 = vld [vmem:[%s213 + $0x150] sm:$0xff]
      %v426 = vld [vmem:[%s213 + $0x158] sm:$0xff]
      %v427 = vld [vmem:[%s213 + $0x160] sm:$0xff]
      %v428 = vld [vmem:[%s213 + $0x168] sm:$0xff]
      %v429 = vld [vmem:[%s213 + $0x170] sm:$0xff]
      %v430 = vld [vmem:[%s213 + $0x178] sm:$0xff]
      %v431 = vld [vmem:[%s213 + $0x180] sm:$0xff]
      %v432 = vld [vmem:[%s213 + $0x188] sm:$0xff]
      %v433 = vld [vmem:[%s213 + $0x190] sm:$0xff]
      %v434 = vld [vmem:[%s213 + $0x198] sm:$0xff]
      %v435 = vld [vmem:[%s213 + $0x1a0] sm:$0xff]
      %v436 = vld [vmem:[%s213 + $0x1a8] sm:$0xff]
      %v437 = vld [vmem:[%s213 + $0x1b0] sm:$0xff]
      %v438 = vld [vmem:[%s213 + $0x1b8] sm:$0xff]
      %v439 = vld [vmem:[%s213 + $0x1c0] sm:$0xff]
      %v440 = vld [vmem:[%s213 + $0x1c8] sm:$0xff]
      %v441 = vld [vmem:[%s213 + $0x1d0] sm:$0xff]
      %v442 = vld [vmem:[%s213 + $0x1d8] sm:$0xff]
      %v443 = vld [vmem:[%s213 + $0x1e0] sm:$0xff]
      %v444 = vld [vmem:[%s213 + $0x1e8] sm:$0xff]
      %v445 = vld [vmem:[%s213 + $0x1f0] sm:$0xff]
      %v446 = vld [vmem:[%s213 + $0x1f8] sm:$0xff]
      %v447 = vld [vmem:[%s213 + $0x200] sm:$0xff]
      %v448 = vld [vmem:[%s213 + $0x208] sm:$0xff]
      %v515 = vunpack.c.l.b16 %v383
      %v516 = vunpack.c.h.b16 %v383
      %v517 = vunpack.c.l.b16 %v384
      %v518 = vunpack.c.h.b16 %v384
      %v519 = vunpack.c.l.b16 %v385
      %v520 = vunpack.c.h.b16 %v385
      %v521 = vunpack.c.l.b16 %v386
      %v522 = vunpack.c.h.b16 %v386
      %v523 = vunpack.c.l.b16 %v387
      %v524 = vunpack.c.h.b16 %v387
      %v525 = vunpack.c.l.b16 %v388
      %v526 = vunpack.c.h.b16 %v388
      %v527 = vunpack.c.l.b16 %v389
      %v528 = vunpack.c.h.b16 %v389
      %v529 = vunpack.c.l.b16 %v390
      %v530 = vunpack.c.h.b16 %v390
      %v531 = vunpack.c.l.b16 %v391
      %v532 = vunpack.c.h.b16 %v391
      %v533 = vunpack.c.l.b16 %v392
      %v534 = vunpack.c.h.b16 %v392
      %v535 = vunpack.c.l.b16 %v393
      %v536 = vunpack.c.h.b16 %v393
      %v537 = vunpack.c.l.b16 %v394
      %v538 = vunpack.c.h.b16 %v394
      %v539 = vunpack.c.l.b16 %v395
      %v540 = vunpack.c.h.b16 %v395
      %v541 = vunpack.c.l.b16 %v396
      %v542 = vunpack.c.h.b16 %v396
      %v543 = vunpack.c.l.b16 %v397
      %v544 = vunpack.c.h.b16 %v397
      %v545 = vunpack.c.l.b16 %v398
      %v546 = vunpack.c.h.b16 %v398
      %v547 = vunpack.c.l.b16 %v399
      %v548 = vunpack.c.h.b16 %v399
      %v549 = vunpack.c.l.b16 %v400
      %v550 = vunpack.c.h.b16 %v400
      %v551 = vunpack.c.l.b16 %v401
      %v552 = vunpack.c.h.b16 %v401
      %v553 = vunpack.c.l.b16 %v402
      %v554 = vunpack.c.h.b16 %v402
      %v555 = vunpack.c.l.b16 %v403
      %v556 = vunpack.c.h.b16 %v403
      %v557 = vunpack.c.l.b16 %v404
      %v558 = vunpack.c.h.b16 %v404
      %v559 = vunpack.c.l.b16 %v405
      %v560 = vunpack.c.h.b16 %v405
      %v561 = vunpack.c.l.b16 %v406
      %v562 = vunpack.c.h.b16 %v406
      %v563 = vunpack.c.l.b16 %v407
      %v564 = vunpack.c.h.b16 %v407
      %v565 = vunpack.c.l.b16 %v408
      %v566 = vunpack.c.h.b16 %v408
      %v567 = vunpack.c.l.b16 %v409
      %v568 = vunpack.c.h.b16 %v409
      %v569 = vunpack.c.l.b16 %v410
      %v570 = vunpack.c.h.b16 %v410
      %v571 = vunpack.c.l.b16 %v411
      %v572 = vunpack.c.h.b16 %v411
      %v573 = vunpack.c.l.b16 %v412
      %v574 = vunpack.c.h.b16 %v412
      %v575 = vunpack.c.l.b16 %v413
      %v576 = vunpack.c.h.b16 %v413
      %v577 = vunpack.c.l.b16 %v414
      %v578 = vunpack.c.h.b16 %v414
      %v579 = vunpack.c.l.b16 %v415
      %v580 = vunpack.c.h.b16 %v415
      %v581 = vunpack.c.l.b16 %v416
      %v582 = vunpack.c.h.b16 %v416
      %v583 = vunpack.c.l.b16 %v417
      %v584 = vunpack.c.h.b16 %v417
      %v585 = vunpack.c.l.b16 %v418
      %v586 = vunpack.c.h.b16 %v418
      %v587 = vunpack.c.l.b16 %v419
      %v588 = vunpack.c.h.b16 %v419
      %v589 = vunpack.c.l.b16 %v420
      %v590 = vunpack.c.h.b16 %v420
      %v591 = vunpack.c.l.b16 %v421
      %v592 = vunpack.c.h.b16 %v421
      %v593 = vunpack.c.l.b16 %v422
      %v594 = vunpack.c.h.b16 %v422
      %v595 = vunpack.c.l.b16 %v423
      %v596 = vunpack.c.h.b16 %v423
      %v597 = vunpack.c.l.b16 %v424
      %v598 = vunpack.c.h.b16 %v424
      %v599 = vunpack.c.l.b16 %v425
      %v600 = vunpack.c.h.b16 %v425
      %v601 = vunpack.c.l.b16 %v426
      %v602 = vunpack.c.h.b16 %v426
      %v603 = vunpack.c.l.b16 %v427
      %v604 = vunpack.c.h.b16 %v427
      %v605 = vunpack.c.l.b16 %v428
      %v606 = vunpack.c.h.b16 %v428
      %v607 = vunpack.c.l.b16 %v429
      %v608 = vunpack.c.h.b16 %v429
      %v609 = vunpack.c.l.b16 %v430
      %v610 = vunpack.c.h.b16 %v430
      %v611 = vunpack.c.l.b16 %v431
      %v612 = vunpack.c.h.b16 %v431
      %v613 = vunpack.c.l.b16 %v432
      %v614 = vunpack.c.h.b16 %v432
      %v615 = vunpack.c.l.b16 %v433
      %v616 = vunpack.c.h.b16 %v433
      %v617 = vunpack.c.l.b16 %v434
      %v618 = vunpack.c.h.b16 %v434
      %v619 = vunpack.c.l.b16 %v435
      %v620 = vunpack.c.h.b16 %v435
      %v621 = vunpack.c.l.b16 %v436
      %v622 = vunpack.c.h.b16 %v436
      %v623 = vunpack.c.l.b16 %v437
      %v624 = vunpack.c.h.b16 %v437
      %v625 = vunpack.c.l.b16 %v438
      %v626 = vunpack.c.h.b16 %v438
      %v627 = vunpack.c.l.b16 %v439
      %v628 = vunpack.c.h.b16 %v439
      %v629 = vunpack.c.l.b16 %v440
      %v630 = vunpack.c.h.b16 %v440
      %v631 = vunpack.c.l.b16 %v441
      %v632 = vunpack.c.h.b16 %v441
      %v633 = vunpack.c.l.b16 %v442
      %v634 = vunpack.c.h.b16 %v442
      %v635 = vunpack.c.l.b16 %v443
      %v636 = vunpack.c.h.b16 %v443
      %v637 = vunpack.c.l.b16 %v444
      %v638 = vunpack.c.h.b16 %v444
      %v639 = vunpack.c.l.b16 %v445
      %v640 = vunpack.c.h.b16 %v445
      %v641 = vunpack.c.l.b16 %v446
      %v642 = vunpack.c.h.b16 %v446
      %v643 = vunpack.c.l.b16 %v447
      %v644 = vunpack.c.h.b16 %v447
      %v645 = vunpack.c.l.b16 %v448
      %v646 = vunpack.c.h.b16 %v448
      %v647 = vpack.c.b16 %v517, %v515
      %v648 = vpack.c.b16 %v518, %v516
      %v649 = vpack.c.b16 %v521, %v519
      %v650 = vpack.c.b16 %v522, %v520
      %v651 = vpack.c.b16 %v525, %v523
      %v652 = vpack.c.b16 %v526, %v524
      %v653 = vpack.c.b16 %v529, %v527
      %v654 = vpack.c.b16 %v530, %v528
      %v655 = vpack.c.b16 %v533, %v531
      %v656 = vpack.c.b16 %v534, %v532
      %v657 = vpack.c.b16 %v537, %v535
      %v658 = vpack.c.b16 %v538, %v536
      %v659 = vpack.c.b16 %v541, %v539
      %v660 = vpack.c.b16 %v542, %v540
      %v661 = vpack.c.b16 %v545, %v543
      %v662 = vpack.c.b16 %v546, %v544
      %v663 = vpack.c.b16 %v549, %v547
      %v664 = vpack.c.b16 %v550, %v548
      %v665 = vpack.c.b16 %v553, %v551
      %v666 = vpack.c.b16 %v554, %v552
      %v667 = vpack.c.b16 %v557, %v555
      %v668 = vpack.c.b16 %v558, %v556
      %v669 = vpack.c.b16 %v561, %v559
      %v670 = vpack.c.b16 %v562, %v560
      %v671 = vpack.c.b16 %v565, %v563
      %v672 = vpack.c.b16 %v566, %v564
      %v673 = vpack.c.b16 %v569, %v567
      %v674 = vpack.c.b16 %v570, %v568
      %v675 = vpack.c.b16 %v573, %v571
      %v676 = vpack.c.b16 %v574, %v572
      %v677 = vpack.c.b16 %v577, %v575
      %v678 = vpack.c.b16 %v578, %v576
      %v679 = vpack.c.b16 %v581, %v579
      %v680 = vpack.c.b16 %v582, %v580
      %v681 = vpack.c.b16 %v585, %v583
      %v682 = vpack.c.b16 %v586, %v584
      %v683 = vpack.c.b16 %v589, %v587
      %v684 = vpack.c.b16 %v590, %v588
      %v685 = vpack.c.b16 %v593, %v591
      %v686 = vpack.c.b16 %v594, %v592
      %v687 = vpack.c.b16 %v597, %v595
      %v688 = vpack.c.b16 %v598, %v596
      %v689 = vpack.c.b16 %v601, %v599
      %v690 = vpack.c.b16 %v602, %v600
      %v691 = vpack.c.b16 %v605, %v603
      %v692 = vpack.c.b16 %v606, %v604
      %v693 = vpack.c.b16 %v609, %v607
      %v694 = vpack.c.b16 %v610, %v608
      %v695 = vpack.c.b16 %v613, %v611
      %v696 = vpack.c.b16 %v614, %v612
      %v697 = vpack.c.b16 %v617, %v615
      %v698 = vpack.c.b16 %v618, %v616
      %v699 = vpack.c.b16 %v621, %v619
      %v700 = vpack.c.b16 %v622, %v620
      %v701 = vpack.c.b16 %v625, %v623
      %v702 = vpack.c.b16 %v626, %v624
      %v703 = vpack.c.b16 %v629, %v627
      %v704 = vpack.c.b16 %v630, %v628
      %v705 = vpack.c.b16 %v633, %v631
      %v706 = vpack.c.b16 %v634, %v632
      %v707 = vpack.c.b16 %v637, %v635
      %v708 = vpack.c.b16 %v638, %v636
      %v709 = vpack.c.b16 %v641, %v639
      %v710 = vpack.c.b16 %v642, %v640
      %v711 = vpack.c.b16 %v645, %v643
      %v712 = vpack.c.b16 %v646, %v644
      %vm746 = vcmask 392192
      %v748 = vsel %vm746, %v648, 0
      %v751 = vsel %vm746, %v650, 0
      %v754 = vsel %vm746, %v652, 0
      %v757 = vsel %vm746, %v654, 0
      %v760 = vsel %vm746, %v656, 0
      %v763 = vsel %vm746, %v658, 0
      %v766 = vsel %vm746, %v660, 0
      %v769 = vsel %vm746, %v662, 0
      %v772 = vsel %vm746, %v664, 0
      %v775 = vsel %vm746, %v666, 0
      %v778 = vsel %vm746, %v668, 0
      %v781 = vsel %vm746, %v670, 0
      %v784 = vsel %vm746, %v672, 0
      %v787 = vsel %vm746, %v674, 0
      %v790 = vsel %vm746, %v676, 0
      %v793 = vsel %vm746, %v678, 0
      %v796 = vsel %vm746, %v680, 0
      %v799 = vsel %vm746, %v682, 0
      %v802 = vsel %vm746, %v684, 0
      %v805 = vsel %vm746, %v686, 0
      %v808 = vsel %vm746, %v688, 0
      %v811 = vsel %vm746, %v690, 0
      %v814 = vsel %vm746, %v692, 0
      %v817 = vsel %vm746, %v694, 0
      %v820 = vsel %vm746, %v696, 0
      %v823 = vsel %vm746, %v698, 0
      %v826 = vsel %vm746, %v700, 0
      %v829 = vsel %vm746, %v702, 0
      %v832 = vsel %vm746, %v704, 0
      %v835 = vsel %vm746, %v706, 0
      %v838 = vsel %vm746, %v708, 0
      %v841 = vsel %vm746, %v710, 0
      %v844 = vsel %vm746, %v712, 0
      %846 = vmatpush.bf16.msra.mxu0 %v375
      %847 = vmatpush.bf16.msra.mxu0 %v373
      %848 = vmatpush.bf16.msra.mxu0 %v371
      %849 = vmatpush.bf16.msra.mxu0 %v369
      %850 = vmatpush.bf16.msra.mxu0 %v367
      %851 = vmatpush.bf16.msra.mxu0 %v365
      %852 = vmatpush.bf16.msra.mxu0 %v363
      %853 = vmatpush.bf16.msra.mxu0 %v361
      %854 = vmatmul.bf16.gmra.mxu0 %v647
      %v855 = vpop.f32.mrf.mxu0
      %v856 = vadd.f32 0.0, %v855
      %v857 = vpop.f32.mrf.mxu0
      %v858 = vadd.f32 0.0, %v857
      %859 = vmatmul.bf16.gmra.mxu0 %v649
      %v860 = vpop.f32.mrf.mxu0
      %v861 = vadd.f32 0.0, %v860
      %v862 = vpop.f32.mrf.mxu0
      %v863 = vadd.f32 0.0, %v862
      %864 = vmatmul.bf16.gmra.mxu0 %v651
      %v865 = vpop.f32.mrf.mxu0
      %v866 = vadd.f32 0.0, %v865
      %v867 = vpop.f32.mrf.mxu0
      %v868 = vadd.f32 0.0, %v867
      %869 = vmatmul.bf16.gmra.mxu0 %v653
      %v870 = vpop.f32.mrf.mxu0
      %v871 = vadd.f32 0.0, %v870
      %v872 = vpop.f32.mrf.mxu0
      %v873 = vadd.f32 0.0, %v872
      %874 = vmatmul.bf16.gmra.mxu0 %v655
      %v875 = vpop.f32.mrf.mxu0
      %v876 = vadd.f32 0.0, %v875
      %v877 = vpop.f32.mrf.mxu0
      %v878 = vadd.f32 0.0, %v877
      %879 = vmatmul.bf16.gmra.mxu0 %v657
      %v880 = vpop.f32.mrf.mxu0
      %v881 = vadd.f32 0.0, %v880
      %v882 = vpop.f32.mrf.mxu0
      %v883 = vadd.f32 0.0, %v882
      %884 = vmatmul.bf16.gmra.mxu0 %v659
      %v885 = vpop.f32.mrf.mxu0
      %v886 = vadd.f32 0.0, %v885
      %v887 = vpop.f32.mrf.mxu0
      %v888 = vadd.f32 0.0, %v887
      %889 = vmatmul.bf16.gmra.mxu0 %v661
      %v890 = vpop.f32.mrf.mxu0
      %v891 = vadd.f32 0.0, %v890
      %v892 = vpop.f32.mrf.mxu0
      %v893 = vadd.f32 0.0, %v892
      %894 = vmatmul.bf16.gmra.mxu0 %v663
      %v895 = vpop.f32.mrf.mxu0
      %v896 = vadd.f32 0.0, %v895
      %v897 = vpop.f32.mrf.mxu0
      %v898 = vadd.f32 0.0, %v897
      %899 = vmatmul.bf16.gmra.mxu0 %v665
      %v900 = vpop.f32.mrf.mxu0
      %v901 = vadd.f32 0.0, %v900
      %v902 = vpop.f32.mrf.mxu0
      %v903 = vadd.f32 0.0, %v902
      %904 = vmatmul.bf16.gmra.mxu0 %v667
      %v905 = vpop.f32.mrf.mxu0
      %v906 = vadd.f32 0.0, %v905
      %v907 = vpop.f32.mrf.mxu0
      %v908 = vadd.f32 0.0, %v907
      %909 = vmatmul.bf16.gmra.mxu0 %v669
      %v910 = vpop.f32.mrf.mxu0
      %v911 = vadd.f32 0.0, %v910
      %v912 = vpop.f32.mrf.mxu0
      %v913 = vadd.f32 0.0, %v912
      %914 = vmatmul.bf16.gmra.mxu0 %v671
      %v915 = vpop.f32.mrf.mxu0
      %v916 = vadd.f32 0.0, %v915
      %v917 = vpop.f32.mrf.mxu0
      %v918 = vadd.f32 0.0, %v917
      %919 = vmatmul.bf16.gmra.mxu0 %v673
      %v920 = vpop.f32.mrf.mxu0
      %v921 = vadd.f32 0.0, %v920
      %v922 = vpop.f32.mrf.mxu0
      %v923 = vadd.f32 0.0, %v922
      %924 = vmatmul.bf16.gmra.mxu0 %v675
      %v925 = vpop.f32.mrf.mxu0
      %v926 = vadd.f32 0.0, %v925
      %v927 = vpop.f32.mrf.mxu0
      %v928 = vadd.f32 0.0, %v927
      %929 = vmatmul.bf16.gmra.mxu0 %v677
      %v930 = vpop.f32.mrf.mxu0
      %v931 = vadd.f32 0.0, %v930
      %v932 = vpop.f32.mrf.mxu0
      %v933 = vadd.f32 0.0, %v932
      %934 = vmatmul.bf16.gmra.mxu0 %v679
      %v935 = vpop.f32.mrf.mxu0
      %v936 = vadd.f32 0.0, %v935
      %v937 = vpop.f32.mrf.mxu0
      %v938 = vadd.f32 0.0, %v937
      %939 = vmatmul.bf16.gmra.mxu0 %v681
      %v940 = vpop.f32.mrf.mxu0
      %v941 = vadd.f32 0.0, %v940
      %v942 = vpop.f32.mrf.mxu0
      %v943 = vadd.f32 0.0, %v942
      %944 = vmatmul.bf16.gmra.mxu0 %v683
      %v945 = vpop.f32.mrf.mxu0
      %v946 = vadd.f32 0.0, %v945
      %v947 = vpop.f32.mrf.mxu0
      %v948 = vadd.f32 0.0, %v947
      %949 = vmatmul.bf16.gmra.mxu0 %v685
      %v950 = vpop.f32.mrf.mxu0
      %v951 = vadd.f32 0.0, %v950
      %v952 = vpop.f32.mrf.mxu0
      %v953 = vadd.f32 0.0, %v952
      %954 = vmatmul.bf16.gmra.mxu0 %v687
      %v955 = vpop.f32.mrf.mxu0
      %v956 = vadd.f32 0.0, %v955
      %v957 = vpop.f32.mrf.mxu0
      %v958 = vadd.f32 0.0, %v957
      %959 = vmatmul.bf16.gmra.mxu0 %v689
      %v960 = vpop.f32.mrf.mxu0
      %v961 = vadd.f32 0.0, %v960
      %v962 = vpop.f32.mrf.mxu0
      %v963 = vadd.f32 0.0, %v962
      %964 = vmatmul.bf16.gmra.mxu0 %v691
      %v965 = vpop.f32.mrf.mxu0
      %v966 = vadd.f32 0.0, %v965
      %v967 = vpop.f32.mrf.mxu0
      %v968 = vadd.f32 0.0, %v967
      %969 = vmatmul.bf16.gmra.mxu0 %v693
      %v970 = vpop.f32.mrf.mxu0
      %v971 = vadd.f32 0.0, %v970
      %v972 = vpop.f32.mrf.mxu0
      %v973 = vadd.f32 0.0, %v972
      %974 = vmatmul.bf16.gmra.mxu0 %v695
      %v975 = vpop.f32.mrf.mxu0
      %v976 = vadd.f32 0.0, %v975
      %v977 = vpop.f32.mrf.mxu0
      %v978 = vadd.f32 0.0, %v977
      %979 = vmatmul.bf16.gmra.mxu0 %v697
      %v980 = vpop.f32.mrf.mxu0
      %v981 = vadd.f32 0.0, %v980
      %v982 = vpop.f32.mrf.mxu0
      %v983 = vadd.f32 0.0, %v982
      %984 = vmatmul.bf16.gmra.mxu0 %v699
      %v985 = vpop.f32.mrf.mxu0
      %v986 = vadd.f32 0.0, %v985
      %v987 = vpop.f32.mrf.mxu0
      %v988 = vadd.f32 0.0, %v987
      %989 = vmatmul.bf16.gmra.mxu0 %v701
      %v990 = vpop.f32.mrf.mxu0
      %v991 = vadd.f32 0.0, %v990
      %v992 = vpop.f32.mrf.mxu0
      %v993 = vadd.f32 0.0, %v992
      %994 = vmatmul.bf16.gmra.mxu0 %v703
      %v995 = vpop.f32.mrf.mxu0
      %v996 = vadd.f32 0.0, %v995
      %v997 = vpop.f32.mrf.mxu0
      %v998 = vadd.f32 0.0, %v997
      %999 = vmatmul.bf16.gmra.mxu0 %v705
      %v1000 = vpop.f32.mrf.mxu0
      %v1001 = vadd.f32 0.0, %v1000
      %v1002 = vpop.f32.mrf.mxu0
      %v1003 = vadd.f32 0.0, %v1002
      %1004 = vmatmul.bf16.gmra.mxu0 %v707
      %v1005 = vpop.f32.mrf.mxu0
      %v1006 = vadd.f32 0.0, %v1005
      %v1007 = vpop.f32.mrf.mxu0
      %v1008 = vadd.f32 0.0, %v1007
      %1009 = vmatmul.bf16.gmra.mxu0 %v709
      %v1010 = vpop.f32.mrf.mxu0
      %v1011 = vadd.f32 0.0, %v1010
      %v1012 = vpop.f32.mrf.mxu0
      %v1013 = vadd.f32 0.0, %v1012
      %1014 = vmatmul.bf16.gmra.mxu0 %v711
      %v1015 = vpop.f32.mrf.mxu0
      %v1016 = vadd.f32 0.0, %v1015
      %v1017 = vpop.f32.mrf.mxu0
      %v1018 = vadd.f32 0.0, %v1017
      %1019 = vdwg.mxu0
      %1020 = vmatpush.bf16.msra.mxu0 0
      %1021 = vmatpush.bf16.msra.mxu0 0
      %1022 = vmatpush.bf16.msra.mxu0 0
      %1023 = vmatpush.bf16.msra.mxu0 0
      %1024 = vmatpush.bf16.msra.mxu0 0
      %1025 = vmatpush.bf16.msra.mxu0 %v381
      %1026 = vmatpush.bf16.msra.mxu0 %v379
      %1027 = vmatpush.bf16.msra.mxu0 %v377
      %1028 = vmatmul.bf16.gmra.mxu0 %v748
      %v1029 = vpop.f32.mrf.mxu0
      %v1030 = vadd.f32 %v856, %v1029
      %v1031 = vpop.f32.mrf.mxu0
      %v1032 = vadd.f32 %v858, %v1031
      %1033 = vmatmul.bf16.gmra.mxu0 %v751
      %v1034 = vpop.f32.mrf.mxu0
      %v1035 = vadd.f32 %v861, %v1034
      %v1036 = vpop.f32.mrf.mxu0
      %v1037 = vadd.f32 %v863, %v1036
      %1038 = vmatmul.bf16.gmra.mxu0 %v754
      %v1039 = vpop.f32.mrf.mxu0
      %v1040 = vadd.f32 %v866, %v1039
      %v1041 = vpop.f32.mrf.mxu0
      %v1042 = vadd.f32 %v868, %v1041
      %1043 = vmatmul.bf16.gmra.mxu0 %v757
      %v1044 = vpop.f32.mrf.mxu0
      %v1045 = vadd.f32 %v871, %v1044
      %v1046 = vpop.f32.mrf.mxu0
      %v1047 = vadd.f32 %v873, %v1046
      %1048 = vmatmul.bf16.gmra.mxu0 %v760
      %v1049 = vpop.f32.mrf.mxu0
      %v1050 = vadd.f32 %v876, %v1049
      %v1051 = vpop.f32.mrf.mxu0
      %v1052 = vadd.f32 %v878, %v1051
      %1053 = vmatmul.bf16.gmra.mxu0 %v763
      %v1054 = vpop.f32.mrf.mxu0
      %v1055 = vadd.f32 %v881, %v1054
      %v1056 = vpop.f32.mrf.mxu0
      %v1057 = vadd.f32 %v883, %v1056
      %1058 = vmatmul.bf16.gmra.mxu0 %v766
      %v1059 = vpop.f32.mrf.mxu0
      %v1060 = vadd.f32 %v886, %v1059
      %v1061 = vpop.f32.mrf.mxu0
      %v1062 = vadd.f32 %v888, %v1061
      %1063 = vmatmul.bf16.gmra.mxu0 %v769
      %v1064 = vpop.f32.mrf.mxu0
      %v1065 = vadd.f32 %v891, %v1064
      %v1066 = vpop.f32.mrf.mxu0
      %v1067 = vadd.f32 %v893, %v1066
      %1068 = vmatmul.bf16.gmra.mxu0 %v772
      %v1069 = vpop.f32.mrf.mxu0
      %v1070 = vadd.f32 %v896, %v1069
      %v1071 = vpop.f32.mrf.mxu0
      %v1072 = vadd.f32 %v898, %v1071
      %1073 = vmatmul.bf16.gmra.mxu0 %v775
      %v1074 = vpop.f32.mrf.mxu0
      %v1075 = vadd.f32 %v901, %v1074
      %v1076 = vpop.f32.mrf.mxu0
      %v1077 = vadd.f32 %v903, %v1076
      %1078 = vmatmul.bf16.gmra.mxu0 %v778
      %v1079 = vpop.f32.mrf.mxu0
      %v1080 = vadd.f32 %v906, %v1079
      %v1081 = vpop.f32.mrf.mxu0
      %v1082 = vadd.f32 %v908, %v1081
      %1083 = vmatmul.bf16.gmra.mxu0 %v781
      %v1084 = vpop.f32.mrf.mxu0
      %v1085 = vadd.f32 %v911, %v1084
      %v1086 = vpop.f32.mrf.mxu0
      %v1087 = vadd.f32 %v913, %v1086
      %1088 = vmatmul.bf16.gmra.mxu0 %v784
      %v1089 = vpop.f32.mrf.mxu0
      %v1090 = vadd.f32 %v916, %v1089
      %v1091 = vpop.f32.mrf.mxu0
      %v1092 = vadd.f32 %v918, %v1091
      %1093 = vmatmul.bf16.gmra.mxu0 %v787
      %v1094 = vpop.f32.mrf.mxu0
      %v1095 = vadd.f32 %v921, %v1094
      %v1096 = vpop.f32.mrf.mxu0
      %v1097 = vadd.f32 %v923, %v1096
      %1098 = vmatmul.bf16.gmra.mxu0 %v790
      %v1099 = vpop.f32.mrf.mxu0
      %v1100 = vadd.f32 %v926, %v1099
      %v1101 = vpop.f32.mrf.mxu0
      %v1102 = vadd.f32 %v928, %v1101
      %1103 = vmatmul.bf16.gmra.mxu0 %v793
      %v1104 = vpop.f32.mrf.mxu0
      %v1105 = vadd.f32 %v931, %v1104
      %v1106 = vpop.f32.mrf.mxu0
      %v1107 = vadd.f32 %v933, %v1106
      %1108 = vmatmul.bf16.gmra.mxu0 %v796
      %v1109 = vpop.f32.mrf.mxu0
      %v1110 = vadd.f32 %v936, %v1109
      %v1111 = vpop.f32.mrf.mxu0
      %v1112 = vadd.f32 %v938, %v1111
      %1113 = vmatmul.bf16.gmra.mxu0 %v799
      %v1114 = vpop.f32.mrf.mxu0
      %v1115 = vadd.f32 %v941, %v1114
      %v1116 = vpop.f32.mrf.mxu0
      %v1117 = vadd.f32 %v943, %v1116
      %1118 = vmatmul.bf16.gmra.mxu0 %v802
      %v1119 = vpop.f32.mrf.mxu0
      %v1120 = vadd.f32 %v946, %v1119
      %v1121 = vpop.f32.mrf.mxu0
      %v1122 = vadd.f32 %v948, %v1121
      %1123 = vmatmul.bf16.gmra.mxu0 %v805
      %v1124 = vpop.f32.mrf.mxu0
      %v1125 = vadd.f32 %v951, %v1124
      %v1126 = vpop.f32.mrf.mxu0
      %v1127 = vadd.f32 %v953, %v1126
      %1128 = vmatmul.bf16.gmra.mxu0 %v808
      %v1129 = vpop.f32.mrf.mxu0
      %v1130 = vadd.f32 %v956, %v1129
      %v1131 = vpop.f32.mrf.mxu0
      %v1132 = vadd.f32 %v958, %v1131
      %1133 = vmatmul.bf16.gmra.mxu0 %v811
      %v1134 = vpop.f32.mrf.mxu0
      %v1135 = vadd.f32 %v961, %v1134
      %v1136 = vpop.f32.mrf.mxu0
      %v1137 = vadd.f32 %v963, %v1136
      %1138 = vmatmul.bf16.gmra.mxu0 %v814
      %v1139 = vpop.f32.mrf.mxu0
      %v1140 = vadd.f32 %v966, %v1139
      %v1141 = vpop.f32.mrf.mxu0
      %v1142 = vadd.f32 %v968, %v1141
      %1143 = vmatmul.bf16.gmra.mxu0 %v817
      %v1144 = vpop.f32.mrf.mxu0
      %v1145 = vadd.f32 %v971, %v1144
      %v1146 = vpop.f32.mrf.mxu0
      %v1147 = vadd.f32 %v973, %v1146
      %1148 = vmatmul.bf16.gmra.mxu0 %v820
      %v1149 = vpop.f32.mrf.mxu0
      %v1150 = vadd.f32 %v976, %v1149
      %v1151 = vpop.f32.mrf.mxu0
      %v1152 = vadd.f32 %v978, %v1151
      %1153 = vmatmul.bf16.gmra.mxu0 %v823
      %v1154 = vpop.f32.mrf.mxu0
      %v1155 = vadd.f32 %v981, %v1154
      %v1156 = vpop.f32.mrf.mxu0
      %v1157 = vadd.f32 %v983, %v1156
      %1158 = vmatmul.bf16.gmra.mxu0 %v826
      %v1159 = vpop.f32.mrf.mxu0
      %v1160 = vadd.f32 %v986, %v1159
      %v1161 = vpop.f32.mrf.mxu0
      %v1162 = vadd.f32 %v988, %v1161
      %1163 = vmatmul.bf16.gmra.mxu0 %v829
      %v1164 = vpop.f32.mrf.mxu0
      %v1165 = vadd.f32 %v991, %v1164
      %v1166 = vpop.f32.mrf.mxu0
      %v1167 = vadd.f32 %v993, %v1166
      %1168 = vmatmul.bf16.gmra.mxu0 %v832
      %v1169 = vpop.f32.mrf.mxu0
      %v1170 = vadd.f32 %v996, %v1169
      %v1171 = vpop.f32.mrf.mxu0
      %v1172 = vadd.f32 %v998, %v1171
      %1173 = vmatmul.bf16.gmra.mxu0 %v835
      %v1174 = vpop.f32.mrf.mxu0
      %v1175 = vadd.f32 %v1001, %v1174
      %v1176 = vpop.f32.mrf.mxu0
      %v1177 = vadd.f32 %v1003, %v1176
      %1178 = vmatmul.bf16.gmra.mxu0 %v838
      %v1179 = vpop.f32.mrf.mxu0
      %v1180 = vadd.f32 %v1006, %v1179
      %v1181 = vpop.f32.mrf.mxu0
      %v1182 = vadd.f32 %v1008, %v1181
      %1183 = vmatmul.bf16.gmra.mxu0 %v841
      %v1184 = vpop.f32.mrf.mxu0
      %v1185 = vadd.f32 %v1011, %v1184
      %v1186 = vpop.f32.mrf.mxu0
      %v1187 = vadd.f32 %v1013, %v1186
      %1188 = vmatmul.bf16.gmra.mxu0 %v844
      %v1189 = vpop.f32.mrf.mxu0
      %v1190 = vadd.f32 %v1016, %v1189
      %v1191 = vpop.f32.mrf.mxu0
      %v1192 = vadd.f32 %v1018, %v1191
      %1193 = vdwg.mxu0
      %1194 = vmatpush.bf16.msra.mxu0 %v376
      %1195 = vmatpush.bf16.msra.mxu0 %v374
      %1196 = vmatpush.bf16.msra.mxu0 %v372
      %1197 = vmatpush.bf16.msra.mxu0 %v370
      %1198 = vmatpush.bf16.msra.mxu0 %v368
      %1199 = vmatpush.bf16.msra.mxu0 %v366
      %1200 = vmatpush.bf16.msra.mxu0 %v364
      %1201 = vmatpush.bf16.msra.mxu0 %v362
      %1202 = vmatmul.bf16.gmra.mxu0 %v647
      %v1203 = vpop.f32.mrf.mxu0
      %v1204 = vadd.f32 0.0, %v1203
      %v1205 = vpop.f32.mrf.mxu0
      %v1206 = vadd.f32 0.0, %v1205
      %1207 = vmatmul.bf16.gmra.mxu0 %v649
      %v1208 = vpop.f32.mrf.mxu0
      %v1209 = vadd.f32 0.0, %v1208
      %v1210 = vpop.f32.mrf.mxu0
      %v1211 = vadd.f32 0.0, %v1210
      %1212 = vmatmul.bf16.gmra.mxu0 %v651
      %v1213 = vpop.f32.mrf.mxu0
      %v1214 = vadd.f32 0.0, %v1213
      %v1215 = vpop.f32.mrf.mxu0
      %v1216 = vadd.f32 0.0, %v1215
      %1217 = vmatmul.bf16.gmra.mxu0 %v653
      %v1218 = vpop.f32.mrf.mxu0
      %v1219 = vadd.f32 0.0, %v1218
      %v1220 = vpop.f32.mrf.mxu0
      %v1221 = vadd.f32 0.0, %v1220
      %1222 = vmatmul.bf16.gmra.mxu0 %v655
      %v1223 = vpop.f32.mrf.mxu0
      %v1224 = vadd.f32 0.0, %v1223
      %v1225 = vpop.f32.mrf.mxu0
      %v1226 = vadd.f32 0.0, %v1225
      %1227 = vmatmul.bf16.gmra.mxu0 %v657
      %v1228 = vpop.f32.mrf.mxu0
      %v1229 = vadd.f32 0.0, %v1228
      %v1230 = vpop.f32.mrf.mxu0
      %v1231 = vadd.f32 0.0, %v1230
      %1232 = vmatmul.bf16.gmra.mxu0 %v659
      %v1233 = vpop.f32.mrf.mxu0
      %v1234 = vadd.f32 0.0, %v1233
      %v1235 = vpop.f32.mrf.mxu0
      %v1236 = vadd.f32 0.0, %v1235
      %1237 = vmatmul.bf16.gmra.mxu0 %v661
      %v1238 = vpop.f32.mrf.mxu0
      %v1239 = vadd.f32 0.0, %v1238
      %v1240 = vpop.f32.mrf.mxu0
      %v1241 = vadd.f32 0.0, %v1240
      %1242 = vmatmul.bf16.gmra.mxu0 %v663
      %v1243 = vpop.f32.mrf.mxu0
      %v1244 = vadd.f32 0.0, %v1243
      %v1245 = vpop.f32.mrf.mxu0
      %v1246 = vadd.f32 0.0, %v1245
      %1247 = vmatmul.bf16.gmra.mxu0 %v665
      %v1248 = vpop.f32.mrf.mxu0
      %v1249 = vadd.f32 0.0, %v1248
      %v1250 = vpop.f32.mrf.mxu0
      %v1251 = vadd.f32 0.0, %v1250
      %1252 = vmatmul.bf16.gmra.mxu0 %v667
      %v1253 = vpop.f32.mrf.mxu0
      %v1254 = vadd.f32 0.0, %v1253
      %v1255 = vpop.f32.mrf.mxu0
      %v1256 = vadd.f32 0.0, %v1255
      %1257 = vmatmul.bf16.gmra.mxu0 %v669
      %v1258 = vpop.f32.mrf.mxu0
      %v1259 = vadd.f32 0.0, %v1258
      %v1260 = vpop.f32.mrf.mxu0
      %v1261 = vadd.f32 0.0, %v1260
      %1262 = vmatmul.bf16.gmra.mxu0 %v671
      %v1263 = vpop.f32.mrf.mxu0
      %v1264 = vadd.f32 0.0, %v1263
      %v1265 = vpop.f32.mrf.mxu0
      %v1266 = vadd.f32 0.0, %v1265
      %1267 = vmatmul.bf16.gmra.mxu0 %v673
      %v1268 = vpop.f32.mrf.mxu0
      %v1269 = vadd.f32 0.0, %v1268
      %v1270 = vpop.f32.mrf.mxu0
      %v1271 = vadd.f32 0.0, %v1270
      %1272 = vmatmul.bf16.gmra.mxu0 %v675
      %v1273 = vpop.f32.mrf.mxu0
      %v1274 = vadd.f32 0.0, %v1273
      %v1275 = vpop.f32.mrf.mxu0
      %v1276 = vadd.f32 0.0, %v1275
      %1277 = vmatmul.bf16.gmra.mxu0 %v677
      %v1278 = vpop.f32.mrf.mxu0
      %v1279 = vadd.f32 0.0, %v1278
      %v1280 = vpop.f32.mrf.mxu0
      %v1281 = vadd.f32 0.0, %v1280
      %1282 = vmatmul.bf16.gmra.mxu0 %v679
      %v1283 = vpop.f32.mrf.mxu0
      %v1284 = vadd.f32 0.0, %v1283
      %v1285 = vpop.f32.mrf.mxu0
      %v1286 = vadd.f32 0.0, %v1285
      %1287 = vmatmul.bf16.gmra.mxu0 %v681
      %v1288 = vpop.f32.mrf.mxu0
      %v1289 = vadd.f32 0.0, %v1288
      %v1290 = vpop.f32.mrf.mxu0
      %v1291 = vadd.f32 0.0, %v1290
      %1292 = vmatmul.bf16.gmra.mxu0 %v683
      %v1293 = vpop.f32.mrf.mxu0
      %v1294 = vadd.f32 0.0, %v1293
      %v1295 = vpop.f32.mrf.mxu0
      %v1296 = vadd.f32 0.0, %v1295
      %1297 = vmatmul.bf16.gmra.mxu0 %v685
      %v1298 = vpop.f32.mrf.mxu0
      %v1299 = vadd.f32 0.0, %v1298
      %v1300 = vpop.f32.mrf.mxu0
      %v1301 = vadd.f32 0.0, %v1300
      %1302 = vmatmul.bf16.gmra.mxu0 %v687
      %v1303 = vpop.f32.mrf.mxu0
      %v1304 = vadd.f32 0.0, %v1303
      %v1305 = vpop.f32.mrf.mxu0
      %v1306 = vadd.f32 0.0, %v1305
      %1307 = vmatmul.bf16.gmra.mxu0 %v689
      %v1308 = vpop.f32.mrf.mxu0
      %v1309 = vadd.f32 0.0, %v1308
      %v1310 = vpop.f32.mrf.mxu0
      %v1311 = vadd.f32 0.0, %v1310
      %1312 = vmatmul.bf16.gmra.mxu0 %v691
      %v1313 = vpop.f32.mrf.mxu0
      %v1314 = vadd.f32 0.0, %v1313
      %v1315 = vpop.f32.mrf.mxu0
      %v1316 = vadd.f32 0.0, %v1315
      %1317 = vmatmul.bf16.gmra.mxu0 %v693
      %v1318 = vpop.f32.mrf.mxu0
      %v1319 = vadd.f32 0.0, %v1318
      %v1320 = vpop.f32.mrf.mxu0
      %v1321 = vadd.f32 0.0, %v1320
      %1322 = vmatmul.bf16.gmra.mxu0 %v695
      %v1323 = vpop.f32.mrf.mxu0
      %v1324 = vadd.f32 0.0, %v1323
      %v1325 = vpop.f32.mrf.mxu0
      %v1326 = vadd.f32 0.0, %v1325
      %1327 = vmatmul.bf16.gmra.mxu0 %v697
      %v1328 = vpop.f32.mrf.mxu0
      %v1329 = vadd.f32 0.0, %v1328
      %v1330 = vpop.f32.mrf.mxu0
      %v1331 = vadd.f32 0.0, %v1330
      %1332 = vmatmul.bf16.gmra.mxu0 %v699
      %v1333 = vpop.f32.mrf.mxu0
      %v1334 = vadd.f32 0.0, %v1333
      %v1335 = vpop.f32.mrf.mxu0
      %v1336 = vadd.f32 0.0, %v1335
      %1337 = vmatmul.bf16.gmra.mxu0 %v701
      %v1338 = vpop.f32.mrf.mxu0
      %v1339 = vadd.f32 0.0, %v1338
      %v1340 = vpop.f32.mrf.mxu0
      %v1341 = vadd.f32 0.0, %v1340
      %1342 = vmatmul.bf16.gmra.mxu0 %v703
      %v1343 = vpop.f32.mrf.mxu0
      %v1344 = vadd.f32 0.0, %v1343
      %v1345 = vpop.f32.mrf.mxu0
      %v1346 = vadd.f32 0.0, %v1345
      %1347 = vmatmul.bf16.gmra.mxu0 %v705
      %v1348 = vpop.f32.mrf.mxu0
      %v1349 = vadd.f32 0.0, %v1348
      %v1350 = vpop.f32.mrf.mxu0
      %v1351 = vadd.f32 0.0, %v1350
      %1352 = vmatmul.bf16.gmra.mxu0 %v707
      %v1353 = vpop.f32.mrf.mxu0
      %v1354 = vadd.f32 0.0, %v1353
      %v1355 = vpop.f32.mrf.mxu0
      %v1356 = vadd.f32 0.0, %v1355
      %1357 = vmatmul.bf16.gmra.mxu0 %v709
      %v1358 = vpop.f32.mrf.mxu0
      %v1359 = vadd.f32 0.0, %v1358
      %v1360 = vpop.f32.mrf.mxu0
      %v1361 = vadd.f32 0.0, %v1360
      %1362 = vmatmul.bf16.gmra.mxu0 %v711
      %v1363 = vpop.f32.mrf.mxu0
      %v1364 = vadd.f32 0.0, %v1363
      %v1365 = vpop.f32.mrf.mxu0
      %v1366 = vadd.f32 0.0, %v1365
      %1367 = vdwg.mxu0
      %1368 = vmatpush.bf16.msra.mxu0 0
      %1369 = vmatpush.bf16.msra.mxu0 0
      %1370 = vmatpush.bf16.msra.mxu0 0
      %1371 = vmatpush.bf16.msra.mxu0 0
      %1372 = vmatpush.bf16.msra.mxu0 0
      %1373 = vmatpush.bf16.msra.mxu0 %v382
      %1374 = vmatpush.bf16.msra.mxu0 %v380
      %1375 = vmatpush.bf16.msra.mxu0 %v378
      %1376 = vmatmul.bf16.gmra.mxu0 %v748
      %v1377 = vpop.f32.mrf.mxu0
      %v1378 = vadd.f32 %v1204, %v1377
      %v1379 = vpop.f32.mrf.mxu0
      %v1380 = vadd.f32 %v1206, %v1379
      %1381 = vmatmul.bf16.gmra.mxu0 %v751
      %v1382 = vpop.f32.mrf.mxu0
      %v1383 = vadd.f32 %v1209, %v1382
      %v1384 = vpop.f32.mrf.mxu0
      %v1385 = vadd.f32 %v1211, %v1384
      %1386 = vmatmul.bf16.gmra.mxu0 %v754
      %v1387 = vpop.f32.mrf.mxu0
      %v1388 = vadd.f32 %v1214, %v1387
      %v1389 = vpop.f32.mrf.mxu0
      %v1390 = vadd.f32 %v1216, %v1389
      %1391 = vmatmul.bf16.gmra.mxu0 %v757
      %v1392 = vpop.f32.mrf.mxu0
      %v1393 = vadd.f32 %v1219, %v1392
      %v1394 = vpop.f32.mrf.mxu0
      %v1395 = vadd.f32 %v1221, %v1394
      %1396 = vmatmul.bf16.gmra.mxu0 %v760
      %v1397 = vpop.f32.mrf.mxu0
      %v1398 = vadd.f32 %v1224, %v1397
      %v1399 = vpop.f32.mrf.mxu0
      %v1400 = vadd.f32 %v1226, %v1399
      %1401 = vmatmul.bf16.gmra.mxu0 %v763
      %v1402 = vpop.f32.mrf.mxu0
      %v1403 = vadd.f32 %v1229, %v1402
      %v1404 = vpop.f32.mrf.mxu0
      %v1405 = vadd.f32 %v1231, %v1404
      %1406 = vmatmul.bf16.gmra.mxu0 %v766
      %v1407 = vpop.f32.mrf.mxu0
      %v1408 = vadd.f32 %v1234, %v1407
      %v1409 = vpop.f32.mrf.mxu0
      %v1410 = vadd.f32 %v1236, %v1409
      %1411 = vmatmul.bf16.gmra.mxu0 %v769
      %v1412 = vpop.f32.mrf.mxu0
      %v1413 = vadd.f32 %v1239, %v1412
      %v1414 = vpop.f32.mrf.mxu0
      %v1415 = vadd.f32 %v1241, %v1414
      %1416 = vmatmul.bf16.gmra.mxu0 %v772
      %v1417 = vpop.f32.mrf.mxu0
      %v1418 = vadd.f32 %v1244, %v1417
      %v1419 = vpop.f32.mrf.mxu0
      %v1420 = vadd.f32 %v1246, %v1419
      %1421 = vmatmul.bf16.gmra.mxu0 %v775
      %v1422 = vpop.f32.mrf.mxu0
      %v1423 = vadd.f32 %v1249, %v1422
      %v1424 = vpop.f32.mrf.mxu0
      %v1425 = vadd.f32 %v1251, %v1424
      %1426 = vmatmul.bf16.gmra.mxu0 %v778
      %v1427 = vpop.f32.mrf.mxu0
      %v1428 = vadd.f32 %v1254, %v1427
      %v1429 = vpop.f32.mrf.mxu0
      %v1430 = vadd.f32 %v1256, %v1429
      %1431 = vmatmul.bf16.gmra.mxu0 %v781
      %v1432 = vpop.f32.mrf.mxu0
      %v1433 = vadd.f32 %v1259, %v1432
      %v1434 = vpop.f32.mrf.mxu0
      %v1435 = vadd.f32 %v1261, %v1434
      %1436 = vmatmul.bf16.gmra.mxu0 %v784
      %v1437 = vpop.f32.mrf.mxu0
      %v1438 = vadd.f32 %v1264, %v1437
      %v1439 = vpop.f32.mrf.mxu0
      %v1440 = vadd.f32 %v1266, %v1439
      %1441 = vmatmul.bf16.gmra.mxu0 %v787
      %v1442 = vpop.f32.mrf.mxu0
      %v1443 = vadd.f32 %v1269, %v1442
      %v1444 = vpop.f32.mrf.mxu0
      %v1445 = vadd.f32 %v1271, %v1444
      %1446 = vmatmul.bf16.gmra.mxu0 %v790
      %v1447 = vpop.f32.mrf.mxu0
      %v1448 = vadd.f32 %v1274, %v1447
      %v1449 = vpop.f32.mrf.mxu0
      %v1450 = vadd.f32 %v1276, %v1449
      %1451 = vmatmul.bf16.gmra.mxu0 %v793
      %v1452 = vpop.f32.mrf.mxu0
      %v1453 = vadd.f32 %v1279, %v1452
      %v1454 = vpop.f32.mrf.mxu0
      %v1455 = vadd.f32 %v1281, %v1454
      %1456 = vmatmul.bf16.gmra.mxu0 %v796
      %v1457 = vpop.f32.mrf.mxu0
      %v1458 = vadd.f32 %v1284, %v1457
      %v1459 = vpop.f32.mrf.mxu0
      %v1460 = vadd.f32 %v1286, %v1459
      %1461 = vmatmul.bf16.gmra.mxu0 %v799
      %v1462 = vpop.f32.mrf.mxu0
      %v1463 = vadd.f32 %v1289, %v1462
      %v1464 = vpop.f32.mrf.mxu0
      %v1465 = vadd.f32 %v1291, %v1464
      %1466 = vmatmul.bf16.gmra.mxu0 %v802
      %v1467 = vpop.f32.mrf.mxu0
      %v1468 = vadd.f32 %v1294, %v1467
      %v1469 = vpop.f32.mrf.mxu0
      %v1470 = vadd.f32 %v1296, %v1469
      %1471 = vmatmul.bf16.gmra.mxu0 %v805
      %v1472 = vpop.f32.mrf.mxu0
      %v1473 = vadd.f32 %v1299, %v1472
      %v1474 = vpop.f32.mrf.mxu0
      %v1475 = vadd.f32 %v1301, %v1474
      %1476 = vmatmul.bf16.gmra.mxu0 %v808
      %v1477 = vpop.f32.mrf.mxu0
      %v1478 = vadd.f32 %v1304, %v1477
      %v1479 = vpop.f32.mrf.mxu0
      %v1480 = vadd.f32 %v1306, %v1479
      %1481 = vmatmul.bf16.gmra.mxu0 %v811
      %v1482 = vpop.f32.mrf.mxu0
      %v1483 = vadd.f32 %v1309, %v1482
      %v1484 = vpop.f32.mrf.mxu0
      %v1485 = vadd.f32 %v1311, %v1484
      %1486 = vmatmul.bf16.gmra.mxu0 %v814
      %v1487 = vpop.f32.mrf.mxu0
      %v1488 = vadd.f32 %v1314, %v1487
      %v1489 = vpop.f32.mrf.mxu0
      %v1490 = vadd.f32 %v1316, %v1489
      %1491 = vmatmul.bf16.gmra.mxu0 %v817
      %v1492 = vpop.f32.mrf.mxu0
      %v1493 = vadd.f32 %v1319, %v1492
      %v1494 = vpop.f32.mrf.mxu0
      %v1495 = vadd.f32 %v1321, %v1494
      %1496 = vmatmul.bf16.gmra.mxu0 %v820
      %v1497 = vpop.f32.mrf.mxu0
      %v1498 = vadd.f32 %v1324, %v1497
      %v1499 = vpop.f32.mrf.mxu0
      %v1500 = vadd.f32 %v1326, %v1499
      %1501 = vmatmul.bf16.gmra.mxu0 %v823
      %v1502 = vpop.f32.mrf.mxu0
      %v1503 = vadd.f32 %v1329, %v1502
      %v1504 = vpop.f32.mrf.mxu0
      %v1505 = vadd.f32 %v1331, %v1504
      %1506 = vmatmul.bf16.gmra.mxu0 %v826
      %v1507 = vpop.f32.mrf.mxu0
      %v1508 = vadd.f32 %v1334, %v1507
      %v1509 = vpop.f32.mrf.mxu0
      %v1510 = vadd.f32 %v1336, %v1509
      %1511 = vmatmul.bf16.gmra.mxu0 %v829
      %v1512 = vpop.f32.mrf.mxu0
      %v1513 = vadd.f32 %v1339, %v1512
      %v1514 = vpop.f32.mrf.mxu0
      %v1515 = vadd.f32 %v1341, %v1514
      %1516 = vmatmul.bf16.gmra.mxu0 %v832
      %v1517 = vpop.f32.mrf.mxu0
      %v1518 = vadd.f32 %v1344, %v1517
      %v1519 = vpop.f32.mrf.mxu0
      %v1520 = vadd.f32 %v1346, %v1519
      %1521 = vmatmul.bf16.gmra.mxu0 %v835
      %v1522 = vpop.f32.mrf.mxu0
      %v1523 = vadd.f32 %v1349, %v1522
      %v1524 = vpop.f32.mrf.mxu0
      %v1525 = vadd.f32 %v1351, %v1524
      %1526 = vmatmul.bf16.gmra.mxu0 %v838
      %v1527 = vpop.f32.mrf.mxu0
      %v1528 = vadd.f32 %v1354, %v1527
      %v1529 = vpop.f32.mrf.mxu0
      %v1530 = vadd.f32 %v1356, %v1529
      %1531 = vmatmul.bf16.gmra.mxu0 %v841
      %v1532 = vpop.f32.mrf.mxu0
      %v1533 = vadd.f32 %v1359, %v1532
      %v1534 = vpop.f32.mrf.mxu0
      %v1535 = vadd.f32 %v1361, %v1534
      %1536 = vmatmul.bf16.gmra.mxu0 %v844
      %v1537 = vpop.f32.mrf.mxu0
      %v1538 = vadd.f32 %v1364, %v1537
      %v1539 = vpop.f32.mrf.mxu0
      %v1540 = vadd.f32 %v1366, %v1539
      %1541 = vdwg.mxu0
      %vm1542 = vcmask 556032
      %v1543 = vsel %vm1542, %v1378, 0.0
      %v1544 = vadd.f32 %v1030, %v1543
      %1545 = vadd.xlane.f32.xlu0 %v1544
      %v1546 = vpop.xlane.xlu0 %1545
      %v1547 = vsel %vm1542, %v1380, 0.0
      %v1548 = vadd.f32 %v1032, %v1547
      %1549 = vadd.xlane.f32.xlu0 %v1548
      %v1550 = vpop.xlane.xlu0 %1549
      %v1551 = vsel %vm1542, %v1383, 0.0
      %v1552 = vadd.f32 %v1035, %v1551
      %1553 = vadd.xlane.f32.xlu0 %v1552
      %v1554 = vpop.xlane.xlu0 %1553
      %v1555 = vsel %vm1542, %v1385, 0.0
      %v1556 = vadd.f32 %v1037, %v1555
      %1557 = vadd.xlane.f32.xlu0 %v1556
      %v1558 = vpop.xlane.xlu0 %1557
      %v1559 = vsel %vm1542, %v1388, 0.0
      %v1560 = vadd.f32 %v1040, %v1559
      %1561 = vadd.xlane.f32.xlu0 %v1560
      %v1562 = vpop.xlane.xlu0 %1561
      %v1563 = vsel %vm1542, %v1390, 0.0
      %v1564 = vadd.f32 %v1042, %v1563
      %1565 = vadd.xlane.f32.xlu0 %v1564
      %v1566 = vpop.xlane.xlu0 %1565
      %v1567 = vsel %vm1542, %v1393, 0.0
      %v1568 = vadd.f32 %v1045, %v1567
      %1569 = vadd.xlane.f32.xlu0 %v1568
      %v1570 = vpop.xlane.xlu0 %1569
      %v1571 = vsel %vm1542, %v1395, 0.0
      %v1572 = vadd.f32 %v1047, %v1571
      %1573 = vadd.xlane.f32.xlu0 %v1572
      %v1574 = vpop.xlane.xlu0 %1573
      %v1575 = vsel %vm1542, %v1398, 0.0
      %v1576 = vadd.f32 %v1050, %v1575
      %1577 = vadd.xlane.f32.xlu0 %v1576
      %v1578 = vpop.xlane.xlu0 %1577
      %v1579 = vsel %vm1542, %v1400, 0.0
      %v1580 = vadd.f32 %v1052, %v1579
      %1581 = vadd.xlane.f32.xlu0 %v1580
      %v1582 = vpop.xlane.xlu0 %1581
      %v1583 = vsel %vm1542, %v1403, 0.0
      %v1584 = vadd.f32 %v1055, %v1583
      %1585 = vadd.xlane.f32.xlu0 %v1584
      %v1586 = vpop.xlane.xlu0 %1585
      %v1587 = vsel %vm1542, %v1405, 0.0
      %v1588 = vadd.f32 %v1057, %v1587
      %1589 = vadd.xlane.f32.xlu0 %v1588
      %v1590 = vpop.xlane.xlu0 %1589
      %v1591 = vsel %vm1542, %v1408, 0.0
      %v1592 = vadd.f32 %v1060, %v1591
      %1593 = vadd.xlane.f32.xlu0 %v1592
      %v1594 = vpop.xlane.xlu0 %1593
      %v1595 = vsel %vm1542, %v1410, 0.0
      %v1596 = vadd.f32 %v1062, %v1595
      %1597 = vadd.xlane.f32.xlu0 %v1596
      %v1598 = vpop.xlane.xlu0 %1597
      %v1599 = vsel %vm1542, %v1413, 0.0
      %v1600 = vadd.f32 %v1065, %v1599
      %1601 = vadd.xlane.f32.xlu0 %v1600
      %v1602 = vpop.xlane.xlu0 %1601
      %v1603 = vsel %vm1542, %v1415, 0.0
      %v1604 = vadd.f32 %v1067, %v1603
      %1605 = vadd.xlane.f32.xlu0 %v1604
      %v1606 = vpop.xlane.xlu0 %1605
      %v1607 = vsel %vm1542, %v1418, 0.0
      %v1608 = vadd.f32 %v1070, %v1607
      %1609 = vadd.xlane.f32.xlu0 %v1608
      %v1610 = vpop.xlane.xlu0 %1609
      %v1611 = vsel %vm1542, %v1420, 0.0
      %v1612 = vadd.f32 %v1072, %v1611
      %1613 = vadd.xlane.f32.xlu0 %v1612
      %v1614 = vpop.xlane.xlu0 %1613
      %v1615 = vsel %vm1542, %v1423, 0.0
      %v1616 = vadd.f32 %v1075, %v1615
      %1617 = vadd.xlane.f32.xlu0 %v1616
      %v1618 = vpop.xlane.xlu0 %1617
      %v1619 = vsel %vm1542, %v1425, 0.0
      %v1620 = vadd.f32 %v1077, %v1619
      %1621 = vadd.xlane.f32.xlu0 %v1620
      %v1622 = vpop.xlane.xlu0 %1621
      %v1623 = vsel %vm1542, %v1428, 0.0
      %v1624 = vadd.f32 %v1080, %v1623
      %1625 = vadd.xlane.f32.xlu0 %v1624
      %v1626 = vpop.xlane.xlu0 %1625
      %v1627 = vsel %vm1542, %v1430, 0.0
      %v1628 = vadd.f32 %v1082, %v1627
      %1629 = vadd.xlane.f32.xlu0 %v1628
      %v1630 = vpop.xlane.xlu0 %1629
      %v1631 = vsel %vm1542, %v1433, 0.0
      %v1632 = vadd.f32 %v1085, %v1631
      %1633 = vadd.xlane.f32.xlu0 %v1632
      %v1634 = vpop.xlane.xlu0 %1633
      %v1635 = vsel %vm1542, %v1435, 0.0
      %v1636 = vadd.f32 %v1087, %v1635
      %1637 = vadd.xlane.f32.xlu0 %v1636
      %v1638 = vpop.xlane.xlu0 %1637
      %v1639 = vsel %vm1542, %v1438, 0.0
      %v1640 = vadd.f32 %v1090, %v1639
      %1641 = vadd.xlane.f32.xlu0 %v1640
      %v1642 = vpop.xlane.xlu0 %1641
      %v1643 = vsel %vm1542, %v1440, 0.0
      %v1644 = vadd.f32 %v1092, %v1643
      %1645 = vadd.xlane.f32.xlu0 %v1644
      %v1646 = vpop.xlane.xlu0 %1645
      %v1647 = vsel %vm1542, %v1443, 0.0
      %v1648 = vadd.f32 %v1095, %v1647
      %1649 = vadd.xlane.f32.xlu0 %v1648
      %v1650 = vpop.xlane.xlu0 %1649
      %v1651 = vsel %vm1542, %v1445, 0.0
      %v1652 = vadd.f32 %v1097, %v1651
      %1653 = vadd.xlane.f32.xlu0 %v1652
      %v1654 = vpop.xlane.xlu0 %1653
      %v1655 = vsel %vm1542, %v1448, 0.0
      %v1656 = vadd.f32 %v1100, %v1655
      %1657 = vadd.xlane.f32.xlu0 %v1656
      %v1658 = vpop.xlane.xlu0 %1657
      %v1659 = vsel %vm1542, %v1450, 0.0
      %v1660 = vadd.f32 %v1102, %v1659
      %1661 = vadd.xlane.f32.xlu0 %v1660
      %v1662 = vpop.xlane.xlu0 %1661
      %v1663 = vsel %vm1542, %v1453, 0.0
      %v1664 = vadd.f32 %v1105, %v1663
      %1665 = vadd.xlane.f32.xlu0 %v1664
      %v1666 = vpop.xlane.xlu0 %1665
      %v1667 = vsel %vm1542, %v1455, 0.0
      %v1668 = vadd.f32 %v1107, %v1667
      %1669 = vadd.xlane.f32.xlu0 %v1668
      %v1670 = vpop.xlane.xlu0 %1669
      %v1671 = vsel %vm1542, %v1458, 0.0
      %v1672 = vadd.f32 %v1110, %v1671
      %1673 = vadd.xlane.f32.xlu0 %v1672
      %v1674 = vpop.xlane.xlu0 %1673
      %v1675 = vsel %vm1542, %v1460, 0.0
      %v1676 = vadd.f32 %v1112, %v1675
      %1677 = vadd.xlane.f32.xlu0 %v1676
      %v1678 = vpop.xlane.xlu0 %1677
      %v1679 = vsel %vm1542, %v1463, 0.0
      %v1680 = vadd.f32 %v1115, %v1679
      %1681 = vadd.xlane.f32.xlu0 %v1680
      %v1682 = vpop.xlane.xlu0 %1681
      %v1683 = vsel %vm1542, %v1465, 0.0
      %v1684 = vadd.f32 %v1117, %v1683
      %1685 = vadd.xlane.f32.xlu0 %v1684
      %v1686 = vpop.xlane.xlu0 %1685
      %v1687 = vsel %vm1542, %v1468, 0.0
      %v1688 = vadd.f32 %v1120, %v1687
      %1689 = vadd.xlane.f32.xlu0 %v1688
      %v1690 = vpop.xlane.xlu0 %1689
      %v1691 = vsel %vm1542, %v1470, 0.0
      %v1692 = vadd.f32 %v1122, %v1691
      %1693 = vadd.xlane.f32.xlu0 %v1692
      %v1694 = vpop.xlane.xlu0 %1693
      %v1695 = vsel %vm1542, %v1473, 0.0
      %v1696 = vadd.f32 %v1125, %v1695
      %1697 = vadd.xlane.f32.xlu0 %v1696
      %v1698 = vpop.xlane.xlu0 %1697
      %v1699 = vsel %vm1542, %v1475, 0.0
      %v1700 = vadd.f32 %v1127, %v1699
      %1701 = vadd.xlane.f32.xlu0 %v1700
      %v1702 = vpop.xlane.xlu0 %1701
      %v1703 = vsel %vm1542, %v1478, 0.0
      %v1704 = vadd.f32 %v1130, %v1703
      %1705 = vadd.xlane.f32.xlu0 %v1704
      %v1706 = vpop.xlane.xlu0 %1705
      %v1707 = vsel %vm1542, %v1480, 0.0
      %v1708 = vadd.f32 %v1132, %v1707
      %1709 = vadd.xlane.f32.xlu0 %v1708
      %v1710 = vpop.xlane.xlu0 %1709
      %v1711 = vsel %vm1542, %v1483, 0.0
      %v1712 = vadd.f32 %v1135, %v1711
      %1713 = vadd.xlane.f32.xlu0 %v1712
      %v1714 = vpop.xlane.xlu0 %1713
      %v1715 = vsel %vm1542, %v1485, 0.0
      %v1716 = vadd.f32 %v1137, %v1715
      %1717 = vadd.xlane.f32.xlu0 %v1716
      %v1718 = vpop.xlane.xlu0 %1717
      %v1719 = vsel %vm1542, %v1488, 0.0
      %v1720 = vadd.f32 %v1140, %v1719
      %1721 = vadd.xlane.f32.xlu0 %v1720
      %v1722 = vpop.xlane.xlu0 %1721
      %v1723 = vsel %vm1542, %v1490, 0.0
      %v1724 = vadd.f32 %v1142, %v1723
      %1725 = vadd.xlane.f32.xlu0 %v1724
      %v1726 = vpop.xlane.xlu0 %1725
      %v1727 = vsel %vm1542, %v1493, 0.0
      %v1728 = vadd.f32 %v1145, %v1727
      %1729 = vadd.xlane.f32.xlu0 %v1728
      %v1730 = vpop.xlane.xlu0 %1729
      %v1731 = vsel %vm1542, %v1495, 0.0
      %v1732 = vadd.f32 %v1147, %v1731
      %1733 = vadd.xlane.f32.xlu0 %v1732
      %v1734 = vpop.xlane.xlu0 %1733
      %v1735 = vsel %vm1542, %v1498, 0.0
      %v1736 = vadd.f32 %v1150, %v1735
      %1737 = vadd.xlane.f32.xlu0 %v1736
      %v1738 = vpop.xlane.xlu0 %1737
      %v1739 = vsel %vm1542, %v1500, 0.0
      %v1740 = vadd.f32 %v1152, %v1739
      %1741 = vadd.xlane.f32.xlu0 %v1740
      %v1742 = vpop.xlane.xlu0 %1741
      %v1743 = vsel %vm1542, %v1503, 0.0
      %v1744 = vadd.f32 %v1155, %v1743
      %1745 = vadd.xlane.f32.xlu0 %v1744
      %v1746 = vpop.xlane.xlu0 %1745
      %v1747 = vsel %vm1542, %v1505, 0.0
      %v1748 = vadd.f32 %v1157, %v1747
      %1749 = vadd.xlane.f32.xlu0 %v1748
      %v1750 = vpop.xlane.xlu0 %1749
      %v1751 = vsel %vm1542, %v1508, 0.0
      %v1752 = vadd.f32 %v1160, %v1751
      %1753 = vadd.xlane.f32.xlu0 %v1752
      %v1754 = vpop.xlane.xlu0 %1753
      %v1755 = vsel %vm1542, %v1510, 0.0
      %v1756 = vadd.f32 %v1162, %v1755
      %1757 = vadd.xlane.f32.xlu0 %v1756
      %v1758 = vpop.xlane.xlu0 %1757
      %v1759 = vsel %vm1542, %v1513, 0.0
      %v1760 = vadd.f32 %v1165, %v1759
      %1761 = vadd.xlane.f32.xlu0 %v1760
      %v1762 = vpop.xlane.xlu0 %1761
      %v1763 = vsel %vm1542, %v1515, 0.0
      %v1764 = vadd.f32 %v1167, %v1763
      %1765 = vadd.xlane.f32.xlu0 %v1764
      %v1766 = vpop.xlane.xlu0 %1765
      %v1767 = vsel %vm1542, %v1518, 0.0
      %v1768 = vadd.f32 %v1170, %v1767
      %1769 = vadd.xlane.f32.xlu0 %v1768
      %v1770 = vpop.xlane.xlu0 %1769
      %v1771 = vsel %vm1542, %v1520, 0.0
      %v1772 = vadd.f32 %v1172, %v1771
      %1773 = vadd.xlane.f32.xlu0 %v1772
      %v1774 = vpop.xlane.xlu0 %1773
      %v1775 = vsel %vm1542, %v1523, 0.0
      %v1776 = vadd.f32 %v1175, %v1775
      %1777 = vadd.xlane.f32.xlu0 %v1776
      %v1778 = vpop.xlane.xlu0 %1777
      %v1779 = vsel %vm1542, %v1525, 0.0
      %v1780 = vadd.f32 %v1177, %v1779
      %1781 = vadd.xlane.f32.xlu0 %v1780
      %v1782 = vpop.xlane.xlu0 %1781
      %v1783 = vsel %vm1542, %v1528, 0.0
      %v1784 = vadd.f32 %v1180, %v1783
      %1785 = vadd.xlane.f32.xlu0 %v1784
      %v1786 = vpop.xlane.xlu0 %1785
      %v1787 = vsel %vm1542, %v1530, 0.0
      %v1788 = vadd.f32 %v1182, %v1787
      %1789 = vadd.xlane.f32.xlu0 %v1788
      %v1790 = vpop.xlane.xlu0 %1789
      %v1791 = vsel %vm1542, %v1533, 0.0
      %v1792 = vadd.f32 %v1185, %v1791
      %1793 = vadd.xlane.f32.xlu0 %v1792
      %v1794 = vpop.xlane.xlu0 %1793
      %v1795 = vsel %vm1542, %v1535, 0.0
      %v1796 = vadd.f32 %v1187, %v1795
      %1797 = vadd.xlane.f32.xlu0 %v1796
      %v1798 = vpop.xlane.xlu0 %1797
      %v1799 = vsel %vm1542, %v1538, 0.0
      %v1800 = vadd.f32 %v1190, %v1799
      %1801 = vadd.xlane.f32.xlu0 %v1800
      %v1802 = vpop.xlane.xlu0 %1801
      %v1803 = vsel %vm1542, %v1540, 0.0
      %v1804 = vadd.f32 %v1192, %v1803
      %1805 = vadd.xlane.f32.xlu0 %v1804
      %v1806 = vpop.xlane.xlu0 %1805
      %v1807 = vmul.f32 %v1030, %v1030
      %v1808 = vmul.f32 %v1378, %v1378
      %v1809 = vmul.f32 %v1032, %v1032
      %v1810 = vmul.f32 %v1380, %v1380
      %v1811 = vmul.f32 %v1035, %v1035
      %v1812 = vmul.f32 %v1383, %v1383
      %v1813 = vmul.f32 %v1037, %v1037
      %v1814 = vmul.f32 %v1385, %v1385
      %v1815 = vmul.f32 %v1040, %v1040
      %v1816 = vmul.f32 %v1388, %v1388
      %v1817 = vmul.f32 %v1042, %v1042
      %v1818 = vmul.f32 %v1390, %v1390
      %v1819 = vmul.f32 %v1045, %v1045
      %v1820 = vmul.f32 %v1393, %v1393
      %v1821 = vmul.f32 %v1047, %v1047
      %v1822 = vmul.f32 %v1395, %v1395
      %v1823 = vmul.f32 %v1050, %v1050
      %v1824 = vmul.f32 %v1398, %v1398
      %v1825 = vmul.f32 %v1052, %v1052
      %v1826 = vmul.f32 %v1400, %v1400
      %v1827 = vmul.f32 %v1055, %v1055
      %v1828 = vmul.f32 %v1403, %v1403
      %v1829 = vmul.f32 %v1057, %v1057
      %v1830 = vmul.f32 %v1405, %v1405
      %v1831 = vmul.f32 %v1060, %v1060
      %v1832 = vmul.f32 %v1408, %v1408
      %v1833 = vmul.f32 %v1062, %v1062
      %v1834 = vmul.f32 %v1410, %v1410
      %v1835 = vmul.f32 %v1065, %v1065
      %v1836 = vmul.f32 %v1413, %v1413
      %v1837 = vmul.f32 %v1067, %v1067
      %v1838 = vmul.f32 %v1415, %v1415
      %v1839 = vmul.f32 %v1070, %v1070
      %v1840 = vmul.f32 %v1418, %v1418
      %v1841 = vmul.f32 %v1072, %v1072
      %v1842 = vmul.f32 %v1420, %v1420
      %v1843 = vmul.f32 %v1075, %v1075
      %v1844 = vmul.f32 %v1423, %v1423
      %v1845 = vmul.f32 %v1077, %v1077
      %v1846 = vmul.f32 %v1425, %v1425
      %v1847 = vmul.f32 %v1080, %v1080
      %v1848 = vmul.f32 %v1428, %v1428
      %v1849 = vmul.f32 %v1082, %v1082
      %v1850 = vmul.f32 %v1430, %v1430
      %v1851 = vmul.f32 %v1085, %v1085
      %v1852 = vmul.f32 %v1433, %v1433
      %v1853 = vmul.f32 %v1087, %v1087
      %v1854 = vmul.f32 %v1435, %v1435
      %v1855 = vmul.f32 %v1090, %v1090
      %v1856 = vmul.f32 %v1438, %v1438
      %v1857 = vmul.f32 %v1092, %v1092
      %v1858 = vmul.f32 %v1440, %v1440
      %v1859 = vmul.f32 %v1095, %v1095
      %v1860 = vmul.f32 %v1443, %v1443
      %v1861 = vmul.f32 %v1097, %v1097
      %v1862 = vmul.f32 %v1445, %v1445
      %v1863 = vmul.f32 %v1100, %v1100
      %v1864 = vmul.f32 %v1448, %v1448
      %v1865 = vmul.f32 %v1102, %v1102
      %v1866 = vmul.f32 %v1450, %v1450
      %v1867 = vmul.f32 %v1105, %v1105
      %v1868 = vmul.f32 %v1453, %v1453
      %v1869 = vmul.f32 %v1107, %v1107
      %v1870 = vmul.f32 %v1455, %v1455
      %v1871 = vmul.f32 %v1110, %v1110
      %v1872 = vmul.f32 %v1458, %v1458
      %v1873 = vmul.f32 %v1112, %v1112
      %v1874 = vmul.f32 %v1460, %v1460
      %v1875 = vmul.f32 %v1115, %v1115
      %v1876 = vmul.f32 %v1463, %v1463
      %v1877 = vmul.f32 %v1117, %v1117
      %v1878 = vmul.f32 %v1465, %v1465
      %v1879 = vmul.f32 %v1120, %v1120
      %v1880 = vmul.f32 %v1468, %v1468
      %v1881 = vmul.f32 %v1122, %v1122
      %v1882 = vmul.f32 %v1470, %v1470
      %v1883 = vmul.f32 %v1125, %v1125
      %v1884 = vmul.f32 %v1473, %v1473
      %v1885 = vmul.f32 %v1127, %v1127
      %v1886 = vmul.f32 %v1475, %v1475
      %v1887 = vmul.f32 %v1130, %v1130
      %v1888 = vmul.f32 %v1478, %v1478
      %v1889 = vmul.f32 %v1132, %v1132
      %v1890 = vmul.f32 %v1480, %v1480
      %v1891 = vmul.f32 %v1135, %v1135
      %v1892 = vmul.f32 %v1483, %v1483
      %v1893 = vmul.f32 %v1137, %v1137
      %v1894 = vmul.f32 %v1485, %v1485
      %v1895 = vmul.f32 %v1140, %v1140
      %v1896 = vmul.f32 %v1488, %v1488
      %v1897 = vmul.f32 %v1142, %v1142
      %v1898 = vmul.f32 %v1490, %v1490
      %v1899 = vmul.f32 %v1145, %v1145
      %v1900 = vmul.f32 %v1493, %v1493
      %v1901 = vmul.f32 %v1147, %v1147
      %v1902 = vmul.f32 %v1495, %v1495
      %v1903 = vmul.f32 %v1150, %v1150
      %v1904 = vmul.f32 %v1498, %v1498
      %v1905 = vmul.f32 %v1152, %v1152
      %v1906 = vmul.f32 %v1500, %v1500
      %v1907 = vmul.f32 %v1155, %v1155
      %v1908 = vmul.f32 %v1503, %v1503
      %v1909 = vmul.f32 %v1157, %v1157
      %v1910 = vmul.f32 %v1505, %v1505
      %v1911 = vmul.f32 %v1160, %v1160
      %v1912 = vmul.f32 %v1508, %v1508
      %v1913 = vmul.f32 %v1162, %v1162
      %v1914 = vmul.f32 %v1510, %v1510
      %v1915 = vmul.f32 %v1165, %v1165
      %v1916 = vmul.f32 %v1513, %v1513
      %v1917 = vmul.f32 %v1167, %v1167
      %v1918 = vmul.f32 %v1515, %v1515
      %v1919 = vmul.f32 %v1170, %v1170
      %v1920 = vmul.f32 %v1518, %v1518
      %v1921 = vmul.f32 %v1172, %v1172
      %v1922 = vmul.f32 %v1520, %v1520
      %v1923 = vmul.f32 %v1175, %v1175
      %v1924 = vmul.f32 %v1523, %v1523
      %v1925 = vmul.f32 %v1177, %v1177
      %v1926 = vmul.f32 %v1525, %v1525
      %v1927 = vmul.f32 %v1180, %v1180
      %v1928 = vmul.f32 %v1528, %v1528
      %v1929 = vmul.f32 %v1182, %v1182
      %v1930 = vmul.f32 %v1530, %v1530
      %v1931 = vmul.f32 %v1185, %v1185
      %v1932 = vmul.f32 %v1533, %v1533
      %v1933 = vmul.f32 %v1187, %v1187
      %v1934 = vmul.f32 %v1535, %v1535
      %v1935 = vmul.f32 %v1190, %v1190
      %v1936 = vmul.f32 %v1538, %v1538
      %v1937 = vmul.f32 %v1192, %v1192
      %v1938 = vmul.f32 %v1540, %v1540
      %v1939 = vsel %vm1542, %v1808, 0.0
      %v1940 = vadd.f32 %v1807, %v1939
      %1941 = vadd.xlane.f32.xlu0 %v1940
      %v1942 = vpop.xlane.xlu0 %1941
      %v1943 = vsel %vm1542, %v1810, 0.0
      %v1944 = vadd.f32 %v1809, %v1943
      %1945 = vadd.xlane.f32.xlu0 %v1944
      %v1946 = vpop.xlane.xlu0 %1945
      %v1947 = vsel %vm1542, %v1812, 0.0
      %v1948 = vadd.f32 %v1811, %v1947
      %1949 = vadd.xlane.f32.xlu0 %v1948
      %v1950 = vpop.xlane.xlu0 %1949
      %v1951 = vsel %vm1542, %v1814, 0.0
      %v1952 = vadd.f32 %v1813, %v1951
      %1953 = vadd.xlane.f32.xlu0 %v1952
      %v1954 = vpop.xlane.xlu0 %1953
      %v1955 = vsel %vm1542, %v1816, 0.0
      %v1956 = vadd.f32 %v1815, %v1955
      %1957 = vadd.xlane.f32.xlu0 %v1956
      %v1958 = vpop.xlane.xlu0 %1957
      %v1959 = vsel %vm1542, %v1818, 0.0
      %v1960 = vadd.f32 %v1817, %v1959
      %1961 = vadd.xlane.f32.xlu0 %v1960
      %v1962 = vpop.xlane.xlu0 %1961
      %v1963 = vsel %vm1542, %v1820, 0.0
      %v1964 = vadd.f32 %v1819, %v1963
      %1965 = vadd.xlane.f32.xlu0 %v1964
      %v1966 = vpop.xlane.xlu0 %1965
      %v1967 = vsel %vm1542, %v1822, 0.0
      %v1968 = vadd.f32 %v1821, %v1967
      %1969 = vadd.xlane.f32.xlu0 %v1968
      %v1970 = vpop.xlane.xlu0 %1969
      %v1971 = vsel %vm1542, %v1824, 0.0
      %v1972 = vadd.f32 %v1823, %v1971
      %1973 = vadd.xlane.f32.xlu0 %v1972
      %v1974 = vpop.xlane.xlu0 %1973
      %v1975 = vsel %vm1542, %v1826, 0.0
      %v1976 = vadd.f32 %v1825, %v1975
      %1977 = vadd.xlane.f32.xlu0 %v1976
      %v1978 = vpop.xlane.xlu0 %1977
      %v1979 = vsel %vm1542, %v1828, 0.0
      %v1980 = vadd.f32 %v1827, %v1979
      %1981 = vadd.xlane.f32.xlu0 %v1980
      %v1982 = vpop.xlane.xlu0 %1981
      %v1983 = vsel %vm1542, %v1830, 0.0
      %v1984 = vadd.f32 %v1829, %v1983
      %1985 = vadd.xlane.f32.xlu0 %v1984
      %v1986 = vpop.xlane.xlu0 %1985
      %v1987 = vsel %vm1542, %v1832, 0.0
      %v1988 = vadd.f32 %v1831, %v1987
      %1989 = vadd.xlane.f32.xlu0 %v1988
      %v1990 = vpop.xlane.xlu0 %1989
      %v1991 = vsel %vm1542, %v1834, 0.0
      %v1992 = vadd.f32 %v1833, %v1991
      %1993 = vadd.xlane.f32.xlu0 %v1992
      %v1994 = vpop.xlane.xlu0 %1993
      %v1995 = vsel %vm1542, %v1836, 0.0
      %v1996 = vadd.f32 %v1835, %v1995
      %1997 = vadd.xlane.f32.xlu0 %v1996
      %v1998 = vpop.xlane.xlu0 %1997
      %v1999 = vsel %vm1542, %v1838, 0.0
      %v2000 = vadd.f32 %v1837, %v1999
      %2001 = vadd.xlane.f32.xlu0 %v2000
      %v2002 = vpop.xlane.xlu0 %2001
      %v2003 = vsel %vm1542, %v1840, 0.0
      %v2004 = vadd.f32 %v1839, %v2003
      %2005 = vadd.xlane.f32.xlu0 %v2004
      %v2006 = vpop.xlane.xlu0 %2005
      %v2007 = vsel %vm1542, %v1842, 0.0
      %v2008 = vadd.f32 %v1841, %v2007
      %2009 = vadd.xlane.f32.xlu0 %v2008
      %v2010 = vpop.xlane.xlu0 %2009
      %v2011 = vsel %vm1542, %v1844, 0.0
      %v2012 = vadd.f32 %v1843, %v2011
      %2013 = vadd.xlane.f32.xlu0 %v2012
      %v2014 = vpop.xlane.xlu0 %2013
      %v2015 = vsel %vm1542, %v1846, 0.0
      %v2016 = vadd.f32 %v1845, %v2015
      %2017 = vadd.xlane.f32.xlu0 %v2016
      %v2018 = vpop.xlane.xlu0 %2017
      %v2019 = vsel %vm1542, %v1848, 0.0
      %v2020 = vadd.f32 %v1847, %v2019
      %2021 = vadd.xlane.f32.xlu0 %v2020
      %v2022 = vpop.xlane.xlu0 %2021
      %v2023 = vsel %vm1542, %v1850, 0.0
      %v2024 = vadd.f32 %v1849, %v2023
      %2025 = vadd.xlane.f32.xlu0 %v2024
      %v2026 = vpop.xlane.xlu0 %2025
      %v2027 = vsel %vm1542, %v1852, 0.0
      %v2028 = vadd.f32 %v1851, %v2027
      %2029 = vadd.xlane.f32.xlu0 %v2028
      %v2030 = vpop.xlane.xlu0 %2029
      %v2031 = vsel %vm1542, %v1854, 0.0
      %v2032 = vadd.f32 %v1853, %v2031
      %2033 = vadd.xlane.f32.xlu0 %v2032
      %v2034 = vpop.xlane.xlu0 %2033
      %v2035 = vsel %vm1542, %v1856, 0.0
      %v2036 = vadd.f32 %v1855, %v2035
      %2037 = vadd.xlane.f32.xlu0 %v2036
      %v2038 = vpop.xlane.xlu0 %2037
      %v2039 = vsel %vm1542, %v1858, 0.0
      %v2040 = vadd.f32 %v1857, %v2039
      %2041 = vadd.xlane.f32.xlu0 %v2040
      %v2042 = vpop.xlane.xlu0 %2041
      %v2043 = vsel %vm1542, %v1860, 0.0
      %v2044 = vadd.f32 %v1859, %v2043
      %2045 = vadd.xlane.f32.xlu0 %v2044
      %v2046 = vpop.xlane.xlu0 %2045
      %v2047 = vsel %vm1542, %v1862, 0.0
      %v2048 = vadd.f32 %v1861, %v2047
      %2049 = vadd.xlane.f32.xlu0 %v2048
      %v2050 = vpop.xlane.xlu0 %2049
      %v2051 = vsel %vm1542, %v1864, 0.0
      %v2052 = vadd.f32 %v1863, %v2051
      %2053 = vadd.xlane.f32.xlu0 %v2052
      %v2054 = vpop.xlane.xlu0 %2053
      %v2055 = vsel %vm1542, %v1866, 0.0
      %v2056 = vadd.f32 %v1865, %v2055
      %2057 = vadd.xlane.f32.xlu0 %v2056
      %v2058 = vpop.xlane.xlu0 %2057
      %v2059 = vsel %vm1542, %v1868, 0.0
      %v2060 = vadd.f32 %v1867, %v2059
      %2061 = vadd.xlane.f32.xlu0 %v2060
      %v2062 = vpop.xlane.xlu0 %2061
      %v2063 = vsel %vm1542, %v1870, 0.0
      %v2064 = vadd.f32 %v1869, %v2063
      %2065 = vadd.xlane.f32.xlu0 %v2064
      %v2066 = vpop.xlane.xlu0 %2065
      %v2067 = vsel %vm1542, %v1872, 0.0
      %v2068 = vadd.f32 %v1871, %v2067
      %2069 = vadd.xlane.f32.xlu0 %v2068
      %v2070 = vpop.xlane.xlu0 %2069
      %v2071 = vsel %vm1542, %v1874, 0.0
      %v2072 = vadd.f32 %v1873, %v2071
      %2073 = vadd.xlane.f32.xlu0 %v2072
      %v2074 = vpop.xlane.xlu0 %2073
      %v2075 = vsel %vm1542, %v1876, 0.0
      %v2076 = vadd.f32 %v1875, %v2075
      %2077 = vadd.xlane.f32.xlu0 %v2076
      %v2078 = vpop.xlane.xlu0 %2077
      %v2079 = vsel %vm1542, %v1878, 0.0
      %v2080 = vadd.f32 %v1877, %v2079
      %2081 = vadd.xlane.f32.xlu0 %v2080
      %v2082 = vpop.xlane.xlu0 %2081
      %v2083 = vsel %vm1542, %v1880, 0.0
      %v2084 = vadd.f32 %v1879, %v2083
      %2085 = vadd.xlane.f32.xlu0 %v2084
      %v2086 = vpop.xlane.xlu0 %2085
      %v2087 = vsel %vm1542, %v1882, 0.0
      %v2088 = vadd.f32 %v1881, %v2087
      %2089 = vadd.xlane.f32.xlu0 %v2088
      %v2090 = vpop.xlane.xlu0 %2089
      %v2091 = vsel %vm1542, %v1884, 0.0
      %v2092 = vadd.f32 %v1883, %v2091
      %2093 = vadd.xlane.f32.xlu0 %v2092
      %v2094 = vpop.xlane.xlu0 %2093
      %v2095 = vsel %vm1542, %v1886, 0.0
      %v2096 = vadd.f32 %v1885, %v2095
      %2097 = vadd.xlane.f32.xlu0 %v2096
      %v2098 = vpop.xlane.xlu0 %2097
      %v2099 = vsel %vm1542, %v1888, 0.0
      %v2100 = vadd.f32 %v1887, %v2099
      %2101 = vadd.xlane.f32.xlu0 %v2100
      %v2102 = vpop.xlane.xlu0 %2101
      %v2103 = vsel %vm1542, %v1890, 0.0
      %v2104 = vadd.f32 %v1889, %v2103
      %2105 = vadd.xlane.f32.xlu0 %v2104
      %v2106 = vpop.xlane.xlu0 %2105
      %v2107 = vsel %vm1542, %v1892, 0.0
      %v2108 = vadd.f32 %v1891, %v2107
      %2109 = vadd.xlane.f32.xlu0 %v2108
      %v2110 = vpop.xlane.xlu0 %2109
      %v2111 = vsel %vm1542, %v1894, 0.0
      %v2112 = vadd.f32 %v1893, %v2111
      %2113 = vadd.xlane.f32.xlu0 %v2112
      %v2114 = vpop.xlane.xlu0 %2113
      %v2115 = vsel %vm1542, %v1896, 0.0
      %v2116 = vadd.f32 %v1895, %v2115
      %2117 = vadd.xlane.f32.xlu0 %v2116
      %v2118 = vpop.xlane.xlu0 %2117
      %v2119 = vsel %vm1542, %v1898, 0.0
      %v2120 = vadd.f32 %v1897, %v2119
      %2121 = vadd.xlane.f32.xlu0 %v2120
      %v2122 = vpop.xlane.xlu0 %2121
      %v2123 = vsel %vm1542, %v1900, 0.0
      %v2124 = vadd.f32 %v1899, %v2123
      %2125 = vadd.xlane.f32.xlu0 %v2124
      %v2126 = vpop.xlane.xlu0 %2125
      %v2127 = vsel %vm1542, %v1902, 0.0
      %v2128 = vadd.f32 %v1901, %v2127
      %2129 = vadd.xlane.f32.xlu0 %v2128
      %v2130 = vpop.xlane.xlu0 %2129
      %v2131 = vsel %vm1542, %v1904, 0.0
      %v2132 = vadd.f32 %v1903, %v2131
      %2133 = vadd.xlane.f32.xlu0 %v2132
      %v2134 = vpop.xlane.xlu0 %2133
      %v2135 = vsel %vm1542, %v1906, 0.0
      %v2136 = vadd.f32 %v1905, %v2135
      %2137 = vadd.xlane.f32.xlu0 %v2136
      %v2138 = vpop.xlane.xlu0 %2137
      %v2139 = vsel %vm1542, %v1908, 0.0
      %v2140 = vadd.f32 %v1907, %v2139
      %2141 = vadd.xlane.f32.xlu0 %v2140
      %v2142 = vpop.xlane.xlu0 %2141
      %v2143 = vsel %vm1542, %v1910, 0.0
      %v2144 = vadd.f32 %v1909, %v2143
      %2145 = vadd.xlane.f32.xlu0 %v2144
      %v2146 = vpop.xlane.xlu0 %2145
      %v2147 = vsel %vm1542, %v1912, 0.0
      %v2148 = vadd.f32 %v1911, %v2147
      %2149 = vadd.xlane.f32.xlu0 %v2148
      %v2150 = vpop.xlane.xlu0 %2149
      %v2151 = vsel %vm1542, %v1914, 0.0
      %v2152 = vadd.f32 %v1913, %v2151
      %2153 = vadd.xlane.f32.xlu0 %v2152
      %v2154 = vpop.xlane.xlu0 %2153
      %v2155 = vsel %vm1542, %v1916, 0.0
      %v2156 = vadd.f32 %v1915, %v2155
      %2157 = vadd.xlane.f32.xlu0 %v2156
      %v2158 = vpop.xlane.xlu0 %2157
      %v2159 = vsel %vm1542, %v1918, 0.0
      %v2160 = vadd.f32 %v1917, %v2159
      %2161 = vadd.xlane.f32.xlu0 %v2160
      %v2162 = vpop.xlane.xlu0 %2161
      %v2163 = vsel %vm1542, %v1920, 0.0
      %v2164 = vadd.f32 %v1919, %v2163
      %2165 = vadd.xlane.f32.xlu0 %v2164
      %v2166 = vpop.xlane.xlu0 %2165
      %v2167 = vsel %vm1542, %v1922, 0.0
      %v2168 = vadd.f32 %v1921, %v2167
      %2169 = vadd.xlane.f32.xlu0 %v2168
      %v2170 = vpop.xlane.xlu0 %2169
      %v2171 = vsel %vm1542, %v1924, 0.0
      %v2172 = vadd.f32 %v1923, %v2171
      %2173 = vadd.xlane.f32.xlu0 %v2172
      %v2174 = vpop.xlane.xlu0 %2173
      %v2175 = vsel %vm1542, %v1926, 0.0
      %v2176 = vadd.f32 %v1925, %v2175
      %2177 = vadd.xlane.f32.xlu0 %v2176
      %v2178 = vpop.xlane.xlu0 %2177
      %v2179 = vsel %vm1542, %v1928, 0.0
      %v2180 = vadd.f32 %v1927, %v2179
      %2181 = vadd.xlane.f32.xlu0 %v2180
      %v2182 = vpop.xlane.xlu0 %2181
      %v2183 = vsel %vm1542, %v1930, 0.0
      %v2184 = vadd.f32 %v1929, %v2183
      %2185 = vadd.xlane.f32.xlu0 %v2184
      %v2186 = vpop.xlane.xlu0 %2185
      %v2187 = vsel %vm1542, %v1932, 0.0
      %v2188 = vadd.f32 %v1931, %v2187
      %2189 = vadd.xlane.f32.xlu0 %v2188
      %v2190 = vpop.xlane.xlu0 %2189
      %v2191 = vsel %vm1542, %v1934, 0.0
      %v2192 = vadd.f32 %v1933, %v2191
      %2193 = vadd.xlane.f32.xlu0 %v2192
      %v2194 = vpop.xlane.xlu0 %2193
      %v2195 = vsel %vm1542, %v1936, 0.0
      %v2196 = vadd.f32 %v1935, %v2195
      %2197 = vadd.xlane.f32.xlu0 %v2196
      %v2198 = vpop.xlane.xlu0 %2197
      %v2199 = vsel %vm1542, %v1938, 0.0
      %v2200 = vadd.f32 %v1937, %v2199
      %2201 = vadd.xlane.f32.xlu0 %v2200
      %v2202 = vpop.xlane.xlu0 %2201
      %v2203 = vmul.f32 %v1546, 0.0051020407
      %v2204 = vmul.f32 %v1550, 0.0051020407
      %v2205 = vmul.f32 %v1554, 0.0051020407
      %v2206 = vmul.f32 %v1558, 0.0051020407
      %v2207 = vmul.f32 %v1562, 0.0051020407
      %v2208 = vmul.f32 %v1566, 0.0051020407
      %v2209 = vmul.f32 %v1570, 0.0051020407
      %v2210 = vmul.f32 %v1574, 0.0051020407
      %v2211 = vmul.f32 %v1578, 0.0051020407
      %v2212 = vmul.f32 %v1582, 0.0051020407
      %v2213 = vmul.f32 %v1586, 0.0051020407
      %v2214 = vmul.f32 %v1590, 0.0051020407
      %v2215 = vmul.f32 %v1594, 0.0051020407
      %v2216 = vmul.f32 %v1598, 0.0051020407
      %v2217 = vmul.f32 %v1602, 0.0051020407
      %v2218 = vmul.f32 %v1606, 0.0051020407
      %v2219 = vmul.f32 %v1610, 0.0051020407
      %v2220 = vmul.f32 %v1614, 0.0051020407
      %v2221 = vmul.f32 %v1618, 0.0051020407
      %v2222 = vmul.f32 %v1622, 0.0051020407
      %v2223 = vmul.f32 %v1626, 0.0051020407
      %v2224 = vmul.f32 %v1630, 0.0051020407
      %v2225 = vmul.f32 %v1634, 0.0051020407
      %v2226 = vmul.f32 %v1638, 0.0051020407
      %v2227 = vmul.f32 %v1642, 0.0051020407
      %v2228 = vmul.f32 %v1646, 0.0051020407
      %v2229 = vmul.f32 %v1650, 0.0051020407
      %v2230 = vmul.f32 %v1654, 0.0051020407
      %v2231 = vmul.f32 %v1658, 0.0051020407
      %v2232 = vmul.f32 %v1662, 0.0051020407
      %v2233 = vmul.f32 %v1666, 0.0051020407
      %v2234 = vmul.f32 %v1670, 0.0051020407
      %v2235 = vmul.f32 %v1674, 0.0051020407
      %v2236 = vmul.f32 %v1678, 0.0051020407
      %v2237 = vmul.f32 %v1682, 0.0051020407
      %v2238 = vmul.f32 %v1686, 0.0051020407
      %v2239 = vmul.f32 %v1690, 0.0051020407
      %v2240 = vmul.f32 %v1694, 0.0051020407
      %v2241 = vmul.f32 %v1698, 0.0051020407
      %v2242 = vmul.f32 %v1702, 0.0051020407
      %v2243 = vmul.f32 %v1706, 0.0051020407
      %v2244 = vmul.f32 %v1710, 0.0051020407
      %v2245 = vmul.f32 %v1714, 0.0051020407
      %v2246 = vmul.f32 %v1718, 0.0051020407
      %v2247 = vmul.f32 %v1722, 0.0051020407
      %v2248 = vmul.f32 %v1726, 0.0051020407
      %v2249 = vmul.f32 %v1730, 0.0051020407
      %v2250 = vmul.f32 %v1734, 0.0051020407
      %v2251 = vmul.f32 %v1738, 0.0051020407
      %v2252 = vmul.f32 %v1742, 0.0051020407
      %v2253 = vmul.f32 %v1746, 0.0051020407
      %v2254 = vmul.f32 %v1750, 0.0051020407
      %v2255 = vmul.f32 %v1754, 0.0051020407
      %v2256 = vmul.f32 %v1758, 0.0051020407
      %v2257 = vmul.f32 %v1762, 0.0051020407
      %v2258 = vmul.f32 %v1766, 0.0051020407
      %v2259 = vmul.f32 %v1770, 0.0051020407
      %v2260 = vmul.f32 %v1774, 0.0051020407
      %v2261 = vmul.f32 %v1778, 0.0051020407
      %v2262 = vmul.f32 %v1782, 0.0051020407
      %v2263 = vmul.f32 %v1786, 0.0051020407
      %v2264 = vmul.f32 %v1790, 0.0051020407
      %v2265 = vmul.f32 %v1794, 0.0051020407
      %v2266 = vmul.f32 %v1798, 0.0051020407
      %v2267 = vmul.f32 %v1802, 0.0051020407
      %v2268 = vmul.f32 %v1806, 0.0051020407
      %v2269 = vmul.f32 %v1942, 0.0051020407
      %v2270 = vmul.f32 %v1946, 0.0051020407
      %v2271 = vmul.f32 %v1950, 0.0051020407
      %v2272 = vmul.f32 %v1954, 0.0051020407
      %v2273 = vmul.f32 %v1958, 0.0051020407
      %v2274 = vmul.f32 %v1962, 0.0051020407
      %v2275 = vmul.f32 %v1966, 0.0051020407
      %v2276 = vmul.f32 %v1970, 0.0051020407
      %v2277 = vmul.f32 %v1974, 0.0051020407
      %v2278 = vmul.f32 %v1978, 0.0051020407
      %v2279 = vmul.f32 %v1982, 0.0051020407
      %v2280 = vmul.f32 %v1986, 0.0051020407
      %v2281 = vmul.f32 %v1990, 0.0051020407
      %v2282 = vmul.f32 %v1994, 0.0051020407
      %v2283 = vmul.f32 %v1998, 0.0051020407
      %v2284 = vmul.f32 %v2002, 0.0051020407
      %v2285 = vmul.f32 %v2006, 0.0051020407
      %v2286 = vmul.f32 %v2010, 0.0051020407
      %v2287 = vmul.f32 %v2014, 0.0051020407
      %v2288 = vmul.f32 %v2018, 0.0051020407
      %v2289 = vmul.f32 %v2022, 0.0051020407
      %v2290 = vmul.f32 %v2026, 0.0051020407
      %v2291 = vmul.f32 %v2030, 0.0051020407
      %v2292 = vmul.f32 %v2034, 0.0051020407
      %v2293 = vmul.f32 %v2038, 0.0051020407
      %v2294 = vmul.f32 %v2042, 0.0051020407
      %v2295 = vmul.f32 %v2046, 0.0051020407
      %v2296 = vmul.f32 %v2050, 0.0051020407
      %v2297 = vmul.f32 %v2054, 0.0051020407
      %v2298 = vmul.f32 %v2058, 0.0051020407
      %v2299 = vmul.f32 %v2062, 0.0051020407
      %v2300 = vmul.f32 %v2066, 0.0051020407
      %v2301 = vmul.f32 %v2070, 0.0051020407
      %v2302 = vmul.f32 %v2074, 0.0051020407
      %v2303 = vmul.f32 %v2078, 0.0051020407
      %v2304 = vmul.f32 %v2082, 0.0051020407
      %v2305 = vmul.f32 %v2086, 0.0051020407
      %v2306 = vmul.f32 %v2090, 0.0051020407
      %v2307 = vmul.f32 %v2094, 0.0051020407
      %v2308 = vmul.f32 %v2098, 0.0051020407
      %v2309 = vmul.f32 %v2102, 0.0051020407
      %v2310 = vmul.f32 %v2106, 0.0051020407
      %v2311 = vmul.f32 %v2110, 0.0051020407
      %v2312 = vmul.f32 %v2114, 0.0051020407
      %v2313 = vmul.f32 %v2118, 0.0051020407
      %v2314 = vmul.f32 %v2122, 0.0051020407
      %v2315 = vmul.f32 %v2126, 0.0051020407
      %v2316 = vmul.f32 %v2130, 0.0051020407
      %v2317 = vmul.f32 %v2134, 0.0051020407
      %v2318 = vmul.f32 %v2138, 0.0051020407
      %v2319 = vmul.f32 %v2142, 0.0051020407
      %v2320 = vmul.f32 %v2146, 0.0051020407
      %v2321 = vmul.f32 %v2150, 0.0051020407
      %v2322 = vmul.f32 %v2154, 0.0051020407
      %v2323 = vmul.f32 %v2158, 0.0051020407
      %v2324 = vmul.f32 %v2162, 0.0051020407
      %v2325 = vmul.f32 %v2166, 0.0051020407
      %v2326 = vmul.f32 %v2170, 0.0051020407
      %v2327 = vmul.f32 %v2174, 0.0051020407
      %v2328 = vmul.f32 %v2178, 0.0051020407
      %v2329 = vmul.f32 %v2182, 0.0051020407
      %v2330 = vmul.f32 %v2186, 0.0051020407
      %v2331 = vmul.f32 %v2190, 0.0051020407
      %v2332 = vmul.f32 %v2194, 0.0051020407
      %v2333 = vmul.f32 %v2198, 0.0051020407
      %v2334 = vmul.f32 %v2202, 0.0051020407
      %v2335 = vmul.f32 %v2203, %v2203
      %v2336 = vmul.f32 %v2204, %v2204
      %v2337 = vmul.f32 %v2205, %v2205
      %v2338 = vmul.f32 %v2206, %v2206
      %v2339 = vmul.f32 %v2207, %v2207
      %v2340 = vmul.f32 %v2208, %v2208
      %v2341 = vmul.f32 %v2209, %v2209
      %v2342 = vmul.f32 %v2210, %v2210
      %v2343 = vmul.f32 %v2211, %v2211
      %v2344 = vmul.f32 %v2212, %v2212
      %v2345 = vmul.f32 %v2213, %v2213
      %v2346 = vmul.f32 %v2214, %v2214
      %v2347 = vmul.f32 %v2215, %v2215
      %v2348 = vmul.f32 %v2216, %v2216
      %v2349 = vmul.f32 %v2217, %v2217
      %v2350 = vmul.f32 %v2218, %v2218
      %v2351 = vmul.f32 %v2219, %v2219
      %v2352 = vmul.f32 %v2220, %v2220
      %v2353 = vmul.f32 %v2221, %v2221
      %v2354 = vmul.f32 %v2222, %v2222
      %v2355 = vmul.f32 %v2223, %v2223
      %v2356 = vmul.f32 %v2224, %v2224
      %v2357 = vmul.f32 %v2225, %v2225
      %v2358 = vmul.f32 %v2226, %v2226
      %v2359 = vmul.f32 %v2227, %v2227
      %v2360 = vmul.f32 %v2228, %v2228
      %v2361 = vmul.f32 %v2229, %v2229
      %v2362 = vmul.f32 %v2230, %v2230
      %v2363 = vmul.f32 %v2231, %v2231
      %v2364 = vmul.f32 %v2232, %v2232
      %v2365 = vmul.f32 %v2233, %v2233
      %v2366 = vmul.f32 %v2234, %v2234
      %v2367 = vmul.f32 %v2235, %v2235
      %v2368 = vmul.f32 %v2236, %v2236
      %v2369 = vmul.f32 %v2237, %v2237
      %v2370 = vmul.f32 %v2238, %v2238
      %v2371 = vmul.f32 %v2239, %v2239
      %v2372 = vmul.f32 %v2240, %v2240
      %v2373 = vmul.f32 %v2241, %v2241
      %v2374 = vmul.f32 %v2242, %v2242
      %v2375 = vmul.f32 %v2243, %v2243
      %v2376 = vmul.f32 %v2244, %v2244
      %v2377 = vmul.f32 %v2245, %v2245
      %v2378 = vmul.f32 %v2246, %v2246
      %v2379 = vmul.f32 %v2247, %v2247
      %v2380 = vmul.f32 %v2248, %v2248
      %v2381 = vmul.f32 %v2249, %v2249
      %v2382 = vmul.f32 %v2250, %v2250
      %v2383 = vmul.f32 %v2251, %v2251
      %v2384 = vmul.f32 %v2252, %v2252
      %v2385 = vmul.f32 %v2253, %v2253
      %v2386 = vmul.f32 %v2254, %v2254
      %v2387 = vmul.f32 %v2255, %v2255
      %v2388 = vmul.f32 %v2256, %v2256
      %v2389 = vmul.f32 %v2257, %v2257
      %v2390 = vmul.f32 %v2258, %v2258
      %v2391 = vmul.f32 %v2259, %v2259
      %v2392 = vmul.f32 %v2260, %v2260
      %v2393 = vmul.f32 %v2261, %v2261
      %v2394 = vmul.f32 %v2262, %v2262
      %v2395 = vmul.f32 %v2263, %v2263
      %v2396 = vmul.f32 %v2264, %v2264
      %v2397 = vmul.f32 %v2265, %v2265
      %v2398 = vmul.f32 %v2266, %v2266
      %v2399 = vmul.f32 %v2267, %v2267
      %v2400 = vmul.f32 %v2268, %v2268
      %v2401 = vsub.f32 %v2269, %v2335
      %v2402 = vsub.f32 %v2270, %v2336
      %v2403 = vsub.f32 %v2271, %v2337
      %v2404 = vsub.f32 %v2272, %v2338
      %v2405 = vsub.f32 %v2273, %v2339
      %v2406 = vsub.f32 %v2274, %v2340
      %v2407 = vsub.f32 %v2275, %v2341
      %v2408 = vsub.f32 %v2276, %v2342
      %v2409 = vsub.f32 %v2277, %v2343
      %v2410 = vsub.f32 %v2278, %v2344
      %v2411 = vsub.f32 %v2279, %v2345
      %v2412 = vsub.f32 %v2280, %v2346
      %v2413 = vsub.f32 %v2281, %v2347
      %v2414 = vsub.f32 %v2282, %v2348
      %v2415 = vsub.f32 %v2283, %v2349
      %v2416 = vsub.f32 %v2284, %v2350
      %v2417 = vsub.f32 %v2285, %v2351
      %v2418 = vsub.f32 %v2286, %v2352
      %v2419 = vsub.f32 %v2287, %v2353
      %v2420 = vsub.f32 %v2288, %v2354
      %v2421 = vsub.f32 %v2289, %v2355
      %v2422 = vsub.f32 %v2290, %v2356
      %v2423 = vsub.f32 %v2291, %v2357
      %v2424 = vsub.f32 %v2292, %v2358
      %v2425 = vsub.f32 %v2293, %v2359
      %v2426 = vsub.f32 %v2294, %v2360
      %v2427 = vsub.f32 %v2295, %v2361
      %v2428 = vsub.f32 %v2296, %v2362
      %v2429 = vsub.f32 %v2297, %v2363
      %v2430 = vsub.f32 %v2298, %v2364
      %v2431 = vsub.f32 %v2299, %v2365
      %v2432 = vsub.f32 %v2300, %v2366
      %v2433 = vsub.f32 %v2301, %v2367
      %v2434 = vsub.f32 %v2302, %v2368
      %v2435 = vsub.f32 %v2303, %v2369
      %v2436 = vsub.f32 %v2304, %v2370
      %v2437 = vsub.f32 %v2305, %v2371
      %v2438 = vsub.f32 %v2306, %v2372
      %v2439 = vsub.f32 %v2307, %v2373
      %v2440 = vsub.f32 %v2308, %v2374
      %v2441 = vsub.f32 %v2309, %v2375
      %v2442 = vsub.f32 %v2310, %v2376
      %v2443 = vsub.f32 %v2311, %v2377
      %v2444 = vsub.f32 %v2312, %v2378
      %v2445 = vsub.f32 %v2313, %v2379
      %v2446 = vsub.f32 %v2314, %v2380
      %v2447 = vsub.f32 %v2315, %v2381
      %v2448 = vsub.f32 %v2316, %v2382
      %v2449 = vsub.f32 %v2317, %v2383
      %v2450 = vsub.f32 %v2318, %v2384
      %v2451 = vsub.f32 %v2319, %v2385
      %v2452 = vsub.f32 %v2320, %v2386
      %v2453 = vsub.f32 %v2321, %v2387
      %v2454 = vsub.f32 %v2322, %v2388
      %v2455 = vsub.f32 %v2323, %v2389
      %v2456 = vsub.f32 %v2324, %v2390
      %v2457 = vsub.f32 %v2325, %v2391
      %v2458 = vsub.f32 %v2326, %v2392
      %v2459 = vsub.f32 %v2327, %v2393
      %v2460 = vsub.f32 %v2328, %v2394
      %v2461 = vsub.f32 %v2329, %v2395
      %v2462 = vsub.f32 %v2330, %v2396
      %v2463 = vsub.f32 %v2331, %v2397
      %v2464 = vsub.f32 %v2332, %v2398
      %v2465 = vsub.f32 %v2333, %v2399
      %v2466 = vsub.f32 %v2334, %v2400
      %v2467 = vmax.f32 %v2401, 0.0
      %v2468 = vmax.f32 %v2402, 0.0
      %v2469 = vmax.f32 %v2403, 0.0
      %v2470 = vmax.f32 %v2404, 0.0
      %v2471 = vmax.f32 %v2405, 0.0
      %v2472 = vmax.f32 %v2406, 0.0
      %v2473 = vmax.f32 %v2407, 0.0
      %v2474 = vmax.f32 %v2408, 0.0
      %v2475 = vmax.f32 %v2409, 0.0
      %v2476 = vmax.f32 %v2410, 0.0
      %v2477 = vmax.f32 %v2411, 0.0
      %v2478 = vmax.f32 %v2412, 0.0
      %v2479 = vmax.f32 %v2413, 0.0
      %v2480 = vmax.f32 %v2414, 0.0
      %v2481 = vmax.f32 %v2415, 0.0
      %v2482 = vmax.f32 %v2416, 0.0
      %v2483 = vmax.f32 %v2417, 0.0
      %v2484 = vmax.f32 %v2418, 0.0
      %v2485 = vmax.f32 %v2419, 0.0
      %v2486 = vmax.f32 %v2420, 0.0
      %v2487 = vmax.f32 %v2421, 0.0
      %v2488 = vmax.f32 %v2422, 0.0
      %v2489 = vmax.f32 %v2423, 0.0
      %v2490 = vmax.f32 %v2424, 0.0
      %v2491 = vmax.f32 %v2425, 0.0
      %v2492 = vmax.f32 %v2426, 0.0
      %v2493 = vmax.f32 %v2427, 0.0
      %v2494 = vmax.f32 %v2428, 0.0
      %v2495 = vmax.f32 %v2429, 0.0
      %v2496 = vmax.f32 %v2430, 0.0
      %v2497 = vmax.f32 %v2431, 0.0
      %v2498 = vmax.f32 %v2432, 0.0
      %v2499 = vmax.f32 %v2433, 0.0
      %v2500 = vmax.f32 %v2434, 0.0
      %v2501 = vmax.f32 %v2435, 0.0
      %v2502 = vmax.f32 %v2436, 0.0
      %v2503 = vmax.f32 %v2437, 0.0
      %v2504 = vmax.f32 %v2438, 0.0
      %v2505 = vmax.f32 %v2439, 0.0
      %v2506 = vmax.f32 %v2440, 0.0
      %v2507 = vmax.f32 %v2441, 0.0
      %v2508 = vmax.f32 %v2442, 0.0
      %v2509 = vmax.f32 %v2443, 0.0
      %v2510 = vmax.f32 %v2444, 0.0
      %v2511 = vmax.f32 %v2445, 0.0
      %v2512 = vmax.f32 %v2446, 0.0
      %v2513 = vmax.f32 %v2447, 0.0
      %v2514 = vmax.f32 %v2448, 0.0
      %v2515 = vmax.f32 %v2449, 0.0
      %v2516 = vmax.f32 %v2450, 0.0
      %v2517 = vmax.f32 %v2451, 0.0
      %v2518 = vmax.f32 %v2452, 0.0
      %v2519 = vmax.f32 %v2453, 0.0
      %v2520 = vmax.f32 %v2454, 0.0
      %v2521 = vmax.f32 %v2455, 0.0
      %v2522 = vmax.f32 %v2456, 0.0
      %v2523 = vmax.f32 %v2457, 0.0
      %v2524 = vmax.f32 %v2458, 0.0
      %v2525 = vmax.f32 %v2459, 0.0
      %v2526 = vmax.f32 %v2460, 0.0
      %v2527 = vmax.f32 %v2461, 0.0
      %v2528 = vmax.f32 %v2462, 0.0
      %v2529 = vmax.f32 %v2463, 0.0
      %v2530 = vmax.f32 %v2464, 0.0
      %v2531 = vmax.f32 %v2465, 0.0
      %v2532 = vmax.f32 %v2466, 0.0
      %v2533 = vadd.f32 %v2467, 0.001
      %v2534 = vadd.f32 %v2468, 0.001
      %v2535 = vadd.f32 %v2469, 0.001
      %v2536 = vadd.f32 %v2470, 0.001
      %v2537 = vadd.f32 %v2471, 0.001
      %v2538 = vadd.f32 %v2472, 0.001
      %v2539 = vadd.f32 %v2473, 0.001
      %v2540 = vadd.f32 %v2474, 0.001
      %v2541 = vadd.f32 %v2475, 0.001
      %v2542 = vadd.f32 %v2476, 0.001
      %v2543 = vadd.f32 %v2477, 0.001
      %v2544 = vadd.f32 %v2478, 0.001
      %v2545 = vadd.f32 %v2479, 0.001
      %v2546 = vadd.f32 %v2480, 0.001
      %v2547 = vadd.f32 %v2481, 0.001
      %v2548 = vadd.f32 %v2482, 0.001
      %v2549 = vadd.f32 %v2483, 0.001
      %v2550 = vadd.f32 %v2484, 0.001
      %v2551 = vadd.f32 %v2485, 0.001
      %v2552 = vadd.f32 %v2486, 0.001
      %v2553 = vadd.f32 %v2487, 0.001
      %v2554 = vadd.f32 %v2488, 0.001
      %v2555 = vadd.f32 %v2489, 0.001
      %v2556 = vadd.f32 %v2490, 0.001
      %v2557 = vadd.f32 %v2491, 0.001
      %v2558 = vadd.f32 %v2492, 0.001
      %v2559 = vadd.f32 %v2493, 0.001
      %v2560 = vadd.f32 %v2494, 0.001
      %v2561 = vadd.f32 %v2495, 0.001
      %v2562 = vadd.f32 %v2496, 0.001
      %v2563 = vadd.f32 %v2497, 0.001
      %v2564 = vadd.f32 %v2498, 0.001
      %v2565 = vadd.f32 %v2499, 0.001
      %v2566 = vadd.f32 %v2500, 0.001
      %v2567 = vadd.f32 %v2501, 0.001
      %v2568 = vadd.f32 %v2502, 0.001
      %v2569 = vadd.f32 %v2503, 0.001
      %v2570 = vadd.f32 %v2504, 0.001
      %v2571 = vadd.f32 %v2505, 0.001
      %v2572 = vadd.f32 %v2506, 0.001
      %v2573 = vadd.f32 %v2507, 0.001
      %v2574 = vadd.f32 %v2508, 0.001
      %v2575 = vadd.f32 %v2509, 0.001
      %v2576 = vadd.f32 %v2510, 0.001
      %v2577 = vadd.f32 %v2511, 0.001
      %v2578 = vadd.f32 %v2512, 0.001
      %v2579 = vadd.f32 %v2513, 0.001
      %v2580 = vadd.f32 %v2514, 0.001
      %v2581 = vadd.f32 %v2515, 0.001
      %v2582 = vadd.f32 %v2516, 0.001
      %v2583 = vadd.f32 %v2517, 0.001
      %v2584 = vadd.f32 %v2518, 0.001
      %v2585 = vadd.f32 %v2519, 0.001
      %v2586 = vadd.f32 %v2520, 0.001
      %v2587 = vadd.f32 %v2521, 0.001
      %v2588 = vadd.f32 %v2522, 0.001
      %v2589 = vadd.f32 %v2523, 0.001
      %v2590 = vadd.f32 %v2524, 0.001
      %v2591 = vadd.f32 %v2525, 0.001
      %v2592 = vadd.f32 %v2526, 0.001
      %v2593 = vadd.f32 %v2527, 0.001
      %v2594 = vadd.f32 %v2528, 0.001
      %v2595 = vadd.f32 %v2529, 0.001
      %v2596 = vadd.f32 %v2530, 0.001
      %v2597 = vadd.f32 %v2531, 0.001
      %v2598 = vadd.f32 %v2532, 0.001
      %v2599 = vrsqrt.pop %v2533
      %v2600 = vmul.f32 %v2599, %v2533
      %v2601 = vmul.f32 %v2600, %v2599
      %v2602 = vmul.f32 0.5, %v2601
      %v2603 = vsub.f32 1.5, %v2602
      %v2604 = vmul.f32 %v2599, %v2603
      %vm2605 = vweird.f32 %v2533
      %vm2606 = vweird.f32 %v2599
      %vm2607 = vmor %vm2605, %vm2606
      %v2608 = vsel %vm2607, %v2599, %v2604
      %v2609 = vrsqrt.pop %v2534
      %v2610 = vmul.f32 %v2609, %v2534
      %v2611 = vmul.f32 %v2610, %v2609
      %v2612 = vmul.f32 0.5, %v2611
      %v2613 = vsub.f32 1.5, %v2612
      %v2614 = vmul.f32 %v2609, %v2613
      %vm2615 = vweird.f32 %v2534
      %vm2616 = vweird.f32 %v2609
      %vm2617 = vmor %vm2615, %vm2616
      %v2618 = vsel %vm2617, %v2609, %v2614
      %v2619 = vrsqrt.pop %v2535
      %v2620 = vmul.f32 %v2619, %v2535
      %v2621 = vmul.f32 %v2620, %v2619
      %v2622 = vmul.f32 0.5, %v2621
      %v2623 = vsub.f32 1.5, %v2622
      %v2624 = vmul.f32 %v2619, %v2623
      %vm2625 = vweird.f32 %v2535
      %vm2626 = vweird.f32 %v2619
      %vm2627 = vmor %vm2625, %vm2626
      %v2628 = vsel %vm2627, %v2619, %v2624
      %v2629 = vrsqrt.pop %v2536
      %v2630 = vmul.f32 %v2629, %v2536
      %v2631 = vmul.f32 %v2630, %v2629
      %v2632 = vmul.f32 0.5, %v2631
      %v2633 = vsub.f32 1.5, %v2632
      %v2634 = vmul.f32 %v2629, %v2633
      %vm2635 = vweird.f32 %v2536
      %vm2636 = vweird.f32 %v2629
      %vm2637 = vmor %vm2635, %vm2636
      %v2638 = vsel %vm2637, %v2629, %v2634
      %v2639 = vrsqrt.pop %v2537
      %v2640 = vmul.f32 %v2639, %v2537
      %v2641 = vmul.f32 %v2640, %v2639
      %v2642 = vmul.f32 0.5, %v2641
      %v2643 = vsub.f32 1.5, %v2642
      %v2644 = vmul.f32 %v2639, %v2643
      %vm2645 = vweird.f32 %v2537
      %vm2646 = vweird.f32 %v2639
      %vm2647 = vmor %vm2645, %vm2646
      %v2648 = vsel %vm2647, %v2639, %v2644
      %v2649 = vrsqrt.pop %v2538
      %v2650 = vmul.f32 %v2649, %v2538
      %v2651 = vmul.f32 %v2650, %v2649
      %v2652 = vmul.f32 0.5, %v2651
      %v2653 = vsub.f32 1.5, %v2652
      %v2654 = vmul.f32 %v2649, %v2653
      %vm2655 = vweird.f32 %v2538
      %vm2656 = vweird.f32 %v2649
      %vm2657 = vmor %vm2655, %vm2656
      %v2658 = vsel %vm2657, %v2649, %v2654
      %v2659 = vrsqrt.pop %v2539
      %v2660 = vmul.f32 %v2659, %v2539
      %v2661 = vmul.f32 %v2660, %v2659
      %v2662 = vmul.f32 0.5, %v2661
      %v2663 = vsub.f32 1.5, %v2662
      %v2664 = vmul.f32 %v2659, %v2663
      %vm2665 = vweird.f32 %v2539
      %vm2666 = vweird.f32 %v2659
      %vm2667 = vmor %vm2665, %vm2666
      %v2668 = vsel %vm2667, %v2659, %v2664
      %v2669 = vrsqrt.pop %v2540
      %v2670 = vmul.f32 %v2669, %v2540
      %v2671 = vmul.f32 %v2670, %v2669
      %v2672 = vmul.f32 0.5, %v2671
      %v2673 = vsub.f32 1.5, %v2672
      %v2674 = vmul.f32 %v2669, %v2673
      %vm2675 = vweird.f32 %v2540
      %vm2676 = vweird.f32 %v2669
      %vm2677 = vmor %vm2675, %vm2676
      %v2678 = vsel %vm2677, %v2669, %v2674
      %v2679 = vrsqrt.pop %v2541
      %v2680 = vmul.f32 %v2679, %v2541
      %v2681 = vmul.f32 %v2680, %v2679
      %v2682 = vmul.f32 0.5, %v2681
      %v2683 = vsub.f32 1.5, %v2682
      %v2684 = vmul.f32 %v2679, %v2683
      %vm2685 = vweird.f32 %v2541
      %vm2686 = vweird.f32 %v2679
      %vm2687 = vmor %vm2685, %vm2686
      %v2688 = vsel %vm2687, %v2679, %v2684
      %v2689 = vrsqrt.pop %v2542
      %v2690 = vmul.f32 %v2689, %v2542
      %v2691 = vmul.f32 %v2690, %v2689
      %v2692 = vmul.f32 0.5, %v2691
      %v2693 = vsub.f32 1.5, %v2692
      %v2694 = vmul.f32 %v2689, %v2693
      %vm2695 = vweird.f32 %v2542
      %vm2696 = vweird.f32 %v2689
      %vm2697 = vmor %vm2695, %vm2696
      %v2698 = vsel %vm2697, %v2689, %v2694
      %v2699 = vrsqrt.pop %v2543
      %v2700 = vmul.f32 %v2699, %v2543
      %v2701 = vmul.f32 %v2700, %v2699
      %v2702 = vmul.f32 0.5, %v2701
      %v2703 = vsub.f32 1.5, %v2702
      %v2704 = vmul.f32 %v2699, %v2703
      %vm2705 = vweird.f32 %v2543
      %vm2706 = vweird.f32 %v2699
      %vm2707 = vmor %vm2705, %vm2706
      %v2708 = vsel %vm2707, %v2699, %v2704
      %v2709 = vrsqrt.pop %v2544
      %v2710 = vmul.f32 %v2709, %v2544
      %v2711 = vmul.f32 %v2710, %v2709
      %v2712 = vmul.f32 0.5, %v2711
      %v2713 = vsub.f32 1.5, %v2712
      %v2714 = vmul.f32 %v2709, %v2713
      %vm2715 = vweird.f32 %v2544
      %vm2716 = vweird.f32 %v2709
      %vm2717 = vmor %vm2715, %vm2716
      %v2718 = vsel %vm2717, %v2709, %v2714
      %v2719 = vrsqrt.pop %v2545
      %v2720 = vmul.f32 %v2719, %v2545
      %v2721 = vmul.f32 %v2720, %v2719
      %v2722 = vmul.f32 0.5, %v2721
      %v2723 = vsub.f32 1.5, %v2722
      %v2724 = vmul.f32 %v2719, %v2723
      %vm2725 = vweird.f32 %v2545
      %vm2726 = vweird.f32 %v2719
      %vm2727 = vmor %vm2725, %vm2726
      %v2728 = vsel %vm2727, %v2719, %v2724
      %v2729 = vrsqrt.pop %v2546
      %v2730 = vmul.f32 %v2729, %v2546
      %v2731 = vmul.f32 %v2730, %v2729
      %v2732 = vmul.f32 0.5, %v2731
      %v2733 = vsub.f32 1.5, %v2732
      %v2734 = vmul.f32 %v2729, %v2733
      %vm2735 = vweird.f32 %v2546
      %vm2736 = vweird.f32 %v2729
      %vm2737 = vmor %vm2735, %vm2736
      %v2738 = vsel %vm2737, %v2729, %v2734
      %v2739 = vrsqrt.pop %v2547
      %v2740 = vmul.f32 %v2739, %v2547
      %v2741 = vmul.f32 %v2740, %v2739
      %v2742 = vmul.f32 0.5, %v2741
      %v2743 = vsub.f32 1.5, %v2742
      %v2744 = vmul.f32 %v2739, %v2743
      %vm2745 = vweird.f32 %v2547
      %vm2746 = vweird.f32 %v2739
      %vm2747 = vmor %vm2745, %vm2746
      %v2748 = vsel %vm2747, %v2739, %v2744
      %v2749 = vrsqrt.pop %v2548
      %v2750 = vmul.f32 %v2749, %v2548
      %v2751 = vmul.f32 %v2750, %v2749
      %v2752 = vmul.f32 0.5, %v2751
      %v2753 = vsub.f32 1.5, %v2752
      %v2754 = vmul.f32 %v2749, %v2753
      %vm2755 = vweird.f32 %v2548
      %vm2756 = vweird.f32 %v2749
      %vm2757 = vmor %vm2755, %vm2756
      %v2758 = vsel %vm2757, %v2749, %v2754
      %v2759 = vrsqrt.pop %v2549
      %v2760 = vmul.f32 %v2759, %v2549
      %v2761 = vmul.f32 %v2760, %v2759
      %v2762 = vmul.f32 0.5, %v2761
      %v2763 = vsub.f32 1.5, %v2762
      %v2764 = vmul.f32 %v2759, %v2763
      %vm2765 = vweird.f32 %v2549
      %vm2766 = vweird.f32 %v2759
      %vm2767 = vmor %vm2765, %vm2766
      %v2768 = vsel %vm2767, %v2759, %v2764
      %v2769 = vrsqrt.pop %v2550
      %v2770 = vmul.f32 %v2769, %v2550
      %v2771 = vmul.f32 %v2770, %v2769
      %v2772 = vmul.f32 0.5, %v2771
      %v2773 = vsub.f32 1.5, %v2772
      %v2774 = vmul.f32 %v2769, %v2773
      %vm2775 = vweird.f32 %v2550
      %vm2776 = vweird.f32 %v2769
      %vm2777 = vmor %vm2775, %vm2776
      %v2778 = vsel %vm2777, %v2769, %v2774
      %v2779 = vrsqrt.pop %v2551
      %v2780 = vmul.f32 %v2779, %v2551
      %v2781 = vmul.f32 %v2780, %v2779
      %v2782 = vmul.f32 0.5, %v2781
      %v2783 = vsub.f32 1.5, %v2782
      %v2784 = vmul.f32 %v2779, %v2783
      %vm2785 = vweird.f32 %v2551
      %vm2786 = vweird.f32 %v2779
      %vm2787 = vmor %vm2785, %vm2786
      %v2788 = vsel %vm2787, %v2779, %v2784
      %v2789 = vrsqrt.pop %v2552
      %v2790 = vmul.f32 %v2789, %v2552
      %v2791 = vmul.f32 %v2790, %v2789
      %v2792 = vmul.f32 0.5, %v2791
      %v2793 = vsub.f32 1.5, %v2792
      %v2794 = vmul.f32 %v2789, %v2793
      %vm2795 = vweird.f32 %v2552
      %vm2796 = vweird.f32 %v2789
      %vm2797 = vmor %vm2795, %vm2796
      %v2798 = vsel %vm2797, %v2789, %v2794
      %v2799 = vrsqrt.pop %v2553
      %v2800 = vmul.f32 %v2799, %v2553
      %v2801 = vmul.f32 %v2800, %v2799
      %v2802 = vmul.f32 0.5, %v2801
      %v2803 = vsub.f32 1.5, %v2802
      %v2804 = vmul.f32 %v2799, %v2803
      %vm2805 = vweird.f32 %v2553
      %vm2806 = vweird.f32 %v2799
      %vm2807 = vmor %vm2805, %vm2806
      %v2808 = vsel %vm2807, %v2799, %v2804
      %v2809 = vrsqrt.pop %v2554
      %v2810 = vmul.f32 %v2809, %v2554
      %v2811 = vmul.f32 %v2810, %v2809
      %v2812 = vmul.f32 0.5, %v2811
      %v2813 = vsub.f32 1.5, %v2812
      %v2814 = vmul.f32 %v2809, %v2813
      %vm2815 = vweird.f32 %v2554
      %vm2816 = vweird.f32 %v2809
      %vm2817 = vmor %vm2815, %vm2816
      %v2818 = vsel %vm2817, %v2809, %v2814
      %v2819 = vrsqrt.pop %v2555
      %v2820 = vmul.f32 %v2819, %v2555
      %v2821 = vmul.f32 %v2820, %v2819
      %v2822 = vmul.f32 0.5, %v2821
      %v2823 = vsub.f32 1.5, %v2822
      %v2824 = vmul.f32 %v2819, %v2823
      %vm2825 = vweird.f32 %v2555
      %vm2826 = vweird.f32 %v2819
      %vm2827 = vmor %vm2825, %vm2826
      %v2828 = vsel %vm2827, %v2819, %v2824
      %v2829 = vrsqrt.pop %v2556
      %v2830 = vmul.f32 %v2829, %v2556
      %v2831 = vmul.f32 %v2830, %v2829
      %v2832 = vmul.f32 0.5, %v2831
      %v2833 = vsub.f32 1.5, %v2832
      %v2834 = vmul.f32 %v2829, %v2833
      %vm2835 = vweird.f32 %v2556
      %vm2836 = vweird.f32 %v2829
      %vm2837 = vmor %vm2835, %vm2836
      %v2838 = vsel %vm2837, %v2829, %v2834
      %v2839 = vrsqrt.pop %v2557
      %v2840 = vmul.f32 %v2839, %v2557
      %v2841 = vmul.f32 %v2840, %v2839
      %v2842 = vmul.f32 0.5, %v2841
      %v2843 = vsub.f32 1.5, %v2842
      %v2844 = vmul.f32 %v2839, %v2843
      %vm2845 = vweird.f32 %v2557
      %vm2846 = vweird.f32 %v2839
      %vm2847 = vmor %vm2845, %vm2846
      %v2848 = vsel %vm2847, %v2839, %v2844
      %v2849 = vrsqrt.pop %v2558
      %v2850 = vmul.f32 %v2849, %v2558
      %v2851 = vmul.f32 %v2850, %v2849
      %v2852 = vmul.f32 0.5, %v2851
      %v2853 = vsub.f32 1.5, %v2852
      %v2854 = vmul.f32 %v2849, %v2853
      %vm2855 = vweird.f32 %v2558
      %vm2856 = vweird.f32 %v2849
      %vm2857 = vmor %vm2855, %vm2856
      %v2858 = vsel %vm2857, %v2849, %v2854
      %v2859 = vrsqrt.pop %v2559
      %v2860 = vmul.f32 %v2859, %v2559
      %v2861 = vmul.f32 %v2860, %v2859
      %v2862 = vmul.f32 0.5, %v2861
      %v2863 = vsub.f32 1.5, %v2862
      %v2864 = vmul.f32 %v2859, %v2863
      %vm2865 = vweird.f32 %v2559
      %vm2866 = vweird.f32 %v2859
      %vm2867 = vmor %vm2865, %vm2866
      %v2868 = vsel %vm2867, %v2859, %v2864
      %v2869 = vrsqrt.pop %v2560
      %v2870 = vmul.f32 %v2869, %v2560
      %v2871 = vmul.f32 %v2870, %v2869
      %v2872 = vmul.f32 0.5, %v2871
      %v2873 = vsub.f32 1.5, %v2872
      %v2874 = vmul.f32 %v2869, %v2873
      %vm2875 = vweird.f32 %v2560
      %vm2876 = vweird.f32 %v2869
      %vm2877 = vmor %vm2875, %vm2876
      %v2878 = vsel %vm2877, %v2869, %v2874
      %v2879 = vrsqrt.pop %v2561
      %v2880 = vmul.f32 %v2879, %v2561
      %v2881 = vmul.f32 %v2880, %v2879
      %v2882 = vmul.f32 0.5, %v2881
      %v2883 = vsub.f32 1.5, %v2882
      %v2884 = vmul.f32 %v2879, %v2883
      %vm2885 = vweird.f32 %v2561
      %vm2886 = vweird.f32 %v2879
      %vm2887 = vmor %vm2885, %vm2886
      %v2888 = vsel %vm2887, %v2879, %v2884
      %v2889 = vrsqrt.pop %v2562
      %v2890 = vmul.f32 %v2889, %v2562
      %v2891 = vmul.f32 %v2890, %v2889
      %v2892 = vmul.f32 0.5, %v2891
      %v2893 = vsub.f32 1.5, %v2892
      %v2894 = vmul.f32 %v2889, %v2893
      %vm2895 = vweird.f32 %v2562
      %vm2896 = vweird.f32 %v2889
      %vm2897 = vmor %vm2895, %vm2896
      %v2898 = vsel %vm2897, %v2889, %v2894
      %v2899 = vrsqrt.pop %v2563
      %v2900 = vmul.f32 %v2899, %v2563
      %v2901 = vmul.f32 %v2900, %v2899
      %v2902 = vmul.f32 0.5, %v2901
      %v2903 = vsub.f32 1.5, %v2902
      %v2904 = vmul.f32 %v2899, %v2903
      %vm2905 = vweird.f32 %v2563
      %vm2906 = vweird.f32 %v2899
      %vm2907 = vmor %vm2905, %vm2906
      %v2908 = vsel %vm2907, %v2899, %v2904
      %v2909 = vrsqrt.pop %v2564
      %v2910 = vmul.f32 %v2909, %v2564
      %v2911 = vmul.f32 %v2910, %v2909
      %v2912 = vmul.f32 0.5, %v2911
      %v2913 = vsub.f32 1.5, %v2912
      %v2914 = vmul.f32 %v2909, %v2913
      %vm2915 = vweird.f32 %v2564
      %vm2916 = vweird.f32 %v2909
      %vm2917 = vmor %vm2915, %vm2916
      %v2918 = vsel %vm2917, %v2909, %v2914
      %v2919 = vrsqrt.pop %v2565
      %v2920 = vmul.f32 %v2919, %v2565
      %v2921 = vmul.f32 %v2920, %v2919
      %v2922 = vmul.f32 0.5, %v2921
      %v2923 = vsub.f32 1.5, %v2922
      %v2924 = vmul.f32 %v2919, %v2923
      %vm2925 = vweird.f32 %v2565
      %vm2926 = vweird.f32 %v2919
      %vm2927 = vmor %vm2925, %vm2926
      %v2928 = vsel %vm2927, %v2919, %v2924
      %v2929 = vrsqrt.pop %v2566
      %v2930 = vmul.f32 %v2929, %v2566
      %v2931 = vmul.f32 %v2930, %v2929
      %v2932 = vmul.f32 0.5, %v2931
      %v2933 = vsub.f32 1.5, %v2932
      %v2934 = vmul.f32 %v2929, %v2933
      %vm2935 = vweird.f32 %v2566
      %vm2936 = vweird.f32 %v2929
      %vm2937 = vmor %vm2935, %vm2936
      %v2938 = vsel %vm2937, %v2929, %v2934
      %v2939 = vrsqrt.pop %v2567
      %v2940 = vmul.f32 %v2939, %v2567
      %v2941 = vmul.f32 %v2940, %v2939
      %v2942 = vmul.f32 0.5, %v2941
      %v2943 = vsub.f32 1.5, %v2942
      %v2944 = vmul.f32 %v2939, %v2943
      %vm2945 = vweird.f32 %v2567
      %vm2946 = vweird.f32 %v2939
      %vm2947 = vmor %vm2945, %vm2946
      %v2948 = vsel %vm2947, %v2939, %v2944
      %v2949 = vrsqrt.pop %v2568
      %v2950 = vmul.f32 %v2949, %v2568
      %v2951 = vmul.f32 %v2950, %v2949
      %v2952 = vmul.f32 0.5, %v2951
      %v2953 = vsub.f32 1.5, %v2952
      %v2954 = vmul.f32 %v2949, %v2953
      %vm2955 = vweird.f32 %v2568
      %vm2956 = vweird.f32 %v2949
      %vm2957 = vmor %vm2955, %vm2956
      %v2958 = vsel %vm2957, %v2949, %v2954
      %v2959 = vrsqrt.pop %v2569
      %v2960 = vmul.f32 %v2959, %v2569
      %v2961 = vmul.f32 %v2960, %v2959
      %v2962 = vmul.f32 0.5, %v2961
      %v2963 = vsub.f32 1.5, %v2962
      %v2964 = vmul.f32 %v2959, %v2963
      %vm2965 = vweird.f32 %v2569
      %vm2966 = vweird.f32 %v2959
      %vm2967 = vmor %vm2965, %vm2966
      %v2968 = vsel %vm2967, %v2959, %v2964
      %v2969 = vrsqrt.pop %v2570
      %v2970 = vmul.f32 %v2969, %v2570
      %v2971 = vmul.f32 %v2970, %v2969
      %v2972 = vmul.f32 0.5, %v2971
      %v2973 = vsub.f32 1.5, %v2972
      %v2974 = vmul.f32 %v2969, %v2973
      %vm2975 = vweird.f32 %v2570
      %vm2976 = vweird.f32 %v2969
      %vm2977 = vmor %vm2975, %vm2976
      %v2978 = vsel %vm2977, %v2969, %v2974
      %v2979 = vrsqrt.pop %v2571
      %v2980 = vmul.f32 %v2979, %v2571
      %v2981 = vmul.f32 %v2980, %v2979
      %v2982 = vmul.f32 0.5, %v2981
      %v2983 = vsub.f32 1.5, %v2982
      %v2984 = vmul.f32 %v2979, %v2983
      %vm2985 = vweird.f32 %v2571
      %vm2986 = vweird.f32 %v2979
      %vm2987 = vmor %vm2985, %vm2986
      %v2988 = vsel %vm2987, %v2979, %v2984
      %v2989 = vrsqrt.pop %v2572
      %v2990 = vmul.f32 %v2989, %v2572
      %v2991 = vmul.f32 %v2990, %v2989
      %v2992 = vmul.f32 0.5, %v2991
      %v2993 = vsub.f32 1.5, %v2992
      %v2994 = vmul.f32 %v2989, %v2993
      %vm2995 = vweird.f32 %v2572
      %vm2996 = vweird.f32 %v2989
      %vm2997 = vmor %vm2995, %vm2996
      %v2998 = vsel %vm2997, %v2989, %v2994
      %v2999 = vrsqrt.pop %v2573
      %v3000 = vmul.f32 %v2999, %v2573
      %v3001 = vmul.f32 %v3000, %v2999
      %v3002 = vmul.f32 0.5, %v3001
      %v3003 = vsub.f32 1.5, %v3002
      %v3004 = vmul.f32 %v2999, %v3003
      %vm3005 = vweird.f32 %v2573
      %vm3006 = vweird.f32 %v2999
      %vm3007 = vmor %vm3005, %vm3006
      %v3008 = vsel %vm3007, %v2999, %v3004
      %v3009 = vrsqrt.pop %v2574
      %v3010 = vmul.f32 %v3009, %v2574
      %v3011 = vmul.f32 %v3010, %v3009
      %v3012 = vmul.f32 0.5, %v3011
      %v3013 = vsub.f32 1.5, %v3012
      %v3014 = vmul.f32 %v3009, %v3013
      %vm3015 = vweird.f32 %v2574
      %vm3016 = vweird.f32 %v3009
      %vm3017 = vmor %vm3015, %vm3016
      %v3018 = vsel %vm3017, %v3009, %v3014
      %v3019 = vrsqrt.pop %v2575
      %v3020 = vmul.f32 %v3019, %v2575
      %v3021 = vmul.f32 %v3020, %v3019
      %v3022 = vmul.f32 0.5, %v3021
      %v3023 = vsub.f32 1.5, %v3022
      %v3024 = vmul.f32 %v3019, %v3023
      %vm3025 = vweird.f32 %v2575
      %vm3026 = vweird.f32 %v3019
      %vm3027 = vmor %vm3025, %vm3026
      %v3028 = vsel %vm3027, %v3019, %v3024
      %v3029 = vrsqrt.pop %v2576
      %v3030 = vmul.f32 %v3029, %v2576
      %v3031 = vmul.f32 %v3030, %v3029
      %v3032 = vmul.f32 0.5, %v3031
      %v3033 = vsub.f32 1.5, %v3032
      %v3034 = vmul.f32 %v3029, %v3033
      %vm3035 = vweird.f32 %v2576
      %vm3036 = vweird.f32 %v3029
      %vm3037 = vmor %vm3035, %vm3036
      %v3038 = vsel %vm3037, %v3029, %v3034
      %v3039 = vrsqrt.pop %v2577
      %v3040 = vmul.f32 %v3039, %v2577
      %v3041 = vmul.f32 %v3040, %v3039
      %v3042 = vmul.f32 0.5, %v3041
      %v3043 = vsub.f32 1.5, %v3042
      %v3044 = vmul.f32 %v3039, %v3043
      %vm3045 = vweird.f32 %v2577
      %vm3046 = vweird.f32 %v3039
      %vm3047 = vmor %vm3045, %vm3046
      %v3048 = vsel %vm3047, %v3039, %v3044
      %v3049 = vrsqrt.pop %v2578
      %v3050 = vmul.f32 %v3049, %v2578
      %v3051 = vmul.f32 %v3050, %v3049
      %v3052 = vmul.f32 0.5, %v3051
      %v3053 = vsub.f32 1.5, %v3052
      %v3054 = vmul.f32 %v3049, %v3053
      %vm3055 = vweird.f32 %v2578
      %vm3056 = vweird.f32 %v3049
      %vm3057 = vmor %vm3055, %vm3056
      %v3058 = vsel %vm3057, %v3049, %v3054
      %v3059 = vrsqrt.pop %v2579
      %v3060 = vmul.f32 %v3059, %v2579
      %v3061 = vmul.f32 %v3060, %v3059
      %v3062 = vmul.f32 0.5, %v3061
      %v3063 = vsub.f32 1.5, %v3062
      %v3064 = vmul.f32 %v3059, %v3063
      %vm3065 = vweird.f32 %v2579
      %vm3066 = vweird.f32 %v3059
      %vm3067 = vmor %vm3065, %vm3066
      %v3068 = vsel %vm3067, %v3059, %v3064
      %v3069 = vrsqrt.pop %v2580
      %v3070 = vmul.f32 %v3069, %v2580
      %v3071 = vmul.f32 %v3070, %v3069
      %v3072 = vmul.f32 0.5, %v3071
      %v3073 = vsub.f32 1.5, %v3072
      %v3074 = vmul.f32 %v3069, %v3073
      %vm3075 = vweird.f32 %v2580
      %vm3076 = vweird.f32 %v3069
      %vm3077 = vmor %vm3075, %vm3076
      %v3078 = vsel %vm3077, %v3069, %v3074
      %v3079 = vrsqrt.pop %v2581
      %v3080 = vmul.f32 %v3079, %v2581
      %v3081 = vmul.f32 %v3080, %v3079
      %v3082 = vmul.f32 0.5, %v3081
      %v3083 = vsub.f32 1.5, %v3082
      %v3084 = vmul.f32 %v3079, %v3083
      %vm3085 = vweird.f32 %v2581
      %vm3086 = vweird.f32 %v3079
      %vm3087 = vmor %vm3085, %vm3086
      %v3088 = vsel %vm3087, %v3079, %v3084
      %v3089 = vrsqrt.pop %v2582
      %v3090 = vmul.f32 %v3089, %v2582
      %v3091 = vmul.f32 %v3090, %v3089
      %v3092 = vmul.f32 0.5, %v3091
      %v3093 = vsub.f32 1.5, %v3092
      %v3094 = vmul.f32 %v3089, %v3093
      %vm3095 = vweird.f32 %v2582
      %vm3096 = vweird.f32 %v3089
      %vm3097 = vmor %vm3095, %vm3096
      %v3098 = vsel %vm3097, %v3089, %v3094
      %v3099 = vrsqrt.pop %v2583
      %v3100 = vmul.f32 %v3099, %v2583
      %v3101 = vmul.f32 %v3100, %v3099
      %v3102 = vmul.f32 0.5, %v3101
      %v3103 = vsub.f32 1.5, %v3102
      %v3104 = vmul.f32 %v3099, %v3103
      %vm3105 = vweird.f32 %v2583
      %vm3106 = vweird.f32 %v3099
      %vm3107 = vmor %vm3105, %vm3106
      %v3108 = vsel %vm3107, %v3099, %v3104
      %v3109 = vrsqrt.pop %v2584
      %v3110 = vmul.f32 %v3109, %v2584
      %v3111 = vmul.f32 %v3110, %v3109
      %v3112 = vmul.f32 0.5, %v3111
      %v3113 = vsub.f32 1.5, %v3112
      %v3114 = vmul.f32 %v3109, %v3113
      %vm3115 = vweird.f32 %v2584
      %vm3116 = vweird.f32 %v3109
      %vm3117 = vmor %vm3115, %vm3116
      %v3118 = vsel %vm3117, %v3109, %v3114
      %v3119 = vrsqrt.pop %v2585
      %v3120 = vmul.f32 %v3119, %v2585
      %v3121 = vmul.f32 %v3120, %v3119
      %v3122 = vmul.f32 0.5, %v3121
      %v3123 = vsub.f32 1.5, %v3122
      %v3124 = vmul.f32 %v3119, %v3123
      %vm3125 = vweird.f32 %v2585
      %vm3126 = vweird.f32 %v3119
      %vm3127 = vmor %vm3125, %vm3126
      %v3128 = vsel %vm3127, %v3119, %v3124
      %v3129 = vrsqrt.pop %v2586
      %v3130 = vmul.f32 %v3129, %v2586
      %v3131 = vmul.f32 %v3130, %v3129
      %v3132 = vmul.f32 0.5, %v3131
      %v3133 = vsub.f32 1.5, %v3132
      %v3134 = vmul.f32 %v3129, %v3133
      %vm3135 = vweird.f32 %v2586
      %vm3136 = vweird.f32 %v3129
      %vm3137 = vmor %vm3135, %vm3136
      %v3138 = vsel %vm3137, %v3129, %v3134
      %v3139 = vrsqrt.pop %v2587
      %v3140 = vmul.f32 %v3139, %v2587
      %v3141 = vmul.f32 %v3140, %v3139
      %v3142 = vmul.f32 0.5, %v3141
      %v3143 = vsub.f32 1.5, %v3142
      %v3144 = vmul.f32 %v3139, %v3143
      %vm3145 = vweird.f32 %v2587
      %vm3146 = vweird.f32 %v3139
      %vm3147 = vmor %vm3145, %vm3146
      %v3148 = vsel %vm3147, %v3139, %v3144
      %v3149 = vrsqrt.pop %v2588
      %v3150 = vmul.f32 %v3149, %v2588
      %v3151 = vmul.f32 %v3150, %v3149
      %v3152 = vmul.f32 0.5, %v3151
      %v3153 = vsub.f32 1.5, %v3152
      %v3154 = vmul.f32 %v3149, %v3153
      %vm3155 = vweird.f32 %v2588
      %vm3156 = vweird.f32 %v3149
      %vm3157 = vmor %vm3155, %vm3156
      %v3158 = vsel %vm3157, %v3149, %v3154
      %v3159 = vrsqrt.pop %v2589
      %v3160 = vmul.f32 %v3159, %v2589
      %v3161 = vmul.f32 %v3160, %v3159
      %v3162 = vmul.f32 0.5, %v3161
      %v3163 = vsub.f32 1.5, %v3162
      %v3164 = vmul.f32 %v3159, %v3163
      %vm3165 = vweird.f32 %v2589
      %vm3166 = vweird.f32 %v3159
      %vm3167 = vmor %vm3165, %vm3166
      %v3168 = vsel %vm3167, %v3159, %v3164
      %v3169 = vrsqrt.pop %v2590
      %v3170 = vmul.f32 %v3169, %v2590
      %v3171 = vmul.f32 %v3170, %v3169
      %v3172 = vmul.f32 0.5, %v3171
      %v3173 = vsub.f32 1.5, %v3172
      %v3174 = vmul.f32 %v3169, %v3173
      %vm3175 = vweird.f32 %v2590
      %vm3176 = vweird.f32 %v3169
      %vm3177 = vmor %vm3175, %vm3176
      %v3178 = vsel %vm3177, %v3169, %v3174
      %v3179 = vrsqrt.pop %v2591
      %v3180 = vmul.f32 %v3179, %v2591
      %v3181 = vmul.f32 %v3180, %v3179
      %v3182 = vmul.f32 0.5, %v3181
      %v3183 = vsub.f32 1.5, %v3182
      %v3184 = vmul.f32 %v3179, %v3183
      %vm3185 = vweird.f32 %v2591
      %vm3186 = vweird.f32 %v3179
      %vm3187 = vmor %vm3185, %vm3186
      %v3188 = vsel %vm3187, %v3179, %v3184
      %v3189 = vrsqrt.pop %v2592
      %v3190 = vmul.f32 %v3189, %v2592
      %v3191 = vmul.f32 %v3190, %v3189
      %v3192 = vmul.f32 0.5, %v3191
      %v3193 = vsub.f32 1.5, %v3192
      %v3194 = vmul.f32 %v3189, %v3193
      %vm3195 = vweird.f32 %v2592
      %vm3196 = vweird.f32 %v3189
      %vm3197 = vmor %vm3195, %vm3196
      %v3198 = vsel %vm3197, %v3189, %v3194
      %v3199 = vrsqrt.pop %v2593
      %v3200 = vmul.f32 %v3199, %v2593
      %v3201 = vmul.f32 %v3200, %v3199
      %v3202 = vmul.f32 0.5, %v3201
      %v3203 = vsub.f32 1.5, %v3202
      %v3204 = vmul.f32 %v3199, %v3203
      %vm3205 = vweird.f32 %v2593
      %vm3206 = vweird.f32 %v3199
      %vm3207 = vmor %vm3205, %vm3206
      %v3208 = vsel %vm3207, %v3199, %v3204
      %v3209 = vrsqrt.pop %v2594
      %v3210 = vmul.f32 %v3209, %v2594
      %v3211 = vmul.f32 %v3210, %v3209
      %v3212 = vmul.f32 0.5, %v3211
      %v3213 = vsub.f32 1.5, %v3212
      %v3214 = vmul.f32 %v3209, %v3213
      %vm3215 = vweird.f32 %v2594
      %vm3216 = vweird.f32 %v3209
      %vm3217 = vmor %vm3215, %vm3216
      %v3218 = vsel %vm3217, %v3209, %v3214
      %v3219 = vrsqrt.pop %v2595
      %v3220 = vmul.f32 %v3219, %v2595
      %v3221 = vmul.f32 %v3220, %v3219
      %v3222 = vmul.f32 0.5, %v3221
      %v3223 = vsub.f32 1.5, %v3222
      %v3224 = vmul.f32 %v3219, %v3223
      %vm3225 = vweird.f32 %v2595
      %vm3226 = vweird.f32 %v3219
      %vm3227 = vmor %vm3225, %vm3226
      %v3228 = vsel %vm3227, %v3219, %v3224
      %v3229 = vrsqrt.pop %v2596
      %v3230 = vmul.f32 %v3229, %v2596
      %v3231 = vmul.f32 %v3230, %v3229
      %v3232 = vmul.f32 0.5, %v3231
      %v3233 = vsub.f32 1.5, %v3232
      %v3234 = vmul.f32 %v3229, %v3233
      %vm3235 = vweird.f32 %v2596
      %vm3236 = vweird.f32 %v3229
      %vm3237 = vmor %vm3235, %vm3236
      %v3238 = vsel %vm3237, %v3229, %v3234
      %v3239 = vrsqrt.pop %v2597
      %v3240 = vmul.f32 %v3239, %v2597
      %v3241 = vmul.f32 %v3240, %v3239
      %v3242 = vmul.f32 0.5, %v3241
      %v3243 = vsub.f32 1.5, %v3242
      %v3244 = vmul.f32 %v3239, %v3243
      %vm3245 = vweird.f32 %v2597
      %vm3246 = vweird.f32 %v3239
      %vm3247 = vmor %vm3245, %vm3246
      %v3248 = vsel %vm3247, %v3239, %v3244
      %v3249 = vrsqrt.pop %v2598
      %v3250 = vmul.f32 %v3249, %v2598
      %v3251 = vmul.f32 %v3250, %v3249
      %v3252 = vmul.f32 0.5, %v3251
      %v3253 = vsub.f32 1.5, %v3252
      %v3254 = vmul.f32 %v3249, %v3253
      %vm3255 = vweird.f32 %v2598
      %vm3256 = vweird.f32 %v3249
      %vm3257 = vmor %vm3255, %vm3256
      %v3258 = vsel %vm3257, %v3249, %v3254
      %v3259 = vld [vmem:[%s219] sm:$0xff]
      %v3260 = vld [vmem:[%s219 + $0x8] sm:$0xff]
      %v3261 = vld [vmem:[%s219 + $0x10] sm:$0xff]
      %v3262 = vld [vmem:[%s219 + $0x18] sm:$0xff]
      %v3263 = vld [vmem:[%s219 + $0x20] sm:$0xff]
      %v3264 = vld [vmem:[%s219 + $0x28] sm:$0xff]
      %v3265 = vld [vmem:[%s219 + $0x30] sm:$0xff]
      %v3266 = vld [vmem:[%s219 + $0x38] sm:$0xff]
      %v3267 = vld [vmem:[%s219 + $0x40] sm:$0xff]
      %v3268 = vld [vmem:[%s219 + $0x48] sm:$0xff]
      %v3269 = vld [vmem:[%s219 + $0x50] sm:$0xff]
      %v3270 = vld [vmem:[%s219 + $0x58] sm:$0xff]
      %v3271 = vld [vmem:[%s219 + $0x60] sm:$0xff]
      %v3272 = vld [vmem:[%s219 + $0x68] sm:$0xff]
      %v3273 = vld [vmem:[%s219 + $0x70] sm:$0xff]
      %v3274 = vld [vmem:[%s219 + $0x78] sm:$0xff]
      %v3275 = vld [vmem:[%s219 + $0x80] sm:$0xff]
      %v3276 = vld [vmem:[%s219 + $0x88] sm:$0xff]
      %v3277 = vld [vmem:[%s219 + $0x90] sm:$0xff]
      %v3278 = vld [vmem:[%s219 + $0x98] sm:$0xff]
      %v3279 = vld [vmem:[%s219 + $0xa0] sm:$0xff]
      %v3280 = vld [vmem:[%s219 + $0xa8] sm:$0xff]
      %v3281 = vld [vmem:[%s219 + $0xb0] sm:$0xff]
      %v3282 = vld [vmem:[%s219 + $0xb8] sm:$0xff]
      %v3283 = vld [vmem:[%s219 + $0xc0] sm:$0xff]
      %v3284 = vld [vmem:[%s219 + $0xc8] sm:$0xff]
      %v3285 = vld [vmem:[%s219 + $0xd0] sm:$0xff]
      %v3286 = vld [vmem:[%s219 + $0xd8] sm:$0xff]
      %v3287 = vld [vmem:[%s219 + $0xe0] sm:$0xff]
      %v3288 = vld [vmem:[%s219 + $0xe8] sm:$0xff]
      %v3289 = vld [vmem:[%s219 + $0xf0] sm:$0xff]
      %v3290 = vld [vmem:[%s219 + $0xf8] sm:$0xff]
      %v3291 = vld [vmem:[%s219 + $0x100] sm:$0xff]
      %v3292 = vld [vmem:[%s219 + $0x108] sm:$0xff]
      %v3293 = vld [vmem:[%s219 + $0x110] sm:$0xff]
      %v3294 = vld [vmem:[%s219 + $0x118] sm:$0xff]
      %v3295 = vld [vmem:[%s219 + $0x120] sm:$0xff]
      %v3296 = vld [vmem:[%s219 + $0x128] sm:$0xff]
      %v3297 = vld [vmem:[%s219 + $0x130] sm:$0xff]
      %v3298 = vld [vmem:[%s219 + $0x138] sm:$0xff]
      %v3299 = vld [vmem:[%s219 + $0x140] sm:$0xff]
      %v3300 = vld [vmem:[%s219 + $0x148] sm:$0xff]
      %v3301 = vld [vmem:[%s219 + $0x150] sm:$0xff]
      %v3302 = vld [vmem:[%s219 + $0x158] sm:$0xff]
      %v3303 = vld [vmem:[%s219 + $0x160] sm:$0xff]
      %v3304 = vld [vmem:[%s219 + $0x168] sm:$0xff]
      %v3305 = vld [vmem:[%s219 + $0x170] sm:$0xff]
      %v3306 = vld [vmem:[%s219 + $0x178] sm:$0xff]
      %v3307 = vld [vmem:[%s219 + $0x180] sm:$0xff]
      %v3308 = vld [vmem:[%s219 + $0x188] sm:$0xff]
      %v3309 = vld [vmem:[%s219 + $0x190] sm:$0xff]
      %v3310 = vld [vmem:[%s219 + $0x198] sm:$0xff]
      %v3311 = vld [vmem:[%s219 + $0x1a0] sm:$0xff]
      %v3312 = vld [vmem:[%s219 + $0x1a8] sm:$0xff]
      %v3313 = vld [vmem:[%s219 + $0x1b0] sm:$0xff]
      %v3314 = vld [vmem:[%s219 + $0x1b8] sm:$0xff]
      %v3315 = vld [vmem:[%s219 + $0x1c0] sm:$0xff]
      %v3316 = vld [vmem:[%s219 + $0x1c8] sm:$0xff]
      %v3317 = vld [vmem:[%s219 + $0x1d0] sm:$0xff]
      %v3318 = vld [vmem:[%s219 + $0x1d8] sm:$0xff]
      %v3319 = vld [vmem:[%s219 + $0x1e0] sm:$0xff]
      %v3320 = vld [vmem:[%s219 + $0x1e8] sm:$0xff]
      %v3321 = vld [vmem:[%s219 + $0x1f0] sm:$0xff]
      %v3322 = vld [vmem:[%s219 + $0x1f8] sm:$0xff]
      %v3323 = vld [vmem:[%s219 + $0x200] sm:$0xff]
      %v3324 = vld [vmem:[%s219 + $0x208] sm:$0xff]
      %v3325 = vmul.f32 %v3259, %v2608
      %v3326 = vmul.f32 %v3260, %v2618
      %v3327 = vmul.f32 %v3261, %v2628
      %v3328 = vmul.f32 %v3262, %v2638
      %v3329 = vmul.f32 %v3263, %v2648
      %v3330 = vmul.f32 %v3264, %v2658
      %v3331 = vmul.f32 %v3265, %v2668
      %v3332 = vmul.f32 %v3266, %v2678
      %v3333 = vmul.f32 %v3267, %v2688
      %v3334 = vmul.f32 %v3268, %v2698
      %v3335 = vmul.f32 %v3269, %v2708
      %v3336 = vmul.f32 %v3270, %v2718
      %v3337 = vmul.f32 %v3271, %v2728
      %v3338 = vmul.f32 %v3272, %v2738
      %v3339 = vmul.f32 %v3273, %v2748
      %v3340 = vmul.f32 %v3274, %v2758
      %v3341 = vmul.f32 %v3275, %v2768
      %v3342 = vmul.f32 %v3276, %v2778
      %v3343 = vmul.f32 %v3277, %v2788
      %v3344 = vmul.f32 %v3278, %v2798
      %v3345 = vmul.f32 %v3279, %v2808
      %v3346 = vmul.f32 %v3280, %v2818
      %v3347 = vmul.f32 %v3281, %v2828
      %v3348 = vmul.f32 %v3282, %v2838
      %v3349 = vmul.f32 %v3283, %v2848
      %v3350 = vmul.f32 %v3284, %v2858
      %v3351 = vmul.f32 %v3285, %v2868
      %v3352 = vmul.f32 %v3286, %v2878
      %v3353 = vmul.f32 %v3287, %v2888
      %v3354 = vmul.f32 %v3288, %v2898
      %v3355 = vmul.f32 %v3289, %v2908
      %v3356 = vmul.f32 %v3290, %v2918
      %v3357 = vmul.f32 %v3291, %v2928
      %v3358 = vmul.f32 %v3292, %v2938
      %v3359 = vmul.f32 %v3293, %v2948
      %v3360 = vmul.f32 %v3294, %v2958
      %v3361 = vmul.f32 %v3295, %v2968
      %v3362 = vmul.f32 %v3296, %v2978
      %v3363 = vmul.f32 %v3297, %v2988
      %v3364 = vmul.f32 %v3298, %v2998
      %v3365 = vmul.f32 %v3299, %v3008
      %v3366 = vmul.f32 %v3300, %v3018
      %v3367 = vmul.f32 %v3301, %v3028
      %v3368 = vmul.f32 %v3302, %v3038
      %v3369 = vmul.f32 %v3303, %v3048
      %v3370 = vmul.f32 %v3304, %v3058
      %v3371 = vmul.f32 %v3305, %v3068
      %v3372 = vmul.f32 %v3306, %v3078
      %v3373 = vmul.f32 %v3307, %v3088
      %v3374 = vmul.f32 %v3308, %v3098
      %v3375 = vmul.f32 %v3309, %v3108
      %v3376 = vmul.f32 %v3310, %v3118
      %v3377 = vmul.f32 %v3311, %v3128
      %v3378 = vmul.f32 %v3312, %v3138
      %v3379 = vmul.f32 %v3313, %v3148
      %v3380 = vmul.f32 %v3314, %v3158
      %v3381 = vmul.f32 %v3315, %v3168
      %v3382 = vmul.f32 %v3316, %v3178
      %v3383 = vmul.f32 %v3317, %v3188
      %v3384 = vmul.f32 %v3318, %v3198
      %v3385 = vmul.f32 %v3319, %v3208
      %v3386 = vmul.f32 %v3320, %v3218
      %v3387 = vmul.f32 %v3321, %v3228
      %v3388 = vmul.f32 %v3322, %v3238
      %v3389 = vmul.f32 %v3323, %v3248
      %v3390 = vmul.f32 %v3324, %v3258
      %v3391 = vmul.f32 %v2203, %v3325
      %v3392 = vmul.f32 %v2204, %v3326
      %v3393 = vmul.f32 %v2205, %v3327
      %v3394 = vmul.f32 %v2206, %v3328
      %v3395 = vmul.f32 %v2207, %v3329
      %v3396 = vmul.f32 %v2208, %v3330
      %v3397 = vmul.f32 %v2209, %v3331
      %v3398 = vmul.f32 %v2210, %v3332
      %v3399 = vmul.f32 %v2211, %v3333
      %v3400 = vmul.f32 %v2212, %v3334
      %v3401 = vmul.f32 %v2213, %v3335
      %v3402 = vmul.f32 %v2214, %v3336
      %v3403 = vmul.f32 %v2215, %v3337
      %v3404 = vmul.f32 %v2216, %v3338
      %v3405 = vmul.f32 %v2217, %v3339
      %v3406 = vmul.f32 %v2218, %v3340
      %v3407 = vmul.f32 %v2219, %v3341
      %v3408 = vmul.f32 %v2220, %v3342
      %v3409 = vmul.f32 %v2221, %v3343
      %v3410 = vmul.f32 %v2222, %v3344
      %v3411 = vmul.f32 %v2223, %v3345
      %v3412 = vmul.f32 %v2224, %v3346
      %v3413 = vmul.f32 %v2225, %v3347
      %v3414 = vmul.f32 %v2226, %v3348
      %v3415 = vmul.f32 %v2227, %v3349
      %v3416 = vmul.f32 %v2228, %v3350
      %v3417 = vmul.f32 %v2229, %v3351
      %v3418 = vmul.f32 %v2230, %v3352
      %v3419 = vmul.f32 %v2231, %v3353
      %v3420 = vmul.f32 %v2232, %v3354
      %v3421 = vmul.f32 %v2233, %v3355
      %v3422 = vmul.f32 %v2234, %v3356
      %v3423 = vmul.f32 %v2235, %v3357
      %v3424 = vmul.f32 %v2236, %v3358
      %v3425 = vmul.f32 %v2237, %v3359
      %v3426 = vmul.f32 %v2238, %v3360
      %v3427 = vmul.f32 %v2239, %v3361
      %v3428 = vmul.f32 %v2240, %v3362
      %v3429 = vmul.f32 %v2241, %v3363
      %v3430 = vmul.f32 %v2242, %v3364
      %v3431 = vmul.f32 %v2243, %v3365
      %v3432 = vmul.f32 %v2244, %v3366
      %v3433 = vmul.f32 %v2245, %v3367
      %v3434 = vmul.f32 %v2246, %v3368
      %v3435 = vmul.f32 %v2247, %v3369
      %v3436 = vmul.f32 %v2248, %v3370
      %v3437 = vmul.f32 %v2249, %v3371
      %v3438 = vmul.f32 %v2250, %v3372
      %v3439 = vmul.f32 %v2251, %v3373
      %v3440 = vmul.f32 %v2252, %v3374
      %v3441 = vmul.f32 %v2253, %v3375
      %v3442 = vmul.f32 %v2254, %v3376
      %v3443 = vmul.f32 %v2255, %v3377
      %v3444 = vmul.f32 %v2256, %v3378
      %v3445 = vmul.f32 %v2257, %v3379
      %v3446 = vmul.f32 %v2258, %v3380
      %v3447 = vmul.f32 %v2259, %v3381
      %v3448 = vmul.f32 %v2260, %v3382
      %v3449 = vmul.f32 %v2261, %v3383
      %v3450 = vmul.f32 %v2262, %v3384
      %v3451 = vmul.f32 %v2263, %v3385
      %v3452 = vmul.f32 %v2264, %v3386
      %v3453 = vmul.f32 %v2265, %v3387
      %v3454 = vmul.f32 %v2266, %v3388
      %v3455 = vmul.f32 %v2267, %v3389
      %v3456 = vmul.f32 %v2268, %v3390
      %3523 = vrot.lane.b32.xlu0 %v3391, 1
      %v3524 = vpop.permute.xlu0 %3523
      %3525 = vrot.lane.b32.xlu0 %v3392, 1
      %v3526 = vpop.permute.xlu0 %3525
      %3527 = vrot.lane.b32.xlu0 %v3393, 1
      %v3528 = vpop.permute.xlu0 %3527
      %3529 = vrot.lane.b32.xlu0 %v3394, 1
      %v3530 = vpop.permute.xlu0 %3529
      %3531 = vrot.lane.b32.xlu0 %v3395, 1
      %v3532 = vpop.permute.xlu0 %3531
      %3533 = vrot.lane.b32.xlu0 %v3396, 1
      %v3534 = vpop.permute.xlu0 %3533
      %3535 = vrot.lane.b32.xlu0 %v3397, 1
      %v3536 = vpop.permute.xlu0 %3535
      %3537 = vrot.lane.b32.xlu0 %v3398, 1
      %v3538 = vpop.permute.xlu0 %3537
      %3539 = vrot.lane.b32.xlu0 %v3399, 1
      %v3540 = vpop.permute.xlu0 %3539
      %3541 = vrot.lane.b32.xlu0 %v3400, 1
      %v3542 = vpop.permute.xlu0 %3541
      %3543 = vrot.lane.b32.xlu0 %v3401, 1
      %v3544 = vpop.permute.xlu0 %3543
      %3545 = vrot.lane.b32.xlu0 %v3402, 1
      %v3546 = vpop.permute.xlu0 %3545
      %3547 = vrot.lane.b32.xlu0 %v3403, 1
      %v3548 = vpop.permute.xlu0 %3547
      %3549 = vrot.lane.b32.xlu0 %v3404, 1
      %v3550 = vpop.permute.xlu0 %3549
      %3551 = vrot.lane.b32.xlu0 %v3405, 1
      %v3552 = vpop.permute.xlu0 %3551
      %3553 = vrot.lane.b32.xlu0 %v3406, 1
      %v3554 = vpop.permute.xlu0 %3553
      %3555 = vrot.lane.b32.xlu0 %v3407, 1
      %v3556 = vpop.permute.xlu0 %3555
      %3557 = vrot.lane.b32.xlu0 %v3408, 1
      %v3558 = vpop.permute.xlu0 %3557
      %3559 = vrot.lane.b32.xlu0 %v3409, 1
      %v3560 = vpop.permute.xlu0 %3559
      %3561 = vrot.lane.b32.xlu0 %v3410, 1
      %v3562 = vpop.permute.xlu0 %3561
      %3563 = vrot.lane.b32.xlu0 %v3411, 1
      %v3564 = vpop.permute.xlu0 %3563
      %3565 = vrot.lane.b32.xlu0 %v3412, 1
      %v3566 = vpop.permute.xlu0 %3565
      %3567 = vrot.lane.b32.xlu0 %v3413, 1
      %v3568 = vpop.permute.xlu0 %3567
      %3569 = vrot.lane.b32.xlu0 %v3414, 1
      %v3570 = vpop.permute.xlu0 %3569
      %3571 = vrot.lane.b32.xlu0 %v3415, 1
      %v3572 = vpop.permute.xlu0 %3571
      %3573 = vrot.lane.b32.xlu0 %v3416, 1
      %v3574 = vpop.permute.xlu0 %3573
      %3575 = vrot.lane.b32.xlu0 %v3417, 1
      %v3576 = vpop.permute.xlu0 %3575
      %3577 = vrot.lane.b32.xlu0 %v3418, 1
      %v3578 = vpop.permute.xlu0 %3577
      %3579 = vrot.lane.b32.xlu0 %v3419, 1
      %v3580 = vpop.permute.xlu0 %3579
      %3581 = vrot.lane.b32.xlu0 %v3420, 1
      %v3582 = vpop.permute.xlu0 %3581
      %3583 = vrot.lane.b32.xlu0 %v3421, 1
      %v3584 = vpop.permute.xlu0 %3583
      %3585 = vrot.lane.b32.xlu0 %v3422, 1
      %v3586 = vpop.permute.xlu0 %3585
      %3587 = vrot.lane.b32.xlu0 %v3423, 1
      %v3588 = vpop.permute.xlu0 %3587
      %3589 = vrot.lane.b32.xlu0 %v3424, 1
      %v3590 = vpop.permute.xlu0 %3589
      %3591 = vrot.lane.b32.xlu0 %v3425, 1
      %v3592 = vpop.permute.xlu0 %3591
      %3593 = vrot.lane.b32.xlu0 %v3426, 1
      %v3594 = vpop.permute.xlu0 %3593
      %3595 = vrot.lane.b32.xlu0 %v3427, 1
      %v3596 = vpop.permute.xlu0 %3595
      %3597 = vrot.lane.b32.xlu0 %v3428, 1
      %v3598 = vpop.permute.xlu0 %3597
      %3599 = vrot.lane.b32.xlu0 %v3429, 1
      %v3600 = vpop.permute.xlu0 %3599
      %3601 = vrot.lane.b32.xlu0 %v3430, 1
      %v3602 = vpop.permute.xlu0 %3601
      %3603 = vrot.lane.b32.xlu0 %v3431, 1
      %v3604 = vpop.permute.xlu0 %3603
      %3605 = vrot.lane.b32.xlu0 %v3432, 1
      %v3606 = vpop.permute.xlu0 %3605
      %3607 = vrot.lane.b32.xlu0 %v3433, 1
      %v3608 = vpop.permute.xlu0 %3607
      %3609 = vrot.lane.b32.xlu0 %v3434, 1
      %v3610 = vpop.permute.xlu0 %3609
      %3611 = vrot.lane.b32.xlu0 %v3435, 1
      %v3612 = vpop.permute.xlu0 %3611
      %3613 = vrot.lane.b32.xlu0 %v3436, 1
      %v3614 = vpop.permute.xlu0 %3613
      %3615 = vrot.lane.b32.xlu0 %v3437, 1
      %v3616 = vpop.permute.xlu0 %3615
      %3617 = vrot.lane.b32.xlu0 %v3438, 1
      %v3618 = vpop.permute.xlu0 %3617
      %3619 = vrot.lane.b32.xlu0 %v3439, 1
      %v3620 = vpop.permute.xlu0 %3619
      %3621 = vrot.lane.b32.xlu0 %v3440, 1
      %v3622 = vpop.permute.xlu0 %3621
      %3623 = vrot.lane.b32.xlu0 %v3441, 1
      %v3624 = vpop.permute.xlu0 %3623
      %3625 = vrot.lane.b32.xlu0 %v3442, 1
      %v3626 = vpop.permute.xlu0 %3625
      %3627 = vrot.lane.b32.xlu0 %v3443, 1
      %v3628 = vpop.permute.xlu0 %3627
      %3629 = vrot.lane.b32.xlu0 %v3444, 1
      %v3630 = vpop.permute.xlu0 %3629
      %3631 = vrot.lane.b32.xlu0 %v3445, 1
      %v3632 = vpop.permute.xlu0 %3631
      %3633 = vrot.lane.b32.xlu0 %v3446, 1
      %v3634 = vpop.permute.xlu0 %3633
      %3635 = vrot.lane.b32.xlu0 %v3447, 1
      %v3636 = vpop.permute.xlu0 %3635
      %3637 = vrot.lane.b32.xlu0 %v3448, 1
      %v3638 = vpop.permute.xlu0 %3637
      %3639 = vrot.lane.b32.xlu0 %v3449, 1
      %v3640 = vpop.permute.xlu0 %3639
      %3641 = vrot.lane.b32.xlu0 %v3450, 1
      %v3642 = vpop.permute.xlu0 %3641
      %3643 = vrot.lane.b32.xlu0 %v3451, 1
      %v3644 = vpop.permute.xlu0 %3643
      %3645 = vrot.lane.b32.xlu0 %v3452, 1
      %v3646 = vpop.permute.xlu0 %3645
      %3647 = vrot.lane.b32.xlu0 %v3453, 1
      %v3648 = vpop.permute.xlu0 %3647
      %3649 = vrot.lane.b32.xlu0 %v3454, 1
      %v3650 = vpop.permute.xlu0 %3649
      %3651 = vrot.lane.b32.xlu0 %v3455, 1
      %v3652 = vpop.permute.xlu0 %3651
      %3653 = vrot.lane.b32.xlu0 %v3456, 1
      %v3654 = vpop.permute.xlu0 %3653
      %v3721 = vsub.f32 %v3259, %v3524
      %v3722 = vsub.f32 %v3260, %v3526
      %v3723 = vsub.f32 %v3261, %v3528
      %v3724 = vsub.f32 %v3262, %v3530
      %v3725 = vsub.f32 %v3263, %v3532
      %v3726 = vsub.f32 %v3264, %v3534
      %v3727 = vsub.f32 %v3265, %v3536
      %v3728 = vsub.f32 %v3266, %v3538
      %v3729 = vsub.f32 %v3267, %v3540
      %v3730 = vsub.f32 %v3268, %v3542
      %v3731 = vsub.f32 %v3269, %v3544
      %v3732 = vsub.f32 %v3270, %v3546
      %v3733 = vsub.f32 %v3271, %v3548
      %v3734 = vsub.f32 %v3272, %v3550
      %v3735 = vsub.f32 %v3273, %v3552
      %v3736 = vsub.f32 %v3274, %v3554
      %v3737 = vsub.f32 %v3275, %v3556
      %v3738 = vsub.f32 %v3276, %v3558
      %v3739 = vsub.f32 %v3277, %v3560
      %v3740 = vsub.f32 %v3278, %v3562
      %v3741 = vsub.f32 %v3279, %v3564
      %v3742 = vsub.f32 %v3280, %v3566
      %v3743 = vsub.f32 %v3281, %v3568
      %v3744 = vsub.f32 %v3282, %v3570
      %v3745 = vsub.f32 %v3283, %v3572
      %v3746 = vsub.f32 %v3284, %v3574
      %v3747 = vsub.f32 %v3285, %v3576
      %v3748 = vsub.f32 %v3286, %v3578
      %v3749 = vsub.f32 %v3287, %v3580
      %v3750 = vsub.f32 %v3288, %v3582
      %v3751 = vsub.f32 %v3289, %v3584
      %v3752 = vsub.f32 %v3290, %v3586
      %v3753 = vsub.f32 %v3291, %v3588
      %v3754 = vsub.f32 %v3292, %v3590
      %v3755 = vsub.f32 %v3293, %v3592
      %v3756 = vsub.f32 %v3294, %v3594
      %v3757 = vsub.f32 %v3295, %v3596
      %v3758 = vsub.f32 %v3296, %v3598
      %v3759 = vsub.f32 %v3297, %v3600
      %v3760 = vsub.f32 %v3298, %v3602
      %v3761 = vsub.f32 %v3299, %v3604
      %v3762 = vsub.f32 %v3300, %v3606
      %v3763 = vsub.f32 %v3301, %v3608
      %v3764 = vsub.f32 %v3302, %v3610
      %v3765 = vsub.f32 %v3303, %v3612
      %v3766 = vsub.f32 %v3304, %v3614
      %v3767 = vsub.f32 %v3305, %v3616
      %v3768 = vsub.f32 %v3306, %v3618
      %v3769 = vsub.f32 %v3307, %v3620
      %v3770 = vsub.f32 %v3308, %v3622
      %v3771 = vsub.f32 %v3309, %v3624
      %v3772 = vsub.f32 %v3310, %v3626
      %v3773 = vsub.f32 %v3311, %v3628
      %v3774 = vsub.f32 %v3312, %v3630
      %v3775 = vsub.f32 %v3313, %v3632
      %v3776 = vsub.f32 %v3314, %v3634
      %v3777 = vsub.f32 %v3315, %v3636
      %v3778 = vsub.f32 %v3316, %v3638
      %v3779 = vsub.f32 %v3317, %v3640
      %v3780 = vsub.f32 %v3318, %v3642
      %v3781 = vsub.f32 %v3319, %v3644
      %v3782 = vsub.f32 %v3320, %v3646
      %v3783 = vsub.f32 %v3321, %v3648
      %v3784 = vsub.f32 %v3322, %v3650
      %v3785 = vsub.f32 %v3323, %v3652
      %v3786 = vsub.f32 %v3324, %v3654
      %3788 = vset.pattern.permute.xlu0 0
      %3789 = vperm.xlu0 %3788, %v3325
      %v3790 = vpop.permute.xlu0 %3789
      %3793 = vset.pattern.permute.xlu0 0
      %3794 = vperm.xlu0 %3793, %v3326
      %v3795 = vpop.permute.xlu0 %3794
      %3798 = vset.pattern.permute.xlu0 0
      %3799 = vperm.xlu0 %3798, %v3327
      %v3800 = vpop.permute.xlu0 %3799
      %3803 = vset.pattern.permute.xlu0 0
      %3804 = vperm.xlu0 %3803, %v3328
      %v3805 = vpop.permute.xlu0 %3804
      %3808 = vset.pattern.permute.xlu0 0
      %3809 = vperm.xlu0 %3808, %v3329
      %v3810 = vpop.permute.xlu0 %3809
      %3813 = vset.pattern.permute.xlu0 0
      %3814 = vperm.xlu0 %3813, %v3330
      %v3815 = vpop.permute.xlu0 %3814
      %3818 = vset.pattern.permute.xlu0 0
      %3819 = vperm.xlu0 %3818, %v3331
      %v3820 = vpop.permute.xlu0 %3819
      %3823 = vset.pattern.permute.xlu0 0
      %3824 = vperm.xlu0 %3823, %v3332
      %v3825 = vpop.permute.xlu0 %3824
      %3828 = vset.pattern.permute.xlu0 0
      %3829 = vperm.xlu0 %3828, %v3333
      %v3830 = vpop.permute.xlu0 %3829
      %3833 = vset.pattern.permute.xlu0 0
      %3834 = vperm.xlu0 %3833, %v3334
      %v3835 = vpop.permute.xlu0 %3834
      %3838 = vset.pattern.permute.xlu0 0
      %3839 = vperm.xlu0 %3838, %v3335
      %v3840 = vpop.permute.xlu0 %3839
      %3843 = vset.pattern.permute.xlu0 0
      %3844 = vperm.xlu0 %3843, %v3336
      %v3845 = vpop.permute.xlu0 %3844
      %3848 = vset.pattern.permute.xlu0 0
      %3849 = vperm.xlu0 %3848, %v3337
      %v3850 = vpop.permute.xlu0 %3849
      %3853 = vset.pattern.permute.xlu0 0
      %3854 = vperm.xlu0 %3853, %v3338
      %v3855 = vpop.permute.xlu0 %3854
      %3858 = vset.pattern.permute.xlu0 0
      %3859 = vperm.xlu0 %3858, %v3339
      %v3860 = vpop.permute.xlu0 %3859
      %3863 = vset.pattern.permute.xlu0 0
      %3864 = vperm.xlu0 %3863, %v3340
      %v3865 = vpop.permute.xlu0 %3864
      %3868 = vset.pattern.permute.xlu0 0
      %3869 = vperm.xlu0 %3868, %v3341
      %v3870 = vpop.permute.xlu0 %3869
      %3873 = vset.pattern.permute.xlu0 0
      %3874 = vperm.xlu0 %3873, %v3342
      %v3875 = vpop.permute.xlu0 %3874
      %3878 = vset.pattern.permute.xlu0 0
      %3879 = vperm.xlu0 %3878, %v3343
      %v3880 = vpop.permute.xlu0 %3879
      %3883 = vset.pattern.permute.xlu0 0
      %3884 = vperm.xlu0 %3883, %v3344
      %v3885 = vpop.permute.xlu0 %3884
      %3888 = vset.pattern.permute.xlu0 0
      %3889 = vperm.xlu0 %3888, %v3345
      %v3890 = vpop.permute.xlu0 %3889
      %3893 = vset.pattern.permute.xlu0 0
      %3894 = vperm.xlu0 %3893, %v3346
      %v3895 = vpop.permute.xlu0 %3894
      %3898 = vset.pattern.permute.xlu0 0
      %3899 = vperm.xlu0 %3898, %v3347
      %v3900 = vpop.permute.xlu0 %3899
      %3903 = vset.pattern.permute.xlu0 0
      %3904 = vperm.xlu0 %3903, %v3348
      %v3905 = vpop.permute.xlu0 %3904
      %3908 = vset.pattern.permute.xlu0 0
      %3909 = vperm.xlu0 %3908, %v3349
      %v3910 = vpop.permute.xlu0 %3909
      %3913 = vset.pattern.permute.xlu0 0
      %3914 = vperm.xlu0 %3913, %v3350
      %v3915 = vpop.permute.xlu0 %3914
      %3918 = vset.pattern.permute.xlu0 0
      %3919 = vperm.xlu0 %3918, %v3351
      %v3920 = vpop.permute.xlu0 %3919
      %3923 = vset.pattern.permute.xlu0 0
      %3924 = vperm.xlu0 %3923, %v3352
      %v3925 = vpop.permute.xlu0 %3924
      %3928 = vset.pattern.permute.xlu0 0
      %3929 = vperm.xlu0 %3928, %v3353
      %v3930 = vpop.permute.xlu0 %3929
      %3933 = vset.pattern.permute.xlu0 0
      %3934 = vperm.xlu0 %3933, %v3354
      %v3935 = vpop.permute.xlu0 %3934
      %3938 = vset.pattern.permute.xlu0 0
      %3939 = vperm.xlu0 %3938, %v3355
      %v3940 = vpop.permute.xlu0 %3939
      %3943 = vset.pattern.permute.xlu0 0
      %3944 = vperm.xlu0 %3943, %v3356
      %v3945 = vpop.permute.xlu0 %3944
      %3948 = vset.pattern.permute.xlu0 0
      %3949 = vperm.xlu0 %3948, %v3357
      %v3950 = vpop.permute.xlu0 %3949
      %3953 = vset.pattern.permute.xlu0 0
      %3954 = vperm.xlu0 %3953, %v3358
      %v3955 = vpop.permute.xlu0 %3954
      %3958 = vset.pattern.permute.xlu0 0
      %3959 = vperm.xlu0 %3958, %v3359
      %v3960 = vpop.permute.xlu0 %3959
      %3963 = vset.pattern.permute.xlu0 0
      %3964 = vperm.xlu0 %3963, %v3360
      %v3965 = vpop.permute.xlu0 %3964
      %3968 = vset.pattern.permute.xlu0 0
      %3969 = vperm.xlu0 %3968, %v3361
      %v3970 = vpop.permute.xlu0 %3969
      %3973 = vset.pattern.permute.xlu0 0
      %3974 = vperm.xlu0 %3973, %v3362
      %v3975 = vpop.permute.xlu0 %3974
      %3978 = vset.pattern.permute.xlu0 0
      %3979 = vperm.xlu0 %3978, %v3363
      %v3980 = vpop.permute.xlu0 %3979
      %3983 = vset.pattern.permute.xlu0 0
      %3984 = vperm.xlu0 %3983, %v3364
      %v3985 = vpop.permute.xlu0 %3984
      %3988 = vset.pattern.permute.xlu0 0
      %3989 = vperm.xlu0 %3988, %v3365
      %v3990 = vpop.permute.xlu0 %3989
      %3993 = vset.pattern.permute.xlu0 0
      %3994 = vperm.xlu0 %3993, %v3366
      %v3995 = vpop.permute.xlu0 %3994
      %3998 = vset.pattern.permute.xlu0 0
      %3999 = vperm.xlu0 %3998, %v3367
      %v4000 = vpop.permute.xlu0 %3999
      %4003 = vset.pattern.permute.xlu0 0
      %4004 = vperm.xlu0 %4003, %v3368
      %v4005 = vpop.permute.xlu0 %4004
      %4008 = vset.pattern.permute.xlu0 0
      %4009 = vperm.xlu0 %4008, %v3369
      %v4010 = vpop.permute.xlu0 %4009
      %4013 = vset.pattern.permute.xlu0 0
      %4014 = vperm.xlu0 %4013, %v3370
      %v4015 = vpop.permute.xlu0 %4014
      %4018 = vset.pattern.permute.xlu0 0
      %4019 = vperm.xlu0 %4018, %v3371
      %v4020 = vpop.permute.xlu0 %4019
      %4023 = vset.pattern.permute.xlu0 0
      %4024 = vperm.xlu0 %4023, %v3372
      %v4025 = vpop.permute.xlu0 %4024
      %4028 = vset.pattern.permute.xlu0 0
      %4029 = vperm.xlu0 %4028, %v3373
      %v4030 = vpop.permute.xlu0 %4029
      %4033 = vset.pattern.permute.xlu0 0
      %4034 = vperm.xlu0 %4033, %v3374
      %v4035 = vpop.permute.xlu0 %4034
      %4038 = vset.pattern.permute.xlu0 0
      %4039 = vperm.xlu0 %4038, %v3375
      %v4040 = vpop.permute.xlu0 %4039
      %4043 = vset.pattern.permute.xlu0 0
      %4044 = vperm.xlu0 %4043, %v3376
      %v4045 = vpop.permute.xlu0 %4044
      %4048 = vset.pattern.permute.xlu0 0
      %4049 = vperm.xlu0 %4048, %v3377
      %v4050 = vpop.permute.xlu0 %4049
      %4053 = vset.pattern.permute.xlu0 0
      %4054 = vperm.xlu0 %4053, %v3378
      %v4055 = vpop.permute.xlu0 %4054
      %4058 = vset.pattern.permute.xlu0 0
      %4059 = vperm.xlu0 %4058, %v3379
      %v4060 = vpop.permute.xlu0 %4059
      %4063 = vset.pattern.permute.xlu0 0
      %4064 = vperm.xlu0 %4063, %v3380
      %v4065 = vpop.permute.xlu0 %4064
      %4068 = vset.pattern.permute.xlu0 0
      %4069 = vperm.xlu0 %4068, %v3381
      %v4070 = vpop.permute.xlu0 %4069
      %4073 = vset.pattern.permute.xlu0 0
      %4074 = vperm.xlu0 %4073, %v3382
      %v4075 = vpop.permute.xlu0 %4074
      %4078 = vset.pattern.permute.xlu0 0
      %4079 = vperm.xlu0 %4078, %v3383
      %v4080 = vpop.permute.xlu0 %4079
      %4083 = vset.pattern.permute.xlu0 0
      %4084 = vperm.xlu0 %4083, %v3384
      %v4085 = vpop.permute.xlu0 %4084
      %4088 = vset.pattern.permute.xlu0 0
      %4089 = vperm.xlu0 %4088, %v3385
      %v4090 = vpop.permute.xlu0 %4089
      %4093 = vset.pattern.permute.xlu0 0
      %4094 = vperm.xlu0 %4093, %v3386
      %v4095 = vpop.permute.xlu0 %4094
      %4098 = vset.pattern.permute.xlu0 0
      %4099 = vperm.xlu0 %4098, %v3387
      %v4100 = vpop.permute.xlu0 %4099
      %4103 = vset.pattern.permute.xlu0 0
      %4104 = vperm.xlu0 %4103, %v3388
      %v4105 = vpop.permute.xlu0 %4104
      %4108 = vset.pattern.permute.xlu0 0
      %4109 = vperm.xlu0 %4108, %v3389
      %v4110 = vpop.permute.xlu0 %4109
      %4113 = vset.pattern.permute.xlu0 0
      %4114 = vperm.xlu0 %4113, %v3390
      %v4115 = vpop.permute.xlu0 %4114
      %v4117 = vmul.f32 %v1030, %v3790
      %v4118 = vmul.f32 %v1378, %v3790
      %v4119 = vmul.f32 %v1032, %v3795
      %v4120 = vmul.f32 %v1380, %v3795
      %v4121 = vmul.f32 %v1035, %v3800
      %v4122 = vmul.f32 %v1383, %v3800
      %v4123 = vmul.f32 %v1037, %v3805
      %v4124 = vmul.f32 %v1385, %v3805
      %v4125 = vmul.f32 %v1040, %v3810
      %v4126 = vmul.f32 %v1388, %v3810
      %v4127 = vmul.f32 %v1042, %v3815
      %v4128 = vmul.f32 %v1390, %v3815
      %v4129 = vmul.f32 %v1045, %v3820
      %v4130 = vmul.f32 %v1393, %v3820
      %v4131 = vmul.f32 %v1047, %v3825
      %v4132 = vmul.f32 %v1395, %v3825
      %v4133 = vmul.f32 %v1050, %v3830
      %v4134 = vmul.f32 %v1398, %v3830
      %v4135 = vmul.f32 %v1052, %v3835
      %v4136 = vmul.f32 %v1400, %v3835
      %v4137 = vmul.f32 %v1055, %v3840
      %v4138 = vmul.f32 %v1403, %v3840
      %v4139 = vmul.f32 %v1057, %v3845
      %v4140 = vmul.f32 %v1405, %v3845
      %v4141 = vmul.f32 %v1060, %v3850
      %v4142 = vmul.f32 %v1408, %v3850
      %v4143 = vmul.f32 %v1062, %v3855
      %v4144 = vmul.f32 %v1410, %v3855
      %v4145 = vmul.f32 %v1065, %v3860
      %v4146 = vmul.f32 %v1413, %v3860
      %v4147 = vmul.f32 %v1067, %v3865
      %v4148 = vmul.f32 %v1415, %v3865
      %v4149 = vmul.f32 %v1070, %v3870
      %v4150 = vmul.f32 %v1418, %v3870
      %v4151 = vmul.f32 %v1072, %v3875
      %v4152 = vmul.f32 %v1420, %v3875
      %v4153 = vmul.f32 %v1075, %v3880
      %v4154 = vmul.f32 %v1423, %v3880
      %v4155 = vmul.f32 %v1077, %v3885
      %v4156 = vmul.f32 %v1425, %v3885
      %v4157 = vmul.f32 %v1080, %v3890
      %v4158 = vmul.f32 %v1428, %v3890
      %v4159 = vmul.f32 %v1082, %v3895
      %v4160 = vmul.f32 %v1430, %v3895
      %v4161 = vmul.f32 %v1085, %v3900
      %v4162 = vmul.f32 %v1433, %v3900
      %v4163 = vmul.f32 %v1087, %v3905
      %v4164 = vmul.f32 %v1435, %v3905
      %v4165 = vmul.f32 %v1090, %v3910
      %v4166 = vmul.f32 %v1438, %v3910
      %v4167 = vmul.f32 %v1092, %v3915
      %v4168 = vmul.f32 %v1440, %v3915
      %v4169 = vmul.f32 %v1095, %v3920
      %v4170 = vmul.f32 %v1443, %v3920
      %v4171 = vmul.f32 %v1097, %v3925
      %v4172 = vmul.f32 %v1445, %v3925
      %v4173 = vmul.f32 %v1100, %v3930
      %v4174 = vmul.f32 %v1448, %v3930
      %v4175 = vmul.f32 %v1102, %v3935
      %v4176 = vmul.f32 %v1450, %v3935
      %v4177 = vmul.f32 %v1105, %v3940
      %v4178 = vmul.f32 %v1453, %v3940
      %v4179 = vmul.f32 %v1107, %v3945
      %v4180 = vmul.f32 %v1455, %v3945
      %v4181 = vmul.f32 %v1110, %v3950
      %v4182 = vmul.f32 %v1458, %v3950
      %v4183 = vmul.f32 %v1112, %v3955
      %v4184 = vmul.f32 %v1460, %v3955
      %v4185 = vmul.f32 %v1115, %v3960
      %v4186 = vmul.f32 %v1463, %v3960
      %v4187 = vmul.f32 %v1117, %v3965
      %v4188 = vmul.f32 %v1465, %v3965
      %v4189 = vmul.f32 %v1120, %v3970
      %v4190 = vmul.f32 %v1468, %v3970
      %v4191 = vmul.f32 %v1122, %v3975
      %v4192 = vmul.f32 %v1470, %v3975
      %v4193 = vmul.f32 %v1125, %v3980
      %v4194 = vmul.f32 %v1473, %v3980
      %v4195 = vmul.f32 %v1127, %v3985
      %v4196 = vmul.f32 %v1475, %v3985
      %v4197 = vmul.f32 %v1130, %v3990
      %v4198 = vmul.f32 %v1478, %v3990
      %v4199 = vmul.f32 %v1132, %v3995
      %v4200 = vmul.f32 %v1480, %v3995
      %v4201 = vmul.f32 %v1135, %v4000
      %v4202 = vmul.f32 %v1483, %v4000
      %v4203 = vmul.f32 %v1137, %v4005
      %v4204 = vmul.f32 %v1485, %v4005
      %v4205 = vmul.f32 %v1140, %v4010
      %v4206 = vmul.f32 %v1488, %v4010
      %v4207 = vmul.f32 %v1142, %v4015
      %v4208 = vmul.f32 %v1490, %v4015
      %v4209 = vmul.f32 %v1145, %v4020
      %v4210 = vmul.f32 %v1493, %v4020
      %v4211 = vmul.f32 %v1147, %v4025
      %v4212 = vmul.f32 %v1495, %v4025
      %v4213 = vmul.f32 %v1150, %v4030
      %v4214 = vmul.f32 %v1498, %v4030
      %v4215 = vmul.f32 %v1152, %v4035
      %v4216 = vmul.f32 %v1500, %v4035
      %v4217 = vmul.f32 %v1155, %v4040
      %v4218 = vmul.f32 %v1503, %v4040
      %v4219 = vmul.f32 %v1157, %v4045
      %v4220 = vmul.f32 %v1505, %v4045
      %v4221 = vmul.f32 %v1160, %v4050
      %v4222 = vmul.f32 %v1508, %v4050
      %v4223 = vmul.f32 %v1162, %v4055
      %v4224 = vmul.f32 %v1510, %v4055
      %v4225 = vmul.f32 %v1165, %v4060
      %v4226 = vmul.f32 %v1513, %v4060
      %v4227 = vmul.f32 %v1167, %v4065
      %v4228 = vmul.f32 %v1515, %v4065
      %v4229 = vmul.f32 %v1170, %v4070
      %v4230 = vmul.f32 %v1518, %v4070
      %v4231 = vmul.f32 %v1172, %v4075
      %v4232 = vmul.f32 %v1520, %v4075
      %v4233 = vmul.f32 %v1175, %v4080
      %v4234 = vmul.f32 %v1523, %v4080
      %v4235 = vmul.f32 %v1177, %v4085
      %v4236 = vmul.f32 %v1525, %v4085
      %v4237 = vmul.f32 %v1180, %v4090
      %v4238 = vmul.f32 %v1528, %v4090
      %v4239 = vmul.f32 %v1182, %v4095
      %v4240 = vmul.f32 %v1530, %v4095
      %v4241 = vmul.f32 %v1185, %v4100
      %v4242 = vmul.f32 %v1533, %v4100
      %v4243 = vmul.f32 %v1187, %v4105
      %v4244 = vmul.f32 %v1535, %v4105
      %v4245 = vmul.f32 %v1190, %v4110
      %v4246 = vmul.f32 %v1538, %v4110
      %v4247 = vmul.f32 %v1192, %v4115
      %v4248 = vmul.f32 %v1540, %v4115
      %4250 = vset.pattern.permute.xlu0 1
      %4251 = vperm.xlu0 %4250, %v3721
      %v4252 = vpop.permute.xlu0 %4251
      %4255 = vset.pattern.permute.xlu0 1
      %4256 = vperm.xlu0 %4255, %v3722
      %v4257 = vpop.permute.xlu0 %4256
      %4260 = vset.pattern.permute.xlu0 1
      %4261 = vperm.xlu0 %4260, %v3723
      %v4262 = vpop.permute.xlu0 %4261
      %4265 = vset.pattern.permute.xlu0 1
      %4266 = vperm.xlu0 %4265, %v3724
      %v4267 = vpop.permute.xlu0 %4266
      %4270 = vset.pattern.permute.xlu0 1
      %4271 = vperm.xlu0 %4270, %v3725
      %v4272 = vpop.permute.xlu0 %4271
      %4275 = vset.pattern.permute.xlu0 1
      %4276 = vperm.xlu0 %4275, %v3726
      %v4277 = vpop.permute.xlu0 %4276
      %4280 = vset.pattern.permute.xlu0 1
      %4281 = vperm.xlu0 %4280, %v3727
      %v4282 = vpop.permute.xlu0 %4281
      %4285 = vset.pattern.permute.xlu0 1
      %4286 = vperm.xlu0 %4285, %v3728
      %v4287 = vpop.permute.xlu0 %4286
      %4290 = vset.pattern.permute.xlu0 1
      %4291 = vperm.xlu0 %4290, %v3729
      %v4292 = vpop.permute.xlu0 %4291
      %4295 = vset.pattern.permute.xlu0 1
      %4296 = vperm.xlu0 %4295, %v3730
      %v4297 = vpop.permute.xlu0 %4296
      %4300 = vset.pattern.permute.xlu0 1
      %4301 = vperm.xlu0 %4300, %v3731
      %v4302 = vpop.permute.xlu0 %4301
      %4305 = vset.pattern.permute.xlu0 1
      %4306 = vperm.xlu0 %4305, %v3732
      %v4307 = vpop.permute.xlu0 %4306
      %4310 = vset.pattern.permute.xlu0 1
      %4311 = vperm.xlu0 %4310, %v3733
      %v4312 = vpop.permute.xlu0 %4311
      %4315 = vset.pattern.permute.xlu0 1
      %4316 = vperm.xlu0 %4315, %v3734
      %v4317 = vpop.permute.xlu0 %4316
      %4320 = vset.pattern.permute.xlu0 1
      %4321 = vperm.xlu0 %4320, %v3735
      %v4322 = vpop.permute.xlu0 %4321
      %4325 = vset.pattern.permute.xlu0 1
      %4326 = vperm.xlu0 %4325, %v3736
      %v4327 = vpop.permute.xlu0 %4326
      %4330 = vset.pattern.permute.xlu0 1
      %4331 = vperm.xlu0 %4330, %v3737
      %v4332 = vpop.permute.xlu0 %4331
      %4335 = vset.pattern.permute.xlu0 1
      %4336 = vperm.xlu0 %4335, %v3738
      %v4337 = vpop.permute.xlu0 %4336
      %4340 = vset.pattern.permute.xlu0 1
      %4341 = vperm.xlu0 %4340, %v3739
      %v4342 = vpop.permute.xlu0 %4341
      %4345 = vset.pattern.permute.xlu0 1
      %4346 = vperm.xlu0 %4345, %v3740
      %v4347 = vpop.permute.xlu0 %4346
      %4350 = vset.pattern.permute.xlu0 1
      %4351 = vperm.xlu0 %4350, %v3741
      %v4352 = vpop.permute.xlu0 %4351
      %4355 = vset.pattern.permute.xlu0 1
      %4356 = vperm.xlu0 %4355, %v3742
      %v4357 = vpop.permute.xlu0 %4356
      %4360 = vset.pattern.permute.xlu0 1
      %4361 = vperm.xlu0 %4360, %v3743
      %v4362 = vpop.permute.xlu0 %4361
      %4365 = vset.pattern.permute.xlu0 1
      %4366 = vperm.xlu0 %4365, %v3744
      %v4367 = vpop.permute.xlu0 %4366
      %4370 = vset.pattern.permute.xlu0 1
      %4371 = vperm.xlu0 %4370, %v3745
      %v4372 = vpop.permute.xlu0 %4371
      %4375 = vset.pattern.permute.xlu0 1
      %4376 = vperm.xlu0 %4375, %v3746
      %v4377 = vpop.permute.xlu0 %4376
      %4380 = vset.pattern.permute.xlu0 1
      %4381 = vperm.xlu0 %4380, %v3747
      %v4382 = vpop.permute.xlu0 %4381
      %4385 = vset.pattern.permute.xlu0 1
      %4386 = vperm.xlu0 %4385, %v3748
      %v4387 = vpop.permute.xlu0 %4386
      %4390 = vset.pattern.permute.xlu0 1
      %4391 = vperm.xlu0 %4390, %v3749
      %v4392 = vpop.permute.xlu0 %4391
      %4395 = vset.pattern.permute.xlu0 1
      %4396 = vperm.xlu0 %4395, %v3750
      %v4397 = vpop.permute.xlu0 %4396
      %4400 = vset.pattern.permute.xlu0 1
      %4401 = vperm.xlu0 %4400, %v3751
      %v4402 = vpop.permute.xlu0 %4401
      %4405 = vset.pattern.permute.xlu0 1
      %4406 = vperm.xlu0 %4405, %v3752
      %v4407 = vpop.permute.xlu0 %4406
      %4410 = vset.pattern.permute.xlu0 1
      %4411 = vperm.xlu0 %4410, %v3753
      %v4412 = vpop.permute.xlu0 %4411
      %4415 = vset.pattern.permute.xlu0 1
      %4416 = vperm.xlu0 %4415, %v3754
      %v4417 = vpop.permute.xlu0 %4416
      %4420 = vset.pattern.permute.xlu0 1
      %4421 = vperm.xlu0 %4420, %v3755
      %v4422 = vpop.permute.xlu0 %4421
      %4425 = vset.pattern.permute.xlu0 1
      %4426 = vperm.xlu0 %4425, %v3756
      %v4427 = vpop.permute.xlu0 %4426
      %4430 = vset.pattern.permute.xlu0 1
      %4431 = vperm.xlu0 %4430, %v3757
      %v4432 = vpop.permute.xlu0 %4431
      %4435 = vset.pattern.permute.xlu0 1
      %4436 = vperm.xlu0 %4435, %v3758
      %v4437 = vpop.permute.xlu0 %4436
      %4440 = vset.pattern.permute.xlu0 1
      %4441 = vperm.xlu0 %4440, %v3759
      %v4442 = vpop.permute.xlu0 %4441
      %4445 = vset.pattern.permute.xlu0 1
      %4446 = vperm.xlu0 %4445, %v3760
      %v4447 = vpop.permute.xlu0 %4446
      %4450 = vset.pattern.permute.xlu0 1
      %4451 = vperm.xlu0 %4450, %v3761
      %v4452 = vpop.permute.xlu0 %4451
      %4455 = vset.pattern.permute.xlu0 1
      %4456 = vperm.xlu0 %4455, %v3762
      %v4457 = vpop.permute.xlu0 %4456
      %4460 = vset.pattern.permute.xlu0 1
      %4461 = vperm.xlu0 %4460, %v3763
      %v4462 = vpop.permute.xlu0 %4461
      %4465 = vset.pattern.permute.xlu0 1
      %4466 = vperm.xlu0 %4465, %v3764
      %v4467 = vpop.permute.xlu0 %4466
      %4470 = vset.pattern.permute.xlu0 1
      %4471 = vperm.xlu0 %4470, %v3765
      %v4472 = vpop.permute.xlu0 %4471
      %4475 = vset.pattern.permute.xlu0 1
      %4476 = vperm.xlu0 %4475, %v3766
      %v4477 = vpop.permute.xlu0 %4476
      %4480 = vset.pattern.permute.xlu0 1
      %4481 = vperm.xlu0 %4480, %v3767
      %v4482 = vpop.permute.xlu0 %4481
      %4485 = vset.pattern.permute.xlu0 1
      %4486 = vperm.xlu0 %4485, %v3768
      %v4487 = vpop.permute.xlu0 %4486
      %4490 = vset.pattern.permute.xlu0 1
      %4491 = vperm.xlu0 %4490, %v3769
      %v4492 = vpop.permute.xlu0 %4491
      %4495 = vset.pattern.permute.xlu0 1
      %4496 = vperm.xlu0 %4495, %v3770
      %v4497 = vpop.permute.xlu0 %4496
      %4500 = vset.pattern.permute.xlu0 1
      %4501 = vperm.xlu0 %4500, %v3771
      %v4502 = vpop.permute.xlu0 %4501
      %4505 = vset.pattern.permute.xlu0 1
      %4506 = vperm.xlu0 %4505, %v3772
      %v4507 = vpop.permute.xlu0 %4506
      %4510 = vset.pattern.permute.xlu0 1
      %4511 = vperm.xlu0 %4510, %v3773
      %v4512 = vpop.permute.xlu0 %4511
      %4515 = vset.pattern.permute.xlu0 1
      %4516 = vperm.xlu0 %4515, %v3774
      %v4517 = vpop.permute.xlu0 %4516
      %4520 = vset.pattern.permute.xlu0 1
      %4521 = vperm.xlu0 %4520, %v3775
      %v4522 = vpop.permute.xlu0 %4521
      %4525 = vset.pattern.permute.xlu0 1
      %4526 = vperm.xlu0 %4525, %v3776
      %v4527 = vpop.permute.xlu0 %4526
      %4530 = vset.pattern.permute.xlu0 1
      %4531 = vperm.xlu0 %4530, %v3777
      %v4532 = vpop.permute.xlu0 %4531
      %4535 = vset.pattern.permute.xlu0 1
      %4536 = vperm.xlu0 %4535, %v3778
      %v4537 = vpop.permute.xlu0 %4536
      %4540 = vset.pattern.permute.xlu0 1
      %4541 = vperm.xlu0 %4540, %v3779
      %v4542 = vpop.permute.xlu0 %4541
      %4545 = vset.pattern.permute.xlu0 1
      %4546 = vperm.xlu0 %4545, %v3780
      %v4547 = vpop.permute.xlu0 %4546
      %4550 = vset.pattern.permute.xlu0 1
      %4551 = vperm.xlu0 %4550, %v3781
      %v4552 = vpop.permute.xlu0 %4551
      %4555 = vset.pattern.permute.xlu0 1
      %4556 = vperm.xlu0 %4555, %v3782
      %v4557 = vpop.permute.xlu0 %4556
      %4560 = vset.pattern.permute.xlu0 1
      %4561 = vperm.xlu0 %4560, %v3783
      %v4562 = vpop.permute.xlu0 %4561
      %4565 = vset.pattern.permute.xlu0 1
      %4566 = vperm.xlu0 %4565, %v3784
      %v4567 = vpop.permute.xlu0 %4566
      %4570 = vset.pattern.permute.xlu0 1
      %4571 = vperm.xlu0 %4570, %v3785
      %v4572 = vpop.permute.xlu0 %4571
      %4575 = vset.pattern.permute.xlu0 1
      %4576 = vperm.xlu0 %4575, %v3786
      %v4577 = vpop.permute.xlu0 %4576
      %v4579 = vadd.f32 %v4117, %v4252
      %v4580 = vadd.f32 %v4118, %v4252
      %v4581 = vadd.f32 %v4119, %v4257
      %v4582 = vadd.f32 %v4120, %v4257
      %v4583 = vadd.f32 %v4121, %v4262
      %v4584 = vadd.f32 %v4122, %v4262
      %v4585 = vadd.f32 %v4123, %v4267
      %v4586 = vadd.f32 %v4124, %v4267
      %v4587 = vadd.f32 %v4125, %v4272
      %v4588 = vadd.f32 %v4126, %v4272
      %v4589 = vadd.f32 %v4127, %v4277
      %v4590 = vadd.f32 %v4128, %v4277
      %v4591 = vadd.f32 %v4129, %v4282
      %v4592 = vadd.f32 %v4130, %v4282
      %v4593 = vadd.f32 %v4131, %v4287
      %v4594 = vadd.f32 %v4132, %v4287
      %v4595 = vadd.f32 %v4133, %v4292
      %v4596 = vadd.f32 %v4134, %v4292
      %v4597 = vadd.f32 %v4135, %v4297
      %v4598 = vadd.f32 %v4136, %v4297
      %v4599 = vadd.f32 %v4137, %v4302
      %v4600 = vadd.f32 %v4138, %v4302
      %v4601 = vadd.f32 %v4139, %v4307
      %v4602 = vadd.f32 %v4140, %v4307
      %v4603 = vadd.f32 %v4141, %v4312
      %v4604 = vadd.f32 %v4142, %v4312
      %v4605 = vadd.f32 %v4143, %v4317
      %v4606 = vadd.f32 %v4144, %v4317
      %v4607 = vadd.f32 %v4145, %v4322
      %v4608 = vadd.f32 %v4146, %v4322
      %v4609 = vadd.f32 %v4147, %v4327
      %v4610 = vadd.f32 %v4148, %v4327
      %v4611 = vadd.f32 %v4149, %v4332
      %v4612 = vadd.f32 %v4150, %v4332
      %v4613 = vadd.f32 %v4151, %v4337
      %v4614 = vadd.f32 %v4152, %v4337
      %v4615 = vadd.f32 %v4153, %v4342
      %v4616 = vadd.f32 %v4154, %v4342
      %v4617 = vadd.f32 %v4155, %v4347
      %v4618 = vadd.f32 %v4156, %v4347
      %v4619 = vadd.f32 %v4157, %v4352
      %v4620 = vadd.f32 %v4158, %v4352
      %v4621 = vadd.f32 %v4159, %v4357
      %v4622 = vadd.f32 %v4160, %v4357
      %v4623 = vadd.f32 %v4161, %v4362
      %v4624 = vadd.f32 %v4162, %v4362
      %v4625 = vadd.f32 %v4163, %v4367
      %v4626 = vadd.f32 %v4164, %v4367
      %v4627 = vadd.f32 %v4165, %v4372
      %v4628 = vadd.f32 %v4166, %v4372
      %v4629 = vadd.f32 %v4167, %v4377
      %v4630 = vadd.f32 %v4168, %v4377
      %v4631 = vadd.f32 %v4169, %v4382
      %v4632 = vadd.f32 %v4170, %v4382
      %v4633 = vadd.f32 %v4171, %v4387
      %v4634 = vadd.f32 %v4172, %v4387
      %v4635 = vadd.f32 %v4173, %v4392
      %v4636 = vadd.f32 %v4174, %v4392
      %v4637 = vadd.f32 %v4175, %v4397
      %v4638 = vadd.f32 %v4176, %v4397
      %v4639 = vadd.f32 %v4177, %v4402
      %v4640 = vadd.f32 %v4178, %v4402
      %v4641 = vadd.f32 %v4179, %v4407
      %v4642 = vadd.f32 %v4180, %v4407
      %v4643 = vadd.f32 %v4181, %v4412
      %v4644 = vadd.f32 %v4182, %v4412
      %v4645 = vadd.f32 %v4183, %v4417
      %v4646 = vadd.f32 %v4184, %v4417
      %v4647 = vadd.f32 %v4185, %v4422
      %v4648 = vadd.f32 %v4186, %v4422
      %v4649 = vadd.f32 %v4187, %v4427
      %v4650 = vadd.f32 %v4188, %v4427
      %v4651 = vadd.f32 %v4189, %v4432
      %v4652 = vadd.f32 %v4190, %v4432
      %v4653 = vadd.f32 %v4191, %v4437
      %v4654 = vadd.f32 %v4192, %v4437
      %v4655 = vadd.f32 %v4193, %v4442
      %v4656 = vadd.f32 %v4194, %v4442
      %v4657 = vadd.f32 %v4195, %v4447
      %v4658 = vadd.f32 %v4196, %v4447
      %v4659 = vadd.f32 %v4197, %v4452
      %v4660 = vadd.f32 %v4198, %v4452
      %v4661 = vadd.f32 %v4199, %v4457
      %v4662 = vadd.f32 %v4200, %v4457
      %v4663 = vadd.f32 %v4201, %v4462
      %v4664 = vadd.f32 %v4202, %v4462
      %v4665 = vadd.f32 %v4203, %v4467
      %v4666 = vadd.f32 %v4204, %v4467
      %v4667 = vadd.f32 %v4205, %v4472
      %v4668 = vadd.f32 %v4206, %v4472
      %v4669 = vadd.f32 %v4207, %v4477
      %v4670 = vadd.f32 %v4208, %v4477
      %v4671 = vadd.f32 %v4209, %v4482
      %v4672 = vadd.f32 %v4210, %v4482
      %v4673 = vadd.f32 %v4211, %v4487
      %v4674 = vadd.f32 %v4212, %v4487
      %v4675 = vadd.f32 %v4213, %v4492
      %v4676 = vadd.f32 %v4214, %v4492
      %v4677 = vadd.f32 %v4215, %v4497
      %v4678 = vadd.f32 %v4216, %v4497
      %v4679 = vadd.f32 %v4217, %v4502
      %v4680 = vadd.f32 %v4218, %v4502
      %v4681 = vadd.f32 %v4219, %v4507
      %v4682 = vadd.f32 %v4220, %v4507
      %v4683 = vadd.f32 %v4221, %v4512
      %v4684 = vadd.f32 %v4222, %v4512
      %v4685 = vadd.f32 %v4223, %v4517
      %v4686 = vadd.f32 %v4224, %v4517
      %v4687 = vadd.f32 %v4225, %v4522
      %v4688 = vadd.f32 %v4226, %v4522
      %v4689 = vadd.f32 %v4227, %v4527
      %v4690 = vadd.f32 %v4228, %v4527
      %v4691 = vadd.f32 %v4229, %v4532
      %v4692 = vadd.f32 %v4230, %v4532
      %v4693 = vadd.f32 %v4231, %v4537
      %v4694 = vadd.f32 %v4232, %v4537
      %v4695 = vadd.f32 %v4233, %v4542
      %v4696 = vadd.f32 %v4234, %v4542
      %v4697 = vadd.f32 %v4235, %v4547
      %v4698 = vadd.f32 %v4236, %v4547
      %v4699 = vadd.f32 %v4237, %v4552
      %v4700 = vadd.f32 %v4238, %v4552
      %v4701 = vadd.f32 %v4239, %v4557
      %v4702 = vadd.f32 %v4240, %v4557
      %v4703 = vadd.f32 %v4241, %v4562
      %v4704 = vadd.f32 %v4242, %v4562
      %v4705 = vadd.f32 %v4243, %v4567
      %v4706 = vadd.f32 %v4244, %v4567
      %v4707 = vadd.f32 %v4245, %v4572
      %v4708 = vadd.f32 %v4246, %v4572
      %v4709 = vadd.f32 %v4247, %v4577
      %v4710 = vadd.f32 %v4248, %v4577
      %4711 = vst [vmem:[%s226] sm:$0xff] %v4579
      %4712 = vst.msk [vmem:[%s226 + $0x8] sm:$0xff] %vm1542, %v4580
      %4713 = vst [vmem:[%s226 + $0x10] sm:$0xff] %v4581
      %4714 = vst.msk [vmem:[%s226 + $0x18] sm:$0xff] %vm1542, %v4582
      %4715 = vst [vmem:[%s226 + $0x20] sm:$0xff] %v4583
      %4716 = vst.msk [vmem:[%s226 + $0x28] sm:$0xff] %vm1542, %v4584
      %4717 = vst [vmem:[%s226 + $0x30] sm:$0xff] %v4585
      %4718 = vst.msk [vmem:[%s226 + $0x38] sm:$0xff] %vm1542, %v4586
      %4719 = vst [vmem:[%s226 + $0x40] sm:$0xff] %v4587
      %4720 = vst.msk [vmem:[%s226 + $0x48] sm:$0xff] %vm1542, %v4588
      %4721 = vst [vmem:[%s226 + $0x50] sm:$0xff] %v4589
      %4722 = vst.msk [vmem:[%s226 + $0x58] sm:$0xff] %vm1542, %v4590
      %4723 = vst [vmem:[%s226 + $0x60] sm:$0xff] %v4591
      %4724 = vst.msk [vmem:[%s226 + $0x68] sm:$0xff] %vm1542, %v4592
      %4725 = vst [vmem:[%s226 + $0x70] sm:$0xff] %v4593
      %4726 = vst.msk [vmem:[%s226 + $0x78] sm:$0xff] %vm1542, %v4594
      %4727 = vst [vmem:[%s226 + $0x80] sm:$0xff] %v4595
      %4728 = vst.msk [vmem:[%s226 + $0x88] sm:$0xff] %vm1542, %v4596
      %4729 = vst [vmem:[%s226 + $0x90] sm:$0xff] %v4597
      %4730 = vst.msk [vmem:[%s226 + $0x98] sm:$0xff] %vm1542, %v4598
      %4731 = vst [vmem:[%s226 + $0xa0] sm:$0xff] %v4599
      %4732 = vst.msk [vmem:[%s226 + $0xa8] sm:$0xff] %vm1542, %v4600
      %4733 = vst [vmem:[%s226 + $0xb0] sm:$0xff] %v4601
      %4734 = vst.msk [vmem:[%s226 + $0xb8] sm:$0xff] %vm1542, %v4602
      %4735 = vst [vmem:[%s226 + $0xc0] sm:$0xff] %v4603
      %4736 = vst.msk [vmem:[%s226 + $0xc8] sm:$0xff] %vm1542, %v4604
      %4737 = vst [vmem:[%s226 + $0xd0] sm:$0xff] %v4605
      %4738 = vst.msk [vmem:[%s226 + $0xd8] sm:$0xff] %vm1542, %v4606
      %4739 = vst [vmem:[%s226 + $0xe0] sm:$0xff] %v4607
      %4740 = vst.msk [vmem:[%s226 + $0xe8] sm:$0xff] %vm1542, %v4608
      %4741 = vst [vmem:[%s226 + $0xf0] sm:$0xff] %v4609
      %4742 = vst.msk [vmem:[%s226 + $0xf8] sm:$0xff] %vm1542, %v4610
      %4743 = vst [vmem:[%s226 + $0x100] sm:$0xff] %v4611
      %4744 = vst.msk [vmem:[%s226 + $0x108] sm:$0xff] %vm1542, %v4612
      %4745 = vst [vmem:[%s226 + $0x110] sm:$0xff] %v4613
      %4746 = vst.msk [vmem:[%s226 + $0x118] sm:$0xff] %vm1542, %v4614
      %4747 = vst [vmem:[%s226 + $0x120] sm:$0xff] %v4615
      %4748 = vst.msk [vmem:[%s226 + $0x128] sm:$0xff] %vm1542, %v4616
      %4749 = vst [vmem:[%s226 + $0x130] sm:$0xff] %v4617
      %4750 = vst.msk [vmem:[%s226 + $0x138] sm:$0xff] %vm1542, %v4618
      %4751 = vst [vmem:[%s226 + $0x140] sm:$0xff] %v4619
      %4752 = vst.msk [vmem:[%s226 + $0x148] sm:$0xff] %vm1542, %v4620
      %4753 = vst [vmem:[%s226 + $0x150] sm:$0xff] %v4621
      %4754 = vst.msk [vmem:[%s226 + $0x158] sm:$0xff] %vm1542, %v4622
      %4755 = vst [vmem:[%s226 + $0x160] sm:$0xff] %v4623
      %4756 = vst.msk [vmem:[%s226 + $0x168] sm:$0xff] %vm1542, %v4624
      %4757 = vst [vmem:[%s226 + $0x170] sm:$0xff] %v4625
      %4758 = vst.msk [vmem:[%s226 + $0x178] sm:$0xff] %vm1542, %v4626
      %4759 = vst [vmem:[%s226 + $0x180] sm:$0xff] %v4627
      %4760 = vst.msk [vmem:[%s226 + $0x188] sm:$0xff] %vm1542, %v4628
      %4761 = vst [vmem:[%s226 + $0x190] sm:$0xff] %v4629
      %4762 = vst.msk [vmem:[%s226 + $0x198] sm:$0xff] %vm1542, %v4630
      %4763 = vst [vmem:[%s226 + $0x1a0] sm:$0xff] %v4631
      %4764 = vst.msk [vmem:[%s226 + $0x1a8] sm:$0xff] %vm1542, %v4632
      %4765 = vst [vmem:[%s226 + $0x1b0] sm:$0xff] %v4633
      %4766 = vst.msk [vmem:[%s226 + $0x1b8] sm:$0xff] %vm1542, %v4634
      %4767 = vst [vmem:[%s226 + $0x1c0] sm:$0xff] %v4635
      %4768 = vst.msk [vmem:[%s226 + $0x1c8] sm:$0xff] %vm1542, %v4636
      %4769 = vst [vmem:[%s226 + $0x1d0] sm:$0xff] %v4637
      %4770 = vst.msk [vmem:[%s226 + $0x1d8] sm:$0xff] %vm1542, %v4638
      %4771 = vst [vmem:[%s226 + $0x1e0] sm:$0xff] %v4639
      %4772 = vst.msk [vmem:[%s226 + $0x1e8] sm:$0xff] %vm1542, %v4640
      %4773 = vst [vmem:[%s226 + $0x1f0] sm:$0xff] %v4641
      %4774 = vst.msk [vmem:[%s226 + $0x1f8] sm:$0xff] %vm1542, %v4642
      %4775 = vst [vmem:[%s226 + $0x200] sm:$0xff] %v4643
      %4776 = vst.msk [vmem:[%s226 + $0x208] sm:$0xff] %vm1542, %v4644
      %4777 = vst [vmem:[%s226 + $0x210] sm:$0xff] %v4645
      %4778 = vst.msk [vmem:[%s226 + $0x218] sm:$0xff] %vm1542, %v4646
      %4779 = vst [vmem:[%s226 + $0x220] sm:$0xff] %v4647
      %4780 = vst.msk [vmem:[%s226 + $0x228] sm:$0xff] %vm1542, %v4648
      %4781 = vst [vmem:[%s226 + $0x230] sm:$0xff] %v4649
      %4782 = vst.msk [vmem:[%s226 + $0x238] sm:$0xff] %vm1542, %v4650
      %4783 = vst [vmem:[%s226 + $0x240] sm:$0xff] %v4651
      %4784 = vst.msk [vmem:[%s226 + $0x248] sm:$0xff] %vm1542, %v4652
      %4785 = vst [vmem:[%s226 + $0x250] sm:$0xff] %v4653
      %4786 = vst.msk [vmem:[%s226 + $0x258] sm:$0xff] %vm1542, %v4654
      %4787 = vst [vmem:[%s226 + $0x260] sm:$0xff] %v4655
      %4788 = vst.msk [vmem:[%s226 + $0x268] sm:$0xff] %vm1542, %v4656
      %4789 = vst [vmem:[%s226 + $0x270] sm:$0xff] %v4657
      %4790 = vst.msk [vmem:[%s226 + $0x278] sm:$0xff] %vm1542, %v4658
      %4791 = vst [vmem:[%s226 + $0x280] sm:$0xff] %v4659
      %4792 = vst.msk [vmem:[%s226 + $0x288] sm:$0xff] %vm1542, %v4660
      %4793 = vst [vmem:[%s226 + $0x290] sm:$0xff] %v4661
      %4794 = vst.msk [vmem:[%s226 + $0x298] sm:$0xff] %vm1542, %v4662
      %4795 = vst [vmem:[%s226 + $0x2a0] sm:$0xff] %v4663
      %4796 = vst.msk [vmem:[%s226 + $0x2a8] sm:$0xff] %vm1542, %v4664
      %4797 = vst [vmem:[%s226 + $0x2b0] sm:$0xff] %v4665
      %4798 = vst.msk [vmem:[%s226 + $0x2b8] sm:$0xff] %vm1542, %v4666
      %4799 = vst [vmem:[%s226 + $0x2c0] sm:$0xff] %v4667
      %4800 = vst.msk [vmem:[%s226 + $0x2c8] sm:$0xff] %vm1542, %v4668
      %4801 = vst [vmem:[%s226 + $0x2d0] sm:$0xff] %v4669
      %4802 = vst.msk [vmem:[%s226 + $0x2d8] sm:$0xff] %vm1542, %v4670
      %4803 = vst [vmem:[%s226 + $0x2e0] sm:$0xff] %v4671
      %4804 = vst.msk [vmem:[%s226 + $0x2e8] sm:$0xff] %vm1542, %v4672
      %4805 = vst [vmem:[%s226 + $0x2f0] sm:$0xff] %v4673
      %4806 = vst.msk [vmem:[%s226 + $0x2f8] sm:$0xff] %vm1542, %v4674
      %4807 = vst [vmem:[%s226 + $0x300] sm:$0xff] %v4675
      %4808 = vst.msk [vmem:[%s226 + $0x308] sm:$0xff] %vm1542, %v4676
      %4809 = vst [vmem:[%s226 + $0x310] sm:$0xff] %v4677
      %4810 = vst.msk [vmem:[%s226 + $0x318] sm:$0xff] %vm1542, %v4678
      %4811 = vst [vmem:[%s226 + $0x320] sm:$0xff] %v4679
      %4812 = vst.msk [vmem:[%s226 + $0x328] sm:$0xff] %vm1542, %v4680
      %4813 = vst [vmem:[%s226 + $0x330] sm:$0xff] %v4681
      %4814 = vst.msk [vmem:[%s226 + $0x338] sm:$0xff] %vm1542, %v4682
      %4815 = vst [vmem:[%s226 + $0x340] sm:$0xff] %v4683
      %4816 = vst.msk [vmem:[%s226 + $0x348] sm:$0xff] %vm1542, %v4684
      %4817 = vst [vmem:[%s226 + $0x350] sm:$0xff] %v4685
      %4818 = vst.msk [vmem:[%s226 + $0x358] sm:$0xff] %vm1542, %v4686
      %4819 = vst [vmem:[%s226 + $0x360] sm:$0xff] %v4687
      %4820 = vst.msk [vmem:[%s226 + $0x368] sm:$0xff] %vm1542, %v4688
      %4821 = vst [vmem:[%s226 + $0x370] sm:$0xff] %v4689
      %4822 = vst.msk [vmem:[%s226 + $0x378] sm:$0xff] %vm1542, %v4690
      %4823 = vst [vmem:[%s226 + $0x380] sm:$0xff] %v4691
      %4824 = vst.msk [vmem:[%s226 + $0x388] sm:$0xff] %vm1542, %v4692
      %4825 = vst [vmem:[%s226 + $0x390] sm:$0xff] %v4693
      %4826 = vst.msk [vmem:[%s226 + $0x398] sm:$0xff] %vm1542, %v4694
      %4827 = vst [vmem:[%s226 + $0x3a0] sm:$0xff] %v4695
      %4828 = vst.msk [vmem:[%s226 + $0x3a8] sm:$0xff] %vm1542, %v4696
      %4829 = vst [vmem:[%s226 + $0x3b0] sm:$0xff] %v4697
      %4830 = vst.msk [vmem:[%s226 + $0x3b8] sm:$0xff] %vm1542, %v4698
      %4831 = vst [vmem:[%s226 + $0x3c0] sm:$0xff] %v4699
      %4832 = vst.msk [vmem:[%s226 + $0x3c8] sm:$0xff] %vm1542, %v4700
      %4833 = vst [vmem:[%s226 + $0x3d0] sm:$0xff] %v4701
      %4834 = vst.msk [vmem:[%s226 + $0x3d8] sm:$0xff] %vm1542, %v4702
      %4835 = vst [vmem:[%s226 + $0x3e0] sm:$0xff] %v4703
      %4836 = vst.msk [vmem:[%s226 + $0x3e8] sm:$0xff] %vm1542, %v4704
      %4837 = vst [vmem:[%s226 + $0x3f0] sm:$0xff] %v4705
      %4838 = vst.msk [vmem:[%s226 + $0x3f8] sm:$0xff] %vm1542, %v4706
      %4839 = vst [vmem:[%s226 + $0x400] sm:$0xff] %v4707
      %4840 = vst.msk [vmem:[%s226 + $0x408] sm:$0xff] %vm1542, %v4708
      %4841 = vst [vmem:[%s226 + $0x410] sm:$0xff] %v4709
      %4842 = vst.msk [vmem:[%s226 + $0x418] sm:$0xff] %vm1542, %v4710
      %s4843 = smul.u32 66, %s15
      %p4844 = scmp.lt.s32.totalorder %s4843, 131
      %s4845 = scalar_select %p4844, %s4843, 131
      %s4846 = smul.addr %s4845, 2
      %s4847 = smul.addr %s4846, 8
      %s4848 = scalar_lea.vmem %s4, %s4847
      // Predicated region
      $region37: #{tpu_custom_call.1} parent=35 // pred_check
        %p4849 = pneg %p127
      $region38: #{tpu_custom_call.1} parent=35 // pred_check_branch
        %4851 = sbr.rel (%p4849) target = $region40
      $region39: #{tpu_custom_call.1} parent=35 // pred_region
        %s4852 = smul.u32 66, %s15
      $region40: #{tpu_custom_call.1} parent=35 // pred_fallthru
        _
    $region36: #{tpu_custom_call.1} parent=5 // pred_fallthru
      _
    %p4853 = scmp.le.s32.totalorder 2, %s10
    // Predicated region
    $region41: #{tpu_custom_call.1} parent=5 // pred_check
      %p4854 = pneg %p4853
    $region42: #{tpu_custom_call.1} parent=5 // pred_check_branch
      %4856 = sbr.rel (%p4854) target = $region44
    $region43: #{tpu_custom_call.1} parent=5 // pred_region
      %s4857 = ssub.s32 %s10, 2
      // Predicated region
      $region45: #{tpu_custom_call.1} parent=43 // pred_check
        %p4858 = pneg %p133
      $region46: #{tpu_custom_call.1} parent=43 // pred_check_branch
        %4860 = sbr.rel (%p4858) target = $region48
      $region47: #{tpu_custom_call.1} parent=43 // pred_region
        %s4861 = smul.u32 66, %s16
        %p4862 = scmp.lt.s32.totalorder %s4861, 131
        %s4863 = scalar_select %p4862, %s4861, 131
        %s4864 = smul.addr %s4863, 2
        %s4865 = smul.addr %s4864, 8
        %s4866 = scalar_lea.vmem %s4, %s4865
      $region48: #{tpu_custom_call.1} parent=43 // pred_fallthru
        _
    $region44: #{tpu_custom_call.1} parent=5 // pred_fallthru
      _
  $region6: #{tpu_custom_call.1} parent=0 // loop_footer
    %s14 = sadd.s32 1, %s10
  $region7: #{tpu_custom_call.1} parent=0 // loop_footer_branch
    %9 = sbr.rel target = $region3
  $region8: #{tpu_custom_call.1} parent=0 // loop_exit
    _

</llo_original>
